<compile_context>
chip_gen: v5e
topology: v5e:2x2
jax: 0.10.0
libtpu: 0.0.40
codegen_flags: <defaults>
</compile_context>

<pallas_src>
from functools import partial

import jax
import jax.numpy as jnp
from jax.experimental import pallas as pl
from jax.experimental.pallas import tpu as pltpu


def _round_up(x, m):
    return (x + m - 1) // m * m


# --------------------------------------------------------------------------- #
# Pallas kernel: full MLP (bf16 matmuls on the MXU, f32 accumulate, f32 bias
# adds, ReLU on the VPU).
# --------------------------------------------------------------------------- #
def _decoder_mlp_kernel(x_ref,
                        w1_ref, b1_ref,
                        w2_ref, b2_ref,
                        w3_ref, b3_ref,
                        w4_ref, b4_ref,
                        out_ref):
    h = jnp.dot(x_ref[...], w1_ref[...],
                preferred_element_type=jnp.float32) + b1_ref[...]
    h = jnp.maximum(h, 0.0).astype(jnp.bfloat16)

    h = jnp.dot(h, w2_ref[...],
                preferred_element_type=jnp.float32) + b2_ref[...]
    h = jnp.maximum(h, 0.0).astype(jnp.bfloat16)

    h = jnp.dot(h, w3_ref[...],
                preferred_element_type=jnp.float32) + b3_ref[...]
    h = jnp.maximum(h, 0.0).astype(jnp.bfloat16)

    h = jnp.dot(h, w4_ref[...],
                preferred_element_type=jnp.float32) + b4_ref[...]

    out_ref[...] = h.astype(out_ref.dtype)


# --------------------------------------------------------------------------- #
# Wrapper: layout prep (K padding, bf16 cast, batch padding) + pallas_call.
# --------------------------------------------------------------------------- #
@partial(jax.jit, static_argnames=("gen_points", "tile_m"))
def decoder_forward(x, params, *, gen_points, tile_m=256):
    """Pallas implementation of _Decoder.forward.

    x: (B, initial_points_num * 259) float32
    params: [(w, b)] * 4 with w stored as (in_features, out_features) (i.e. the
            transpose of PyTorch's Linear weight), b as (1, out_features).
    returns: (B, gen_points, 3) float32
    """
    (w1, b1), (w2, b2), (w3, b3), (w4, b4) = params
    B, F_in = x.shape
    F_out = w4.shape[1]
    assert F_out == gen_points * 3

    # --- first-layer K padding: 518 -> 640 (next multiple of 128) -----------
    K1 = _round_up(F_in, 128)
    if K1 != F_in:
        x = jnp.pad(x, ((0, 0), (0, K1 - F_in)))
        w1 = jnp.pad(w1, ((0, K1 - F_in), (0, 0)))

    # --- bf16 matmul operands, f32 biases ------------------------------------
    x_bf = x.astype(jnp.bfloat16)
    w1b, w2b, w3b, w4b = (w.astype(jnp.bfloat16) for w in (w1, w2, w3, w4))
    b1f, b2f, b3f, b4f = (b.astype(jnp.float32) for b in (b1, b2, b3, b4))

    # --- batch tiling --------------------------------------------------------
    # TM=256 suits the 2x256x256 MXU on v6e/v7x; use tile_m=128 on v5e.
    if B <= tile_m:
        tm, b_pad = B, B                      # single step, full-array blocks
    else:
        tm = tile_m
        b_pad = _round_up(B, tm)
        if b_pad != B:
            x_bf = jnp.pad(x_bf, ((0, b_pad - B), (0, 0)))
    grid = (b_pad // tm,)

    d1, d2, d3 = w1b.shape[1], w2b.shape[1], w3b.shape[1]

    in_specs = [
        pl.BlockSpec((tm, K1), lambda i: (i, 0)),        # x: streams per tile
        pl.BlockSpec((K1, d1), lambda i: (0, 0)),        # w1: resident
        pl.BlockSpec((1, d1), lambda i: (0, 0)),         # b1
        pl.BlockSpec((d1, d2), lambda i: (0, 0)),        # w2
        pl.BlockSpec((1, d2), lambda i: (0, 0)),         # b2
        pl.BlockSpec((d2, d3), lambda i: (0, 0)),        # w3
        pl.BlockSpec((1, d3), lambda i: (0, 0)),         # b3
        pl.BlockSpec((d3, F_out), lambda i: (0, 0)),     # w4
        pl.BlockSpec((1, F_out), lambda i: (0, 0)),      # b4
    ]
    out_spec = pl.BlockSpec((tm, F_out), lambda i: (i, 0))

    flops = 2 * b_pad * (K1 * d1 + d1 * d2 + d2 * d3 + d3 * F_out)
    bytes_accessed = (
        b_pad * K1 * 2
        + sum(w.size * 2 for w in (w1b, w2b, w3b, w4b))
        + sum(b.size * 4 for b in (b1f, b2f, b3f, b4f))
        + b_pad * F_out * 4
    )

    out_flat = pl.pallas_call(
        _decoder_mlp_kernel,
        out_shape=jax.ShapeDtypeStruct((b_pad, F_out), jnp.float32),
        grid_spec=pl.GridSpec(grid=grid, in_specs=in_specs, out_specs=out_spec),
        compiler_params=pltpu.CompilerParams(
            dimension_semantics=("parallel",),   # batch tiles are independent
            vmem_limit_bytes=48 * 1024 * 1024,   # safe on v5e/v6e/v7x budgets
        ),
        cost_estimate=pl.CostEstimate(
            flops=flops, transcendentals=0, bytes_accessed=bytes_accessed),
    )(x_bf, w1b, b1f, w2b, b2f, w3b, b3f, w4b, b4f)

    out_flat = out_flat[:B]
    # Glue: view(-1, gen_points, 3) stays outside the kernel.
    return out_flat.reshape(-1, gen_points, 3)


# --------------------------------------------------------------------------- #
# Deterministic parameter init (mimics torch.nn.Linear default init:
# U(-1/sqrt(fan_in), 1/sqrt(fan_in)) for both weight and bias), stored f32.
# --------------------------------------------------------------------------- #
def init_params(key, initial_points_num, gen_points):
    dims = [initial_points_num * 259, 512, 512, 512, gen_points * 3]
    params = []
    for i in range(4):
        fan_in, fan_out = dims[i], dims[i + 1]
        key, kw, kb = jax.random.split(key, 3)
        bound = 1.0 / jnp.sqrt(fan_in)
        # Stored as (in, out): transpose of PyTorch's (out, in) layout.
        w = jax.random.uniform(kw, (fan_in, fan_out), jnp.float32, -bound, bound)
        b = jax.random.uniform(kb, (1, fan_out), jnp.float32, -bound, bound)
        params.append((w, b))
    return params


def decoder_reference(x, params, gen_points):
    h = x
    for i, (w, b) in enumerate(params):
        h = h @ w + b
        if i < 3:
            h = jnp.maximum(h, 0.0)
    return h.reshape(-1, gen_points, 3)


if __name__ == "__main__":
    # Small, shape-consistent configuration:
    #   initial_points_num = 2   -> input feature dim = 2 * 259 = 518
    #   gen_points         = 128 -> output feature dim = 384 (= 3 * 128 lanes)
    initial_points_num = 2
    gen_points = 128

    key = jax.random.PRNGKey(0)
    key, kx1, kx2 = jax.random.split(key, 3)
    params = init_params(key, initial_points_num, gen_points)

    # bf16 matmul operands vs f32 reference -> relaxed tolerance.
    ATOL, RTOL = 5e-2, 5e-2

    # ---- case 1: tiny batch (single full-batch block) -----------------------
    batch = 2
    x = jax.random.normal(kx1, (batch, initial_points_num * 259), jnp.float32)
    out = jax.block_until_ready(decoder_forward(x, params, gen_points=gen_points))
    ref = decoder_reference(x, params, gen_points)
    assert out.shape == (batch, gen_points, 3), out.shape
    assert jnp.allclose(out, ref, atol=ATOL, rtol=RTOL), "mismatch (tiny batch)"

    # ---- case 2: batch-tiled path (grid > 1, batch padding + resident W) ----
    batch2 = 300  # pads to 512 with TM=256 -> grid=(2,)
    x2 = jax.random.normal(kx2, (batch2, initial_points_num * 259), jnp.float32)
    out2 = jax.block_until_ready(
        decoder_forward(x2, params, gen_points=gen_points, tile_m=256))
    ref2 = decoder_reference(x2, params, gen_points)
    assert out2.shape == (batch2, gen_points, 3), out2.shape
    assert jnp.allclose(out2, ref2, atol=ATOL, rtol=RTOL), "mismatch (tiled)"

    print("KERNEL_OK")
</pallas_src>

<mosaic_0001>
module attributes {stable_mosaic.version = 11 : i64} {
  func.func @_decoder_mlp_kernel(%arg0: i32, %arg1: memref<2x640xbf16, #tpu.memory_space<vmem>>, %arg2: memref<640x512xbf16, #tpu.memory_space<vmem>>, %arg3: memref<1x512xf32, #tpu.memory_space<vmem>>, %arg4: memref<512x512xbf16, #tpu.memory_space<vmem>>, %arg5: memref<1x512xf32, #tpu.memory_space<vmem>>, %arg6: memref<512x512xbf16, #tpu.memory_space<vmem>>, %arg7: memref<1x512xf32, #tpu.memory_space<vmem>>, %arg8: memref<512x384xbf16, #tpu.memory_space<vmem>>, %arg9: memref<1x384xf32, #tpu.memory_space<vmem>>, %arg10: memref<2x384xf32, #tpu.memory_space<vmem>>) attributes {dimension_semantics = [#tpu.dimension_semantics<parallel>], iteration_bounds = array<i64: 1>, scalar_prefetch = 0 : i64, scratch_operands = 0 : i64, tpu.core_type = #tpu.core_type<tc>, window_params = [{transform_indices = @transform_0, window_bounds = array<i64: 2, 640>}, {pipeline_mode = #tpu.pipeline_mode<synchronous>, transform_indices = @transform_1, window_bounds = array<i64: 640, 512>}, {pipeline_mode = #tpu.pipeline_mode<synchronous>, transform_indices = @transform_2, window_bounds = array<i64: 1, 512>}, {pipeline_mode = #tpu.pipeline_mode<synchronous>, transform_indices = @transform_3, window_bounds = array<i64: 512, 512>}, {pipeline_mode = #tpu.pipeline_mode<synchronous>, transform_indices = @transform_4, window_bounds = array<i64: 1, 512>}, {pipeline_mode = #tpu.pipeline_mode<synchronous>, transform_indices = @transform_5, window_bounds = array<i64: 512, 512>}, {pipeline_mode = #tpu.pipeline_mode<synchronous>, transform_indices = @transform_6, window_bounds = array<i64: 1, 512>}, {pipeline_mode = #tpu.pipeline_mode<synchronous>, transform_indices = @transform_7, window_bounds = array<i64: 512, 384>}, {pipeline_mode = #tpu.pipeline_mode<synchronous>, transform_indices = @transform_8, window_bounds = array<i64: 1, 384>}, {transform_indices = @transform_9, window_bounds = array<i64: 2, 384>}]} {
    %c0 = arith.constant 0 : index
    %c0_0 = arith.constant 0 : index
    %0 = vector.load %arg1[%c0, %c0_0] : memref<2x640xbf16, #tpu.memory_space<vmem>>, vector<2x640xbf16>
    %c0_1 = arith.constant 0 : index
    %c0_2 = arith.constant 0 : index
    %1 = vector.load %arg2[%c0_1, %c0_2] : memref<640x512xbf16, #tpu.memory_space<vmem>>, vector<640x512xbf16>
    %cst = arith.constant dense<0.000000e+00> : vector<2x512xf32>
    %2 = tpu.matmul %0, %1, %cst {dimension_numbers = #tpu.dot_dimension_numbers<[1], [0], [0], [1], [0, 0, 1, 1], [], []>} : vector<2x640xbf16>, vector<640x512xbf16>, vector<2x512xf32> -> vector<2x512xf32>
    %c0_3 = arith.constant 0 : index
    %c0_4 = arith.constant 0 : index
    %3 = vector.load %arg3[%c0_3, %c0_4] : memref<1x512xf32, #tpu.memory_space<vmem>>, vector<1x512xf32>
    %4 = vector.broadcast %3 : vector<1x512xf32> to vector<2x512xf32>
    %5 = arith.addf %2, %4 : vector<2x512xf32>
    %cst_5 = arith.constant 0.000000e+00 : f32
    %6 = vector.broadcast %cst_5 : f32 to vector<2x512xf32>
    %7 = arith.maximumf %5, %6 : vector<2x512xf32>
    %8 = arith.truncf %7 : vector<2x512xf32> to vector<2x512xbf16>
    %c0_6 = arith.constant 0 : index
    %c0_7 = arith.constant 0 : index
    %9 = vector.load %arg4[%c0_6, %c0_7] : memref<512x512xbf16, #tpu.memory_space<vmem>>, vector<512x512xbf16>
    %cst_8 = arith.constant dense<0.000000e+00> : vector<2x512xf32>
    %10 = tpu.matmul %8, %9, %cst_8 {dimension_numbers = #tpu.dot_dimension_numbers<[1], [0], [0], [1], [0, 0, 1, 1], [], []>} : vector<2x512xbf16>, vector<512x512xbf16>, vector<2x512xf32> -> vector<2x512xf32>
    %c0_9 = arith.constant 0 : index
    %c0_10 = arith.constant 0 : index
    %11 = vector.load %arg5[%c0_9, %c0_10] : memref<1x512xf32, #tpu.memory_space<vmem>>, vector<1x512xf32>
    %12 = vector.broadcast %11 : vector<1x512xf32> to vector<2x512xf32>
    %13 = arith.addf %10, %12 : vector<2x512xf32>
    %cst_11 = arith.constant 0.000000e+00 : f32
    %14 = vector.broadcast %cst_11 : f32 to vector<2x512xf32>
    %15 = arith.maximumf %13, %14 : vector<2x512xf32>
    %16 = arith.truncf %15 : vector<2x512xf32> to vector<2x512xbf16>
    %c0_12 = arith.constant 0 : index
    %c0_13 = arith.constant 0 : index
    %17 = vector.load %arg6[%c0_12, %c0_13] : memref<512x512xbf16, #tpu.memory_space<vmem>>, vector<512x512xbf16>
    %cst_14 = arith.constant dense<0.000000e+00> : vector<2x512xf32>
    %18 = tpu.matmul %16, %17, %cst_14 {dimension_numbers = #tpu.dot_dimension_numbers<[1], [0], [0], [1], [0, 0, 1, 1], [], []>} : vector<2x512xbf16>, vector<512x512xbf16>, vector<2x512xf32> -> vector<2x512xf32>
    %c0_15 = arith.constant 0 : index
    %c0_16 = arith.constant 0 : index
    %19 = vector.load %arg7[%c0_15, %c0_16] : memref<1x512xf32, #tpu.memory_space<vmem>>, vector<1x512xf32>
    %20 = vector.broadcast %19 : vector<1x512xf32> to vector<2x512xf32>
    %21 = arith.addf %18, %20 : vector<2x512xf32>
    %cst_17 = arith.constant 0.000000e+00 : f32
    %22 = vector.broadcast %cst_17 : f32 to vector<2x512xf32>
    %23 = arith.maximumf %21, %22 : vector<2x512xf32>
    %24 = arith.truncf %23 : vector<2x512xf32> to vector<2x512xbf16>
    %c0_18 = arith.constant 0 : index
    %c0_19 = arith.constant 0 : index
    %25 = vector.load %arg8[%c0_18, %c0_19] : memref<512x384xbf16, #tpu.memory_space<vmem>>, vector<512x384xbf16>
    %cst_20 = arith.constant dense<0.000000e+00> : vector<2x384xf32>
    %26 = tpu.matmul %24, %25, %cst_20 {dimension_numbers = #tpu.dot_dimension_numbers<[1], [0], [0], [1], [0, 0, 1, 1], [], []>} : vector<2x512xbf16>, vector<512x384xbf16>, vector<2x384xf32> -> vector<2x384xf32>
    %c0_21 = arith.constant 0 : index
    %c0_22 = arith.constant 0 : index
    %27 = vector.load %arg9[%c0_21, %c0_22] : memref<1x384xf32, #tpu.memory_space<vmem>>, vector<1x384xf32>
    %28 = vector.broadcast %27 : vector<1x384xf32> to vector<2x384xf32>
    %29 = arith.addf %26, %28 : vector<2x384xf32>
    %c0_23 = arith.constant 0 : index
    %c0_24 = arith.constant 0 : index
    %30 = vector.load %arg10[%c0_23, %c0_24] : memref<2x384xf32, #tpu.memory_space<vmem>>, vector<2x384xf32>
    tpu.vector_store %arg10[%c0_23, %c0_24], %29 {strides = array<i32>} : memref<2x384xf32, #tpu.memory_space<vmem>>, vector<2x384xf32>,
    return
  }
  func.func @transform_0(%arg0: i32) -> (i32, i32) {
    %c0_i32 = arith.constant 0 : i32
    %c0_i32_0 = arith.constant 0 : i32
    return %arg0, %c0_i32 : i32, i32
  }
  func.func @transform_1(%arg0: i32) -> (i32, i32) {
    %c0_i32 = arith.constant 0 : i32
    %c0_i32_0 = arith.constant 0 : i32
    %c0_i32_1 = arith.constant 0 : i32
    return %c0_i32, %c0_i32_0 : i32, i32
  }
  func.func @transform_2(%arg0: i32) -> (i32, i32) {
    %c0_i32 = arith.constant 0 : i32
    %c0_i32_0 = arith.constant 0 : i32
    %c0_i32_1 = arith.constant 0 : i32
    return %c0_i32, %c0_i32_0 : i32, i32
  }
  func.func @transform_3(%arg0: i32) -> (i32, i32) {
    %c0_i32 = arith.constant 0 : i32
    %c0_i32_0 = arith.constant 0 : i32
    %c0_i32_1 = arith.constant 0 : i32
    return %c0_i32, %c0_i32_0 : i32, i32
  }
  func.func @transform_4(%arg0: i32) -> (i32, i32) {
    %c0_i32 = arith.constant 0 : i32
    %c0_i32_0 = arith.constant 0 : i32
    %c0_i32_1 = arith.constant 0 : i32
    return %c0_i32, %c0_i32_0 : i32, i32
  }
  func.func @transform_5(%arg0: i32) -> (i32, i32) {
    %c0_i32 = arith.constant 0 : i32
    %c0_i32_0 = arith.constant 0 : i32
    %c0_i32_1 = arith.constant 0 : i32
    return %c0_i32, %c0_i32_0 : i32, i32
  }
  func.func @transform_6(%arg0: i32) -> (i32, i32) {
    %c0_i32 = arith.constant 0 : i32
    %c0_i32_0 = arith.constant 0 : i32
    %c0_i32_1 = arith.constant 0 : i32
    return %c0_i32, %c0_i32_0 : i32, i32
  }
  func.func @transform_7(%arg0: i32) -> (i32, i32) {
    %c0_i32 = arith.constant 0 : i32
    %c0_i32_0 = arith.constant 0 : i32
    %c0_i32_1 = arith.constant 0 : i32
    return %c0_i32, %c0_i32_0 : i32, i32
  }
  func.func @transform_8(%arg0: i32) -> (i32, i32) {
    %c0_i32 = arith.constant 0 : i32
    %c0_i32_0 = arith.constant 0 : i32
    %c0_i32_1 = arith.constant 0 : i32
    return %c0_i32, %c0_i32_0 : i32, i32
  }
  func.func @transform_9(%arg0: i32) -> (i32, i32) {
    %c0_i32 = arith.constant 0 : i32
    %c0_i32_0 = arith.constant 0 : i32
    return %arg0, %c0_i32 : i32, i32
  }
}

</mosaic_0001>

<llo_original>
// kernel: decoder_forward.1
$region0: #{decoder_forward.1}
  #allocation0 [shape = 'u32[]', space=smem, size = 0x4, offset = 0x4, fixed_abs, tag = 'smem constant byte address 0x4 - core index']
  #allocation1 [shape = 'u32[72,128]{1,0:T(1,128)}', space=vmem, size = 0x9000, scoped, tag = 'internal scratch']
  %s0 = inlined_call_operand.vmem [shape: bf16[2,640], index: 0, kind: input, shape index: {}]
  %s1 = inlined_call_operand.vmem [shape: bf16[640,512], index: 1, kind: input, shape index: {}]
  %s2 = inlined_call_operand.vmem [shape: f32[1,512], index: 2, kind: input, shape index: {}]
  %s3 = inlined_call_operand.vmem [shape: bf16[512,512], index: 3, kind: input, shape index: {}]
  %s4 = inlined_call_operand.vmem [shape: f32[1,512], index: 4, kind: input, shape index: {}]
  %s5 = inlined_call_operand.vmem [shape: bf16[512,512], index: 5, kind: input, shape index: {}]
  %s6 = inlined_call_operand.vmem [shape: f32[1,512], index: 6, kind: input, shape index: {}]
  %s7 = inlined_call_operand.vmem [shape: bf16[512,384], index: 7, kind: input, shape index: {}]
  %s8 = inlined_call_operand.vmem [shape: f32[1,384], index: 8, kind: input, shape index: {}]
  %s9 = inlined_call_operand.vmem [shape: f32[2,384], index: 9, kind: output, shape index: {}]
  %s10 = sld [smem:[#allocation0]]
  $region46: #{decoder_forward.1} parent=0
    _
  %s12 = ssub.s32 1, %s10
  %s13 = scalar_select 0, %s12, %s10
  // Predicated region
  $region2: #{decoder_forward.1} parent=0 // pred_check
    _
  $region3: #{decoder_forward.1} parent=0 // pred_check_branch
    %15 = sbr.rel (0) target = $region5
  $region4: #{decoder_forward.1} parent=0 // pred_region
    _
  $region5: #{decoder_forward.1} parent=0 // pred_fallthru
    _
  // Predicated region
  $region6: #{decoder_forward.1} parent=0 // pred_check
    _
  $region7: #{decoder_forward.1} parent=0 // pred_check_branch
    %17 = sbr.rel (0) target = $region9
  $region8: #{decoder_forward.1} parent=0 // pred_region
    _
  $region9: #{decoder_forward.1} parent=0 // pred_fallthru
    _
  // Predicated region
  $region10: #{decoder_forward.1} parent=0 // pred_check
    _
  $region11: #{decoder_forward.1} parent=0 // pred_check_branch
    %19 = sbr.rel (0) target = $region13
  $region12: #{decoder_forward.1} parent=0 // pred_region
    _
  $region13: #{decoder_forward.1} parent=0 // pred_fallthru
    _
  // Predicated region
  $region14: #{decoder_forward.1} parent=0 // pred_check
    _
  $region15: #{decoder_forward.1} parent=0 // pred_check_branch
    %21 = sbr.rel (0) target = $region17
  $region16: #{decoder_forward.1} parent=0 // pred_region
    _
  $region17: #{decoder_forward.1} parent=0 // pred_fallthru
    _
  // Predicated region
  $region18: #{decoder_forward.1} parent=0 // pred_check
    _
  $region19: #{decoder_forward.1} parent=0 // pred_check_branch
    %23 = sbr.rel (0) target = $region21
  $region20: #{decoder_forward.1} parent=0 // pred_region
    _
  $region21: #{decoder_forward.1} parent=0 // pred_fallthru
    _
  // Predicated region
  $region22: #{decoder_forward.1} parent=0 // pred_check
    _
  $region23: #{decoder_forward.1} parent=0 // pred_check_branch
    %25 = sbr.rel (0) target = $region25
  $region24: #{decoder_forward.1} parent=0 // pred_region
    _
  $region25: #{decoder_forward.1} parent=0 // pred_fallthru
    _
  // Predicated region
  $region26: #{decoder_forward.1} parent=0 // pred_check
    _
  $region27: #{decoder_forward.1} parent=0 // pred_check_branch
    %27 = sbr.rel (0) target = $region29
  $region28: #{decoder_forward.1} parent=0 // pred_region
    _
  $region29: #{decoder_forward.1} parent=0 // pred_fallthru
    _
  // Predicated region
  $region30: #{decoder_forward.1} parent=0 // pred_check
    _
  $region31: #{decoder_forward.1} parent=0 // pred_check_branch
    %29 = sbr.rel (0) target = $region33
  $region32: #{decoder_forward.1} parent=0 // pred_region
    _
  $region33: #{decoder_forward.1} parent=0 // pred_fallthru
    _
  // Predicated region
  $region34: #{decoder_forward.1} parent=0 // pred_check
    _
  $region35: #{decoder_forward.1} parent=0 // pred_check_branch
    %31 = sbr.rel (0) target = $region37
  $region36: #{decoder_forward.1} parent=0 // pred_region
    _
  $region37: #{decoder_forward.1} parent=0 // pred_fallthru
    _
  %v32 = vld [vmem:[%s0] sm:$0x1f]
  %v33 = vld [vmem:[%s1] sm:$0xff]
  %v34 = vld [vmem:[%s1 + $0x8] sm:$0xff]
  %v35 = vld [vmem:[%s1 + $0x10] sm:$0xff]
  %v36 = vld [vmem:[%s1 + $0x18] sm:$0xff]
  %v37 = vld [vmem:[%s1 + $0x20] sm:$0xff]
  %v38 = vld [vmem:[%s1 + $0x28] sm:$0xff]
  %v39 = vld [vmem:[%s1 + $0x30] sm:$0xff]
  %v40 = vld [vmem:[%s1 + $0x38] sm:$0xff]
  %v41 = vld [vmem:[%s1 + $0x40] sm:$0xff]
  %v42 = vld [vmem:[%s1 + $0x48] sm:$0xff]
  %v43 = vld [vmem:[%s1 + $0x50] sm:$0xff]
  %v44 = vld [vmem:[%s1 + $0x58] sm:$0xff]
  %v45 = vld [vmem:[%s1 + $0x60] sm:$0xff]
  %v46 = vld [vmem:[%s1 + $0x68] sm:$0xff]
  %v47 = vld [vmem:[%s1 + $0x70] sm:$0xff]
  %v48 = vld [vmem:[%s1 + $0x78] sm:$0xff]
  %v49 = vld [vmem:[%s1 + $0x80] sm:$0xff]
  %v50 = vld [vmem:[%s1 + $0x88] sm:$0xff]
  %v51 = vld [vmem:[%s1 + $0x90] sm:$0xff]
  %v52 = vld [vmem:[%s1 + $0x98] sm:$0xff]
  %v53 = vld [vmem:[%s1 + $0xa0] sm:$0xff]
  %v54 = vld [vmem:[%s1 + $0xa8] sm:$0xff]
  %v55 = vld [vmem:[%s1 + $0xb0] sm:$0xff]
  %v56 = vld [vmem:[%s1 + $0xb8] sm:$0xff]
  %v57 = vld [vmem:[%s1 + $0xc0] sm:$0xff]
  %v58 = vld [vmem:[%s1 + $0xc8] sm:$0xff]
  %v59 = vld [vmem:[%s1 + $0xd0] sm:$0xff]
  %v60 = vld [vmem:[%s1 + $0xd8] sm:$0xff]
  %v61 = vld [vmem:[%s1 + $0xe0] sm:$0xff]
  %v62 = vld [vmem:[%s1 + $0xe8] sm:$0xff]
  %v63 = vld [vmem:[%s1 + $0xf0] sm:$0xff]
  %v64 = vld [vmem:[%s1 + $0xf8] sm:$0xff]
  %v65 = vld [vmem:[%s1 + $0x100] sm:$0xff]
  %v66 = vld [vmem:[%s1 + $0x108] sm:$0xff]
  %v67 = vld [vmem:[%s1 + $0x110] sm:$0xff]
  %v68 = vld [vmem:[%s1 + $0x118] sm:$0xff]
  %v69 = vld [vmem:[%s1 + $0x120] sm:$0xff]
  %v70 = vld [vmem:[%s1 + $0x128] sm:$0xff]
  %v71 = vld [vmem:[%s1 + $0x130] sm:$0xff]
  %v72 = vld [vmem:[%s1 + $0x138] sm:$0xff]
  %v73 = vld [vmem:[%s1 + $0x140] sm:$0xff]
  %v74 = vld [vmem:[%s1 + $0x148] sm:$0xff]
  %v75 = vld [vmem:[%s1 + $0x150] sm:$0xff]
  %v76 = vld [vmem:[%s1 + $0x158] sm:$0xff]
  %v77 = vld [vmem:[%s1 + $0x160] sm:$0xff]
  %v78 = vld [vmem:[%s1 + $0x168] sm:$0xff]
  %v79 = vld [vmem:[%s1 + $0x170] sm:$0xff]
  %v80 = vld [vmem:[%s1 + $0x178] sm:$0xff]
  %v81 = vld [vmem:[%s1 + $0x180] sm:$0xff]
  %v82 = vld [vmem:[%s1 + $0x188] sm:$0xff]
  %v83 = vld [vmem:[%s1 + $0x190] sm:$0xff]
  %v84 = vld [vmem:[%s1 + $0x198] sm:$0xff]
  %v85 = vld [vmem:[%s1 + $0x1a0] sm:$0xff]
  %v86 = vld [vmem:[%s1 + $0x1a8] sm:$0xff]
  %v87 = vld [vmem:[%s1 + $0x1b0] sm:$0xff]
  %v88 = vld [vmem:[%s1 + $0x1b8] sm:$0xff]
  %v89 = vld [vmem:[%s1 + $0x1c0] sm:$0xff]
  %v90 = vld [vmem:[%s1 + $0x1c8] sm:$0xff]
  %v91 = vld [vmem:[%s1 + $0x1d0] sm:$0xff]
  %v92 = vld [vmem:[%s1 + $0x1d8] sm:$0xff]
  %v93 = vld [vmem:[%s1 + $0x1e0] sm:$0xff]
  %v94 = vld [vmem:[%s1 + $0x1e8] sm:$0xff]
  %v95 = vld [vmem:[%s1 + $0x1f0] sm:$0xff]
  %v96 = vld [vmem:[%s1 + $0x1f8] sm:$0xff]
  %v97 = vld [vmem:[%s1 + $0x200] sm:$0xff]
  %v98 = vld [vmem:[%s1 + $0x208] sm:$0xff]
  %v99 = vld [vmem:[%s1 + $0x210] sm:$0xff]
  %v100 = vld [vmem:[%s1 + $0x218] sm:$0xff]
  %v101 = vld [vmem:[%s1 + $0x220] sm:$0xff]
  %v102 = vld [vmem:[%s1 + $0x228] sm:$0xff]
  %v103 = vld [vmem:[%s1 + $0x230] sm:$0xff]
  %v104 = vld [vmem:[%s1 + $0x238] sm:$0xff]
  %v105 = vld [vmem:[%s1 + $0x240] sm:$0xff]
  %v106 = vld [vmem:[%s1 + $0x248] sm:$0xff]
  %v107 = vld [vmem:[%s1 + $0x250] sm:$0xff]
  %v108 = vld [vmem:[%s1 + $0x258] sm:$0xff]
  %v109 = vld [vmem:[%s1 + $0x260] sm:$0xff]
  %v110 = vld [vmem:[%s1 + $0x268] sm:$0xff]
  %v111 = vld [vmem:[%s1 + $0x270] sm:$0xff]
  %v112 = vld [vmem:[%s1 + $0x278] sm:$0xff]
  %v113 = vld [vmem:[%s1 + $0x280] sm:$0xff]
  %v114 = vld [vmem:[%s1 + $0x288] sm:$0xff]
  %v115 = vld [vmem:[%s1 + $0x290] sm:$0xff]
  %v116 = vld [vmem:[%s1 + $0x298] sm:$0xff]
  %v117 = vld [vmem:[%s1 + $0x2a0] sm:$0xff]
  %v118 = vld [vmem:[%s1 + $0x2a8] sm:$0xff]
  %v119 = vld [vmem:[%s1 + $0x2b0] sm:$0xff]
  %v120 = vld [vmem:[%s1 + $0x2b8] sm:$0xff]
  %v121 = vld [vmem:[%s1 + $0x2c0] sm:$0xff]
  %v122 = vld [vmem:[%s1 + $0x2c8] sm:$0xff]
  %v123 = vld [vmem:[%s1 + $0x2d0] sm:$0xff]
  %v124 = vld [vmem:[%s1 + $0x2d8] sm:$0xff]
  %v125 = vld [vmem:[%s1 + $0x2e0] sm:$0xff]
  %v126 = vld [vmem:[%s1 + $0x2e8] sm:$0xff]
  %v127 = vld [vmem:[%s1 + $0x2f0] sm:$0xff]
  %v128 = vld [vmem:[%s1 + $0x2f8] sm:$0xff]
  %v129 = vld [vmem:[%s1 + $0x300] sm:$0xff]
  %v130 = vld [vmem:[%s1 + $0x308] sm:$0xff]
  %v131 = vld [vmem:[%s1 + $0x310] sm:$0xff]
  %v132 = vld [vmem:[%s1 + $0x318] sm:$0xff]
  %v133 = vld [vmem:[%s1 + $0x320] sm:$0xff]
  %v134 = vld [vmem:[%s1 + $0x328] sm:$0xff]
  %v135 = vld [vmem:[%s1 + $0x330] sm:$0xff]
  %v136 = vld [vmem:[%s1 + $0x338] sm:$0xff]
  %v137 = vld [vmem:[%s1 + $0x340] sm:$0xff]
  %v138 = vld [vmem:[%s1 + $0x348] sm:$0xff]
  %v139 = vld [vmem:[%s1 + $0x350] sm:$0xff]
  %v140 = vld [vmem:[%s1 + $0x358] sm:$0xff]
  %v141 = vld [vmem:[%s1 + $0x360] sm:$0xff]
  %v142 = vld [vmem:[%s1 + $0x368] sm:$0xff]
  %v143 = vld [vmem:[%s1 + $0x370] sm:$0xff]
  %v144 = vld [vmem:[%s1 + $0x378] sm:$0xff]
  %v145 = vld [vmem:[%s1 + $0x380] sm:$0xff]
  %v146 = vld [vmem:[%s1 + $0x388] sm:$0xff]
  %v147 = vld [vmem:[%s1 + $0x390] sm:$0xff]
  %v148 = vld [vmem:[%s1 + $0x398] sm:$0xff]
  %v149 = vld [vmem:[%s1 + $0x3a0] sm:$0xff]
  %v150 = vld [vmem:[%s1 + $0x3a8] sm:$0xff]
  %v151 = vld [vmem:[%s1 + $0x3b0] sm:$0xff]
  %v152 = vld [vmem:[%s1 + $0x3b8] sm:$0xff]
  %v153 = vld [vmem:[%s1 + $0x3c0] sm:$0xff]
  %v154 = vld [vmem:[%s1 + $0x3c8] sm:$0xff]
  %v155 = vld [vmem:[%s1 + $0x3d0] sm:$0xff]
  %v156 = vld [vmem:[%s1 + $0x3d8] sm:$0xff]
  %v157 = vld [vmem:[%s1 + $0x3e0] sm:$0xff]
  %v158 = vld [vmem:[%s1 + $0x3e8] sm:$0xff]
  %v159 = vld [vmem:[%s1 + $0x3f0] sm:$0xff]
  %v160 = vld [vmem:[%s1 + $0x3f8] sm:$0xff]
  %v161 = vld [vmem:[%s1 + $0x400] sm:$0xff]
  %v162 = vld [vmem:[%s1 + $0x408] sm:$0xff]
  %v163 = vld [vmem:[%s1 + $0x410] sm:$0xff]
  %v164 = vld [vmem:[%s1 + $0x418] sm:$0xff]
  %v165 = vld [vmem:[%s1 + $0x420] sm:$0xff]
  %v166 = vld [vmem:[%s1 + $0x428] sm:$0xff]
  %v167 = vld [vmem:[%s1 + $0x430] sm:$0xff]
  %v168 = vld [vmem:[%s1 + $0x438] sm:$0xff]
  %v169 = vld [vmem:[%s1 + $0x440] sm:$0xff]
  %v170 = vld [vmem:[%s1 + $0x448] sm:$0xff]
  %v171 = vld [vmem:[%s1 + $0x450] sm:$0xff]
  %v172 = vld [vmem:[%s1 + $0x458] sm:$0xff]
  %v173 = vld [vmem:[%s1 + $0x460] sm:$0xff]
  %v174 = vld [vmem:[%s1 + $0x468] sm:$0xff]
  %v175 = vld [vmem:[%s1 + $0x470] sm:$0xff]
  %v176 = vld [vmem:[%s1 + $0x478] sm:$0xff]
  %v177 = vld [vmem:[%s1 + $0x480] sm:$0xff]
  %v178 = vld [vmem:[%s1 + $0x488] sm:$0xff]
  %v179 = vld [vmem:[%s1 + $0x490] sm:$0xff]
  %v180 = vld [vmem:[%s1 + $0x498] sm:$0xff]
  %v181 = vld [vmem:[%s1 + $0x4a0] sm:$0xff]
  %v182 = vld [vmem:[%s1 + $0x4a8] sm:$0xff]
  %v183 = vld [vmem:[%s1 + $0x4b0] sm:$0xff]
  %v184 = vld [vmem:[%s1 + $0x4b8] sm:$0xff]
  %v185 = vld [vmem:[%s1 + $0x4c0] sm:$0xff]
  %v186 = vld [vmem:[%s1 + $0x4c8] sm:$0xff]
  %v187 = vld [vmem:[%s1 + $0x4d0] sm:$0xff]
  %v188 = vld [vmem:[%s1 + $0x4d8] sm:$0xff]
  %v189 = vld [vmem:[%s1 + $0x4e0] sm:$0xff]
  %v190 = vld [vmem:[%s1 + $0x4e8] sm:$0xff]
  %v191 = vld [vmem:[%s1 + $0x4f0] sm:$0xff]
  %v192 = vld [vmem:[%s1 + $0x4f8] sm:$0xff]
  %v193 = vld [vmem:[%s2] sm:$0xf]
  %v195 = vperm.slane %v193, 0
  %v196 = vperm.slane %v193, 1
  %v197 = vperm.slane %v193, 2
  %v198 = vperm.slane %v193, 3
  %204 = vst [vmem:[#allocation1] ss:$9 sm:$0xff] %v32
  %v205 = vld [vmem:[#allocation1] sm:$0xff]
  %v206 = vld [vmem:[#allocation1 + $0x9] sm:$0xff]
  %v207 = vld [vmem:[#allocation1 + $0x12] sm:$0xff]
  %v208 = vld [vmem:[#allocation1 + $0x1b] sm:$0xff]
  %v209 = vld [vmem:[#allocation1 + $0x24] sm:$0xff]
  %v375 = vunpack.c.l.b16 %v33
  %v376 = vunpack.c.h.b16 %v33
  %v377 = vunpack.c.l.b16 %v34
  %v378 = vunpack.c.h.b16 %v34
  %v379 = vunpack.c.l.b16 %v35
  %v380 = vunpack.c.h.b16 %v35
  %v381 = vunpack.c.l.b16 %v36
  %v382 = vunpack.c.h.b16 %v36
  %v383 = vunpack.c.l.b16 %v37
  %v384 = vunpack.c.h.b16 %v37
  %v385 = vunpack.c.l.b16 %v38
  %v386 = vunpack.c.h.b16 %v38
  %v387 = vunpack.c.l.b16 %v39
  %v388 = vunpack.c.h.b16 %v39
  %v389 = vunpack.c.l.b16 %v40
  %v390 = vunpack.c.h.b16 %v40
  %v391 = vunpack.c.l.b16 %v41
  %v392 = vunpack.c.h.b16 %v41
  %v393 = vunpack.c.l.b16 %v42
  %v394 = vunpack.c.h.b16 %v42
  %v395 = vunpack.c.l.b16 %v43
  %v396 = vunpack.c.h.b16 %v43
  %v397 = vunpack.c.l.b16 %v44
  %v398 = vunpack.c.h.b16 %v44
  %v399 = vunpack.c.l.b16 %v45
  %v400 = vunpack.c.h.b16 %v45
  %v401 = vunpack.c.l.b16 %v46
  %v402 = vunpack.c.h.b16 %v46
  %v403 = vunpack.c.l.b16 %v47
  %v404 = vunpack.c.h.b16 %v47
  %v405 = vunpack.c.l.b16 %v48
  %v406 = vunpack.c.h.b16 %v48
  %v407 = vunpack.c.l.b16 %v49
  %v408 = vunpack.c.h.b16 %v49
  %v409 = vunpack.c.l.b16 %v50
  %v410 = vunpack.c.h.b16 %v50
  %v411 = vunpack.c.l.b16 %v51
  %v412 = vunpack.c.h.b16 %v51
  %v413 = vunpack.c.l.b16 %v52
  %v414 = vunpack.c.h.b16 %v52
  %v415 = vunpack.c.l.b16 %v53
  %v416 = vunpack.c.h.b16 %v53
  %v417 = vunpack.c.l.b16 %v54
  %v418 = vunpack.c.h.b16 %v54
  %v419 = vunpack.c.l.b16 %v55
  %v420 = vunpack.c.h.b16 %v55
  %v421 = vunpack.c.l.b16 %v56
  %v422 = vunpack.c.h.b16 %v56
  %v423 = vunpack.c.l.b16 %v57
  %v424 = vunpack.c.h.b16 %v57
  %v425 = vunpack.c.l.b16 %v58
  %v426 = vunpack.c.h.b16 %v58
  %v427 = vunpack.c.l.b16 %v59
  %v428 = vunpack.c.h.b16 %v59
  %v429 = vunpack.c.l.b16 %v60
  %v430 = vunpack.c.h.b16 %v60
  %v431 = vunpack.c.l.b16 %v61
  %v432 = vunpack.c.h.b16 %v61
  %v433 = vunpack.c.l.b16 %v62
  %v434 = vunpack.c.h.b16 %v62
  %v435 = vunpack.c.l.b16 %v63
  %v436 = vunpack.c.h.b16 %v63
  %v437 = vunpack.c.l.b16 %v64
  %v438 = vunpack.c.h.b16 %v64
  %v439 = vunpack.c.l.b16 %v65
  %v440 = vunpack.c.h.b16 %v65
  %v441 = vunpack.c.l.b16 %v66
  %v442 = vunpack.c.h.b16 %v66
  %v443 = vunpack.c.l.b16 %v67
  %v444 = vunpack.c.h.b16 %v67
  %v445 = vunpack.c.l.b16 %v68
  %v446 = vunpack.c.h.b16 %v68
  %v447 = vunpack.c.l.b16 %v69
  %v448 = vunpack.c.h.b16 %v69
  %v449 = vunpack.c.l.b16 %v70
  %v450 = vunpack.c.h.b16 %v70
  %v451 = vunpack.c.l.b16 %v71
  %v452 = vunpack.c.h.b16 %v71
  %v453 = vunpack.c.l.b16 %v72
  %v454 = vunpack.c.h.b16 %v72
  %v455 = vunpack.c.l.b16 %v73
  %v456 = vunpack.c.h.b16 %v73
  %v457 = vunpack.c.l.b16 %v74
  %v458 = vunpack.c.h.b16 %v74
  %v459 = vunpack.c.l.b16 %v75
  %v460 = vunpack.c.h.b16 %v75
  %v461 = vunpack.c.l.b16 %v76
  %v462 = vunpack.c.h.b16 %v76
  %v463 = vunpack.c.l.b16 %v77
  %v464 = vunpack.c.h.b16 %v77
  %v465 = vunpack.c.l.b16 %v78
  %v466 = vunpack.c.h.b16 %v78
  %v467 = vunpack.c.l.b16 %v79
  %v468 = vunpack.c.h.b16 %v79
  %v469 = vunpack.c.l.b16 %v80
  %v470 = vunpack.c.h.b16 %v80
  %v471 = vunpack.c.l.b16 %v81
  %v472 = vunpack.c.h.b16 %v81
  %v473 = vunpack.c.l.b16 %v82
  %v474 = vunpack.c.h.b16 %v82
  %v475 = vunpack.c.l.b16 %v83
  %v476 = vunpack.c.h.b16 %v83
  %v477 = vunpack.c.l.b16 %v84
  %v478 = vunpack.c.h.b16 %v84
  %v479 = vunpack.c.l.b16 %v85
  %v480 = vunpack.c.h.b16 %v85
  %v481 = vunpack.c.l.b16 %v86
  %v482 = vunpack.c.h.b16 %v86
  %v483 = vunpack.c.l.b16 %v87
  %v484 = vunpack.c.h.b16 %v87
  %v485 = vunpack.c.l.b16 %v88
  %v486 = vunpack.c.h.b16 %v88
  %v487 = vunpack.c.l.b16 %v89
  %v488 = vunpack.c.h.b16 %v89
  %v489 = vunpack.c.l.b16 %v90
  %v490 = vunpack.c.h.b16 %v90
  %v491 = vunpack.c.l.b16 %v91
  %v492 = vunpack.c.h.b16 %v91
  %v493 = vunpack.c.l.b16 %v92
  %v494 = vunpack.c.h.b16 %v92
  %v495 = vunpack.c.l.b16 %v93
  %v496 = vunpack.c.h.b16 %v93
  %v497 = vunpack.c.l.b16 %v94
  %v498 = vunpack.c.h.b16 %v94
  %v499 = vunpack.c.l.b16 %v95
  %v500 = vunpack.c.h.b16 %v95
  %v501 = vunpack.c.l.b16 %v96
  %v502 = vunpack.c.h.b16 %v96
  %v503 = vunpack.c.l.b16 %v97
  %v504 = vunpack.c.h.b16 %v97
  %v505 = vunpack.c.l.b16 %v98
  %v506 = vunpack.c.h.b16 %v98
  %v507 = vunpack.c.l.b16 %v99
  %v508 = vunpack.c.h.b16 %v99
  %v509 = vunpack.c.l.b16 %v100
  %v510 = vunpack.c.h.b16 %v100
  %v511 = vunpack.c.l.b16 %v101
  %v512 = vunpack.c.h.b16 %v101
  %v513 = vunpack.c.l.b16 %v102
  %v514 = vunpack.c.h.b16 %v102
  %v515 = vunpack.c.l.b16 %v103
  %v516 = vunpack.c.h.b16 %v103
  %v517 = vunpack.c.l.b16 %v104
  %v518 = vunpack.c.h.b16 %v104
  %v519 = vunpack.c.l.b16 %v105
  %v520 = vunpack.c.h.b16 %v105
  %v521 = vunpack.c.l.b16 %v106
  %v522 = vunpack.c.h.b16 %v106
  %v523 = vunpack.c.l.b16 %v107
  %v524 = vunpack.c.h.b16 %v107
  %v525 = vunpack.c.l.b16 %v108
  %v526 = vunpack.c.h.b16 %v108
  %v527 = vunpack.c.l.b16 %v109
  %v528 = vunpack.c.h.b16 %v109
  %v529 = vunpack.c.l.b16 %v110
  %v530 = vunpack.c.h.b16 %v110
  %v531 = vunpack.c.l.b16 %v111
  %v532 = vunpack.c.h.b16 %v111
  %v533 = vunpack.c.l.b16 %v112
  %v534 = vunpack.c.h.b16 %v112
  %v535 = vunpack.c.l.b16 %v113
  %v536 = vunpack.c.h.b16 %v113
  %v537 = vunpack.c.l.b16 %v114
  %v538 = vunpack.c.h.b16 %v114
  %v539 = vunpack.c.l.b16 %v115
  %v540 = vunpack.c.h.b16 %v115
  %v541 = vunpack.c.l.b16 %v116
  %v542 = vunpack.c.h.b16 %v116
  %v543 = vunpack.c.l.b16 %v117
  %v544 = vunpack.c.h.b16 %v117
  %v545 = vunpack.c.l.b16 %v118
  %v546 = vunpack.c.h.b16 %v118
  %v547 = vunpack.c.l.b16 %v119
  %v548 = vunpack.c.h.b16 %v119
  %v549 = vunpack.c.l.b16 %v120
  %v550 = vunpack.c.h.b16 %v120
  %v551 = vunpack.c.l.b16 %v121
  %v552 = vunpack.c.h.b16 %v121
  %v553 = vunpack.c.l.b16 %v122
  %v554 = vunpack.c.h.b16 %v122
  %v555 = vunpack.c.l.b16 %v123
  %v556 = vunpack.c.h.b16 %v123
  %v557 = vunpack.c.l.b16 %v124
  %v558 = vunpack.c.h.b16 %v124
  %v559 = vunpack.c.l.b16 %v125
  %v560 = vunpack.c.h.b16 %v125
  %v561 = vunpack.c.l.b16 %v126
  %v562 = vunpack.c.h.b16 %v126
  %v563 = vunpack.c.l.b16 %v127
  %v564 = vunpack.c.h.b16 %v127
  %v565 = vunpack.c.l.b16 %v128
  %v566 = vunpack.c.h.b16 %v128
  %v567 = vunpack.c.l.b16 %v129
  %v568 = vunpack.c.h.b16 %v129
  %v569 = vunpack.c.l.b16 %v130
  %v570 = vunpack.c.h.b16 %v130
  %v571 = vunpack.c.l.b16 %v131
  %v572 = vunpack.c.h.b16 %v131
  %v573 = vunpack.c.l.b16 %v132
  %v574 = vunpack.c.h.b16 %v132
  %v575 = vunpack.c.l.b16 %v133
  %v576 = vunpack.c.h.b16 %v133
  %v577 = vunpack.c.l.b16 %v134
  %v578 = vunpack.c.h.b16 %v134
  %v579 = vunpack.c.l.b16 %v135
  %v580 = vunpack.c.h.b16 %v135
  %v581 = vunpack.c.l.b16 %v136
  %v582 = vunpack.c.h.b16 %v136
  %v583 = vunpack.c.l.b16 %v137
  %v584 = vunpack.c.h.b16 %v137
  %v585 = vunpack.c.l.b16 %v138
  %v586 = vunpack.c.h.b16 %v138
  %v587 = vunpack.c.l.b16 %v139
  %v588 = vunpack.c.h.b16 %v139
  %v589 = vunpack.c.l.b16 %v140
  %v590 = vunpack.c.h.b16 %v140
  %v591 = vunpack.c.l.b16 %v141
  %v592 = vunpack.c.h.b16 %v141
  %v593 = vunpack.c.l.b16 %v142
  %v594 = vunpack.c.h.b16 %v142
  %v595 = vunpack.c.l.b16 %v143
  %v596 = vunpack.c.h.b16 %v143
  %v597 = vunpack.c.l.b16 %v144
  %v598 = vunpack.c.h.b16 %v144
  %v599 = vunpack.c.l.b16 %v145
  %v600 = vunpack.c.h.b16 %v145
  %v601 = vunpack.c.l.b16 %v146
  %v602 = vunpack.c.h.b16 %v146
  %v603 = vunpack.c.l.b16 %v147
  %v604 = vunpack.c.h.b16 %v147
  %v605 = vunpack.c.l.b16 %v148
  %v606 = vunpack.c.h.b16 %v148
  %v607 = vunpack.c.l.b16 %v149
  %v608 = vunpack.c.h.b16 %v149
  %v609 = vunpack.c.l.b16 %v150
  %v610 = vunpack.c.h.b16 %v150
  %v611 = vunpack.c.l.b16 %v151
  %v612 = vunpack.c.h.b16 %v151
  %v613 = vunpack.c.l.b16 %v152
  %v614 = vunpack.c.h.b16 %v152
  %v615 = vunpack.c.l.b16 %v153
  %v616 = vunpack.c.h.b16 %v153
  %v617 = vunpack.c.l.b16 %v154
  %v618 = vunpack.c.h.b16 %v154
  %v619 = vunpack.c.l.b16 %v155
  %v620 = vunpack.c.h.b16 %v155
  %v621 = vunpack.c.l.b16 %v156
  %v622 = vunpack.c.h.b16 %v156
  %v623 = vunpack.c.l.b16 %v157
  %v624 = vunpack.c.h.b16 %v157
  %v625 = vunpack.c.l.b16 %v158
  %v626 = vunpack.c.h.b16 %v158
  %v627 = vunpack.c.l.b16 %v159
  %v628 = vunpack.c.h.b16 %v159
  %v629 = vunpack.c.l.b16 %v160
  %v630 = vunpack.c.h.b16 %v160
  %v631 = vunpack.c.l.b16 %v161
  %v632 = vunpack.c.h.b16 %v161
  %v633 = vunpack.c.l.b16 %v162
  %v634 = vunpack.c.h.b16 %v162
  %v635 = vunpack.c.l.b16 %v163
  %v636 = vunpack.c.h.b16 %v163
  %v637 = vunpack.c.l.b16 %v164
  %v638 = vunpack.c.h.b16 %v164
  %v639 = vunpack.c.l.b16 %v165
  %v640 = vunpack.c.h.b16 %v165
  %v641 = vunpack.c.l.b16 %v166
  %v642 = vunpack.c.h.b16 %v166
  %v643 = vunpack.c.l.b16 %v167
  %v644 = vunpack.c.h.b16 %v167
  %v645 = vunpack.c.l.b16 %v168
  %v646 = vunpack.c.h.b16 %v168
  %v647 = vunpack.c.l.b16 %v169
  %v648 = vunpack.c.h.b16 %v169
  %v649 = vunpack.c.l.b16 %v170
  %v650 = vunpack.c.h.b16 %v170
  %v651 = vunpack.c.l.b16 %v171
  %v652 = vunpack.c.h.b16 %v171
  %v653 = vunpack.c.l.b16 %v172
  %v654 = vunpack.c.h.b16 %v172
  %v655 = vunpack.c.l.b16 %v173
  %v656 = vunpack.c.h.b16 %v173
  %v657 = vunpack.c.l.b16 %v174
  %v658 = vunpack.c.h.b16 %v174
  %v659 = vunpack.c.l.b16 %v175
  %v660 = vunpack.c.h.b16 %v175
  %v661 = vunpack.c.l.b16 %v176
  %v662 = vunpack.c.h.b16 %v176
  %v663 = vunpack.c.l.b16 %v177
  %v664 = vunpack.c.h.b16 %v177
  %v665 = vunpack.c.l.b16 %v178
  %v666 = vunpack.c.h.b16 %v178
  %v667 = vunpack.c.l.b16 %v179
  %v668 = vunpack.c.h.b16 %v179
  %v669 = vunpack.c.l.b16 %v180
  %v670 = vunpack.c.h.b16 %v180
  %v671 = vunpack.c.l.b16 %v181
  %v672 = vunpack.c.h.b16 %v181
  %v673 = vunpack.c.l.b16 %v182
  %v674 = vunpack.c.h.b16 %v182
  %v675 = vunpack.c.l.b16 %v183
  %v676 = vunpack.c.h.b16 %v183
  %v677 = vunpack.c.l.b16 %v184
  %v678 = vunpack.c.h.b16 %v184
  %v679 = vunpack.c.l.b16 %v185
  %v680 = vunpack.c.h.b16 %v185
  %v681 = vunpack.c.l.b16 %v186
  %v682 = vunpack.c.h.b16 %v186
  %v683 = vunpack.c.l.b16 %v187
  %v684 = vunpack.c.h.b16 %v187
  %v685 = vunpack.c.l.b16 %v188
  %v686 = vunpack.c.h.b16 %v188
  %v687 = vunpack.c.l.b16 %v189
  %v688 = vunpack.c.h.b16 %v189
  %v689 = vunpack.c.l.b16 %v190
  %v690 = vunpack.c.h.b16 %v190
  %v691 = vunpack.c.l.b16 %v191
  %v692 = vunpack.c.h.b16 %v191
  %v693 = vunpack.c.l.b16 %v192
  %v694 = vunpack.c.h.b16 %v192
  %v695 = vpack.c.b16 %v379, %v375
  %v696 = vpack.c.b16 %v380, %v376
  %v697 = vpack.c.b16 %v381, %v377
  %v698 = vpack.c.b16 %v382, %v378
  %v699 = vpack.c.b16 %v387, %v383
  %v700 = vpack.c.b16 %v388, %v384
  %v701 = vpack.c.b16 %v389, %v385
  %v702 = vpack.c.b16 %v390, %v386
  %v703 = vpack.c.b16 %v395, %v391
  %v704 = vpack.c.b16 %v396, %v392
  %v705 = vpack.c.b16 %v397, %v393
  %v706 = vpack.c.b16 %v398, %v394
  %v707 = vpack.c.b16 %v403, %v399
  %v708 = vpack.c.b16 %v404, %v400
  %v709 = vpack.c.b16 %v405, %v401
  %v710 = vpack.c.b16 %v406, %v402
  %v711 = vpack.c.b16 %v411, %v407
  %v712 = vpack.c.b16 %v412, %v408
  %v713 = vpack.c.b16 %v413, %v409
  %v714 = vpack.c.b16 %v414, %v410
  %v715 = vpack.c.b16 %v419, %v415
  %v716 = vpack.c.b16 %v420, %v416
  %v717 = vpack.c.b16 %v421, %v417
  %v718 = vpack.c.b16 %v422, %v418
  %v719 = vpack.c.b16 %v427, %v423
  %v720 = vpack.c.b16 %v428, %v424
  %v721 = vpack.c.b16 %v429, %v425
  %v722 = vpack.c.b16 %v430, %v426
  %v723 = vpack.c.b16 %v435, %v431
  %v724 = vpack.c.b16 %v436, %v432
  %v725 = vpack.c.b16 %v437, %v433
  %v726 = vpack.c.b16 %v438, %v434
  %v727 = vpack.c.b16 %v443, %v439
  %v728 = vpack.c.b16 %v444, %v440
  %v729 = vpack.c.b16 %v445, %v441
  %v730 = vpack.c.b16 %v446, %v442
  %v731 = vpack.c.b16 %v451, %v447
  %v732 = vpack.c.b16 %v452, %v448
  %v733 = vpack.c.b16 %v453, %v449
  %v734 = vpack.c.b16 %v454, %v450
  %v735 = vpack.c.b16 %v459, %v455
  %v736 = vpack.c.b16 %v460, %v456
  %v737 = vpack.c.b16 %v461, %v457
  %v738 = vpack.c.b16 %v462, %v458
  %v739 = vpack.c.b16 %v467, %v463
  %v740 = vpack.c.b16 %v468, %v464
  %v741 = vpack.c.b16 %v469, %v465
  %v742 = vpack.c.b16 %v470, %v466
  %v743 = vpack.c.b16 %v475, %v471
  %v744 = vpack.c.b16 %v476, %v472
  %v745 = vpack.c.b16 %v477, %v473
  %v746 = vpack.c.b16 %v478, %v474
  %v747 = vpack.c.b16 %v483, %v479
  %v748 = vpack.c.b16 %v484, %v480
  %v749 = vpack.c.b16 %v485, %v481
  %v750 = vpack.c.b16 %v486, %v482
  %v751 = vpack.c.b16 %v491, %v487
  %v752 = vpack.c.b16 %v492, %v488
  %v753 = vpack.c.b16 %v493, %v489
  %v754 = vpack.c.b16 %v494, %v490
  %v755 = vpack.c.b16 %v499, %v495
  %v756 = vpack.c.b16 %v500, %v496
  %v757 = vpack.c.b16 %v501, %v497
  %v758 = vpack.c.b16 %v502, %v498
  %v759 = vpack.c.b16 %v507, %v503
  %v760 = vpack.c.b16 %v508, %v504
  %v761 = vpack.c.b16 %v509, %v505
  %v762 = vpack.c.b16 %v510, %v506
  %v763 = vpack.c.b16 %v515, %v511
  %v764 = vpack.c.b16 %v516, %v512
  %v765 = vpack.c.b16 %v517, %v513
  %v766 = vpack.c.b16 %v518, %v514
  %v767 = vpack.c.b16 %v523, %v519
  %v768 = vpack.c.b16 %v524, %v520
  %v769 = vpack.c.b16 %v525, %v521
  %v770 = vpack.c.b16 %v526, %v522
  %v771 = vpack.c.b16 %v531, %v527
  %v772 = vpack.c.b16 %v532, %v528
  %v773 = vpack.c.b16 %v533, %v529
  %v774 = vpack.c.b16 %v534, %v530
  %v775 = vpack.c.b16 %v539, %v535
  %v776 = vpack.c.b16 %v540, %v536
  %v777 = vpack.c.b16 %v541, %v537
  %v778 = vpack.c.b16 %v542, %v538
  %v779 = vpack.c.b16 %v547, %v543
  %v780 = vpack.c.b16 %v548, %v544
  %v781 = vpack.c.b16 %v549, %v545
  %v782 = vpack.c.b16 %v550, %v546
  %v783 = vpack.c.b16 %v555, %v551
  %v784 = vpack.c.b16 %v556, %v552
  %v785 = vpack.c.b16 %v557, %v553
  %v786 = vpack.c.b16 %v558, %v554
  %v787 = vpack.c.b16 %v563, %v559
  %v788 = vpack.c.b16 %v564, %v560
  %v789 = vpack.c.b16 %v565, %v561
  %v790 = vpack.c.b16 %v566, %v562
  %v791 = vpack.c.b16 %v571, %v567
  %v792 = vpack.c.b16 %v572, %v568
  %v793 = vpack.c.b16 %v573, %v569
  %v794 = vpack.c.b16 %v574, %v570
  %v795 = vpack.c.b16 %v579, %v575
  %v796 = vpack.c.b16 %v580, %v576
  %v797 = vpack.c.b16 %v581, %v577
  %v798 = vpack.c.b16 %v582, %v578
  %v799 = vpack.c.b16 %v587, %v583
  %v800 = vpack.c.b16 %v588, %v584
  %v801 = vpack.c.b16 %v589, %v585
  %v802 = vpack.c.b16 %v590, %v586
  %v803 = vpack.c.b16 %v595, %v591
  %v804 = vpack.c.b16 %v596, %v592
  %v805 = vpack.c.b16 %v597, %v593
  %v806 = vpack.c.b16 %v598, %v594
  %v807 = vpack.c.b16 %v603, %v599
  %v808 = vpack.c.b16 %v604, %v600
  %v809 = vpack.c.b16 %v605, %v601
  %v810 = vpack.c.b16 %v606, %v602
  %v811 = vpack.c.b16 %v611, %v607
  %v812 = vpack.c.b16 %v612, %v608
  %v813 = vpack.c.b16 %v613, %v609
  %v814 = vpack.c.b16 %v614, %v610
  %v815 = vpack.c.b16 %v619, %v615
  %v816 = vpack.c.b16 %v620, %v616
  %v817 = vpack.c.b16 %v621, %v617
  %v818 = vpack.c.b16 %v622, %v618
  %v819 = vpack.c.b16 %v627, %v623
  %v820 = vpack.c.b16 %v628, %v624
  %v821 = vpack.c.b16 %v629, %v625
  %v822 = vpack.c.b16 %v630, %v626
  %v823 = vpack.c.b16 %v635, %v631
  %v824 = vpack.c.b16 %v636, %v632
  %v825 = vpack.c.b16 %v637, %v633
  %v826 = vpack.c.b16 %v638, %v634
  %v827 = vpack.c.b16 %v643, %v639
  %v828 = vpack.c.b16 %v644, %v640
  %v829 = vpack.c.b16 %v645, %v641
  %v830 = vpack.c.b16 %v646, %v642
  %v831 = vpack.c.b16 %v651, %v647
  %v832 = vpack.c.b16 %v652, %v648
  %v833 = vpack.c.b16 %v653, %v649
  %v834 = vpack.c.b16 %v654, %v650
  %v835 = vpack.c.b16 %v659, %v655
  %v836 = vpack.c.b16 %v660, %v656
  %v837 = vpack.c.b16 %v661, %v657
  %v838 = vpack.c.b16 %v662, %v658
  %v839 = vpack.c.b16 %v667, %v663
  %v840 = vpack.c.b16 %v668, %v664
  %v841 = vpack.c.b16 %v669, %v665
  %v842 = vpack.c.b16 %v670, %v666
  %v843 = vpack.c.b16 %v675, %v671
  %v844 = vpack.c.b16 %v676, %v672
  %v845 = vpack.c.b16 %v677, %v673
  %v846 = vpack.c.b16 %v678, %v674
  %v847 = vpack.c.b16 %v683, %v679
  %v848 = vpack.c.b16 %v684, %v680
  %v849 = vpack.c.b16 %v685, %v681
  %v850 = vpack.c.b16 %v686, %v682
  %v851 = vpack.c.b16 %v691, %v687
  %v852 = vpack.c.b16 %v692, %v688
  %v853 = vpack.c.b16 %v693, %v689
  %v854 = vpack.c.b16 %v694, %v690
  %1015 = vmatpush.bf16.msra.mxu0 %v723
  %1016 = vmatpush.bf16.msra.mxu0 %v719
  %1017 = vmatpush.bf16.msra.mxu0 %v715
  %1018 = vmatpush.bf16.msra.mxu0 %v711
  %1019 = vmatpush.bf16.msra.mxu0 %v707
  %1020 = vmatpush.bf16.msra.mxu0 %v703
  %1021 = vmatpush.bf16.msra.mxu0 %v699
  %1022 = vmatpush.bf16.msra.mxu0 %v695
  %1023 = vmatmul.bf16.gmra.mxu0 %v205
  %v1024 = vpop.f32.mrf.mxu0
  %v1025 = vadd.f32 %v195, %v1024
  %v1026 = vpop.f32.mrf.mxu0
  %1027 = vdwg.mxu0
  %1028 = vmatpush.bf16.msra.mxu0 %v755
  %1029 = vmatpush.bf16.msra.mxu0 %v751
  %1030 = vmatpush.bf16.msra.mxu0 %v747
  %1031 = vmatpush.bf16.msra.mxu0 %v743
  %1032 = vmatpush.bf16.msra.mxu0 %v739
  %1033 = vmatpush.bf16.msra.mxu0 %v735
  %1034 = vmatpush.bf16.msra.mxu0 %v731
  %1035 = vmatpush.bf16.msra.mxu0 %v727
  %1036 = vmatmul.bf16.gmra.mxu0 %v206
  %v1037 = vpop.f32.mrf.mxu0
  %v1038 = vadd.f32 %v1025, %v1037
  %v1039 = vpop.f32.mrf.mxu0
  %1040 = vdwg.mxu0
  %1041 = vmatpush.bf16.msra.mxu0 %v787
  %1042 = vmatpush.bf16.msra.mxu0 %v783
  %1043 = vmatpush.bf16.msra.mxu0 %v779
  %1044 = vmatpush.bf16.msra.mxu0 %v775
  %1045 = vmatpush.bf16.msra.mxu0 %v771
  %1046 = vmatpush.bf16.msra.mxu0 %v767
  %1047 = vmatpush.bf16.msra.mxu0 %v763
  %1048 = vmatpush.bf16.msra.mxu0 %v759
  %1049 = vmatmul.bf16.gmra.mxu0 %v207
  %v1050 = vpop.f32.mrf.mxu0
  %v1051 = vadd.f32 %v1038, %v1050
  %v1052 = vpop.f32.mrf.mxu0
  %1053 = vdwg.mxu0
  %1054 = vmatpush.bf16.msra.mxu0 %v819
  %1055 = vmatpush.bf16.msra.mxu0 %v815
  %1056 = vmatpush.bf16.msra.mxu0 %v811
  %1057 = vmatpush.bf16.msra.mxu0 %v807
  %1058 = vmatpush.bf16.msra.mxu0 %v803
  %1059 = vmatpush.bf16.msra.mxu0 %v799
  %1060 = vmatpush.bf16.msra.mxu0 %v795
  %1061 = vmatpush.bf16.msra.mxu0 %v791
  %1062 = vmatmul.bf16.gmra.mxu0 %v208
  %v1063 = vpop.f32.mrf.mxu0
  %v1064 = vadd.f32 %v1051, %v1063
  %v1065 = vpop.f32.mrf.mxu0
  %1066 = vdwg.mxu0
  %1067 = vmatpush.bf16.msra.mxu0 %v851
  %1068 = vmatpush.bf16.msra.mxu0 %v847
  %1069 = vmatpush.bf16.msra.mxu0 %v843
  %1070 = vmatpush.bf16.msra.mxu0 %v839
  %1071 = vmatpush.bf16.msra.mxu0 %v835
  %1072 = vmatpush.bf16.msra.mxu0 %v831
  %1073 = vmatpush.bf16.msra.mxu0 %v827
  %1074 = vmatpush.bf16.msra.mxu0 %v823
  %1075 = vmatmul.bf16.gmra.mxu0 %v209
  %v1076 = vpop.f32.mrf.mxu0
  %v1077 = vadd.f32 %v1064, %v1076
  %v1078 = vpop.f32.mrf.mxu0
  %1079 = vdwg.mxu0
  %1080 = vmatpush.bf16.msra.mxu0 %v724
  %1081 = vmatpush.bf16.msra.mxu0 %v720
  %1082 = vmatpush.bf16.msra.mxu0 %v716
  %1083 = vmatpush.bf16.msra.mxu0 %v712
  %1084 = vmatpush.bf16.msra.mxu0 %v708
  %1085 = vmatpush.bf16.msra.mxu0 %v704
  %1086 = vmatpush.bf16.msra.mxu0 %v700
  %1087 = vmatpush.bf16.msra.mxu0 %v696
  %1088 = vmatmul.bf16.gmra.mxu0 %v205
  %v1089 = vpop.f32.mrf.mxu0
  %v1090 = vadd.f32 %v196, %v1089
  %v1091 = vpop.f32.mrf.mxu0
  %1092 = vdwg.mxu0
  %1093 = vmatpush.bf16.msra.mxu0 %v756
  %1094 = vmatpush.bf16.msra.mxu0 %v752
  %1095 = vmatpush.bf16.msra.mxu0 %v748
  %1096 = vmatpush.bf16.msra.mxu0 %v744
  %1097 = vmatpush.bf16.msra.mxu0 %v740
  %1098 = vmatpush.bf16.msra.mxu0 %v736
  %1099 = vmatpush.bf16.msra.mxu0 %v732
  %1100 = vmatpush.bf16.msra.mxu0 %v728
  %1101 = vmatmul.bf16.gmra.mxu0 %v206
  %v1102 = vpop.f32.mrf.mxu0
  %v1103 = vadd.f32 %v1090, %v1102
  %v1104 = vpop.f32.mrf.mxu0
  %1105 = vdwg.mxu0
  %1106 = vmatpush.bf16.msra.mxu0 %v788
  %1107 = vmatpush.bf16.msra.mxu0 %v784
  %1108 = vmatpush.bf16.msra.mxu0 %v780
  %1109 = vmatpush.bf16.msra.mxu0 %v776
  %1110 = vmatpush.bf16.msra.mxu0 %v772
  %1111 = vmatpush.bf16.msra.mxu0 %v768
  %1112 = vmatpush.bf16.msra.mxu0 %v764
  %1113 = vmatpush.bf16.msra.mxu0 %v760
  %1114 = vmatmul.bf16.gmra.mxu0 %v207
  %v1115 = vpop.f32.mrf.mxu0
  %v1116 = vadd.f32 %v1103, %v1115
  %v1117 = vpop.f32.mrf.mxu0
  %1118 = vdwg.mxu0
  %1119 = vmatpush.bf16.msra.mxu0 %v820
  %1120 = vmatpush.bf16.msra.mxu0 %v816
  %1121 = vmatpush.bf16.msra.mxu0 %v812
  %1122 = vmatpush.bf16.msra.mxu0 %v808
  %1123 = vmatpush.bf16.msra.mxu0 %v804
  %1124 = vmatpush.bf16.msra.mxu0 %v800
  %1125 = vmatpush.bf16.msra.mxu0 %v796
  %1126 = vmatpush.bf16.msra.mxu0 %v792
  %1127 = vmatmul.bf16.gmra.mxu0 %v208
  %v1128 = vpop.f32.mrf.mxu0
  %v1129 = vadd.f32 %v1116, %v1128
  %v1130 = vpop.f32.mrf.mxu0
  %1131 = vdwg.mxu0
  %1132 = vmatpush.bf16.msra.mxu0 %v852
  %1133 = vmatpush.bf16.msra.mxu0 %v848
  %1134 = vmatpush.bf16.msra.mxu0 %v844
  %1135 = vmatpush.bf16.msra.mxu0 %v840
  %1136 = vmatpush.bf16.msra.mxu0 %v836
  %1137 = vmatpush.bf16.msra.mxu0 %v832
  %1138 = vmatpush.bf16.msra.mxu0 %v828
  %1139 = vmatpush.bf16.msra.mxu0 %v824
  %1140 = vmatmul.bf16.gmra.mxu0 %v209
  %v1141 = vpop.f32.mrf.mxu0
  %v1142 = vadd.f32 %v1129, %v1141
  %v1143 = vpop.f32.mrf.mxu0
  %1144 = vdwg.mxu0
  %1145 = vmatpush.bf16.msra.mxu0 %v725
  %1146 = vmatpush.bf16.msra.mxu0 %v721
  %1147 = vmatpush.bf16.msra.mxu0 %v717
  %1148 = vmatpush.bf16.msra.mxu0 %v713
  %1149 = vmatpush.bf16.msra.mxu0 %v709
  %1150 = vmatpush.bf16.msra.mxu0 %v705
  %1151 = vmatpush.bf16.msra.mxu0 %v701
  %1152 = vmatpush.bf16.msra.mxu0 %v697
  %1153 = vmatmul.bf16.gmra.mxu0 %v205
  %v1154 = vpop.f32.mrf.mxu0
  %v1155 = vadd.f32 %v197, %v1154
  %v1156 = vpop.f32.mrf.mxu0
  %1157 = vdwg.mxu0
  %1158 = vmatpush.bf16.msra.mxu0 %v757
  %1159 = vmatpush.bf16.msra.mxu0 %v753
  %1160 = vmatpush.bf16.msra.mxu0 %v749
  %1161 = vmatpush.bf16.msra.mxu0 %v745
  %1162 = vmatpush.bf16.msra.mxu0 %v741
  %1163 = vmatpush.bf16.msra.mxu0 %v737
  %1164 = vmatpush.bf16.msra.mxu0 %v733
  %1165 = vmatpush.bf16.msra.mxu0 %v729
  %1166 = vmatmul.bf16.gmra.mxu0 %v206
  %v1167 = vpop.f32.mrf.mxu0
  %v1168 = vadd.f32 %v1155, %v1167
  %v1169 = vpop.f32.mrf.mxu0
  %1170 = vdwg.mxu0
  %1171 = vmatpush.bf16.msra.mxu0 %v789
  %1172 = vmatpush.bf16.msra.mxu0 %v785
  %1173 = vmatpush.bf16.msra.mxu0 %v781
  %1174 = vmatpush.bf16.msra.mxu0 %v777
  %1175 = vmatpush.bf16.msra.mxu0 %v773
  %1176 = vmatpush.bf16.msra.mxu0 %v769
  %1177 = vmatpush.bf16.msra.mxu0 %v765
  %1178 = vmatpush.bf16.msra.mxu0 %v761
  %1179 = vmatmul.bf16.gmra.mxu0 %v207
  %v1180 = vpop.f32.mrf.mxu0
  %v1181 = vadd.f32 %v1168, %v1180
  %v1182 = vpop.f32.mrf.mxu0
  %1183 = vdwg.mxu0
  %1184 = vmatpush.bf16.msra.mxu0 %v821
  %1185 = vmatpush.bf16.msra.mxu0 %v817
  %1186 = vmatpush.bf16.msra.mxu0 %v813
  %1187 = vmatpush.bf16.msra.mxu0 %v809
  %1188 = vmatpush.bf16.msra.mxu0 %v805
  %1189 = vmatpush.bf16.msra.mxu0 %v801
  %1190 = vmatpush.bf16.msra.mxu0 %v797
  %1191 = vmatpush.bf16.msra.mxu0 %v793
  %1192 = vmatmul.bf16.gmra.mxu0 %v208
  %v1193 = vpop.f32.mrf.mxu0
  %v1194 = vadd.f32 %v1181, %v1193
  %v1195 = vpop.f32.mrf.mxu0
  %1196 = vdwg.mxu0
  %1197 = vmatpush.bf16.msra.mxu0 %v853
  %1198 = vmatpush.bf16.msra.mxu0 %v849
  %1199 = vmatpush.bf16.msra.mxu0 %v845
  %1200 = vmatpush.bf16.msra.mxu0 %v841
  %1201 = vmatpush.bf16.msra.mxu0 %v837
  %1202 = vmatpush.bf16.msra.mxu0 %v833
  %1203 = vmatpush.bf16.msra.mxu0 %v829
  %1204 = vmatpush.bf16.msra.mxu0 %v825
  %1205 = vmatmul.bf16.gmra.mxu0 %v209
  %v1206 = vpop.f32.mrf.mxu0
  %v1207 = vadd.f32 %v1194, %v1206
  %v1208 = vpop.f32.mrf.mxu0
  %1209 = vdwg.mxu0
  %1210 = vmatpush.bf16.msra.mxu0 %v726
  %1211 = vmatpush.bf16.msra.mxu0 %v722
  %1212 = vmatpush.bf16.msra.mxu0 %v718
  %1213 = vmatpush.bf16.msra.mxu0 %v714
  %1214 = vmatpush.bf16.msra.mxu0 %v710
  %1215 = vmatpush.bf16.msra.mxu0 %v706
  %1216 = vmatpush.bf16.msra.mxu0 %v702
  %1217 = vmatpush.bf16.msra.mxu0 %v698
  %1218 = vmatmul.bf16.gmra.mxu0 %v205
  %v1219 = vpop.f32.mrf.mxu0
  %v1220 = vadd.f32 %v198, %v1219
  %v1221 = vpop.f32.mrf.mxu0
  %1222 = vdwg.mxu0
  %1223 = vmatpush.bf16.msra.mxu0 %v758
  %1224 = vmatpush.bf16.msra.mxu0 %v754
  %1225 = vmatpush.bf16.msra.mxu0 %v750
  %1226 = vmatpush.bf16.msra.mxu0 %v746
  %1227 = vmatpush.bf16.msra.mxu0 %v742
  %1228 = vmatpush.bf16.msra.mxu0 %v738
  %1229 = vmatpush.bf16.msra.mxu0 %v734
  %1230 = vmatpush.bf16.msra.mxu0 %v730
  %1231 = vmatmul.bf16.gmra.mxu0 %v206
  %v1232 = vpop.f32.mrf.mxu0
  %v1233 = vadd.f32 %v1220, %v1232
  %v1234 = vpop.f32.mrf.mxu0
  %1235 = vdwg.mxu0
  %1236 = vmatpush.bf16.msra.mxu0 %v790
  %1237 = vmatpush.bf16.msra.mxu0 %v786
  %1238 = vmatpush.bf16.msra.mxu0 %v782
  %1239 = vmatpush.bf16.msra.mxu0 %v778
  %1240 = vmatpush.bf16.msra.mxu0 %v774
  %1241 = vmatpush.bf16.msra.mxu0 %v770
  %1242 = vmatpush.bf16.msra.mxu0 %v766
  %1243 = vmatpush.bf16.msra.mxu0 %v762
  %1244 = vmatmul.bf16.gmra.mxu0 %v207
  %v1245 = vpop.f32.mrf.mxu0
  %v1246 = vadd.f32 %v1233, %v1245
  %v1247 = vpop.f32.mrf.mxu0
  %1248 = vdwg.mxu0
  %1249 = vmatpush.bf16.msra.mxu0 %v822
  %1250 = vmatpush.bf16.msra.mxu0 %v818
  %1251 = vmatpush.bf16.msra.mxu0 %v814
  %1252 = vmatpush.bf16.msra.mxu0 %v810
  %1253 = vmatpush.bf16.msra.mxu0 %v806
  %1254 = vmatpush.bf16.msra.mxu0 %v802
  %1255 = vmatpush.bf16.msra.mxu0 %v798
  %1256 = vmatpush.bf16.msra.mxu0 %v794
  %1257 = vmatmul.bf16.gmra.mxu0 %v208
  %v1258 = vpop.f32.mrf.mxu0
  %v1259 = vadd.f32 %v1246, %v1258
  %v1260 = vpop.f32.mrf.mxu0
  %1261 = vdwg.mxu0
  %1262 = vmatpush.bf16.msra.mxu0 %v854
  %1263 = vmatpush.bf16.msra.mxu0 %v850
  %1264 = vmatpush.bf16.msra.mxu0 %v846
  %1265 = vmatpush.bf16.msra.mxu0 %v842
  %1266 = vmatpush.bf16.msra.mxu0 %v838
  %1267 = vmatpush.bf16.msra.mxu0 %v834
  %1268 = vmatpush.bf16.msra.mxu0 %v830
  %1269 = vmatpush.bf16.msra.mxu0 %v826
  %1270 = vmatmul.bf16.gmra.mxu0 %v209
  %v1271 = vpop.f32.mrf.mxu0
  %v1272 = vadd.f32 %v1259, %v1271
  %v1273 = vpop.f32.mrf.mxu0
  %1274 = vdwg.mxu0
  %v1275 = vmax.f32 %v1077, 0.0
  %v1276 = vmax.f32 %v1142, 0.0
  %v1277 = vmax.f32 %v1207, 0.0
  %v1278 = vmax.f32 %v1272, 0.0
  %v1279 = vpack.c.bf16 %v1275, %v1275
  %v1280 = vpack.c.bf16 %v1276, %v1276
  %v1281 = vpack.c.bf16 %v1277, %v1277
  %v1282 = vpack.c.bf16 %v1278, %v1278
  %v1283 = vld [vmem:[%s3] sm:$0xff]
  %v1284 = vld [vmem:[%s3 + $0x8] sm:$0xff]
  %v1285 = vld [vmem:[%s3 + $0x10] sm:$0xff]
  %v1286 = vld [vmem:[%s3 + $0x18] sm:$0xff]
  %v1287 = vld [vmem:[%s3 + $0x20] sm:$0xff]
  %v1288 = vld [vmem:[%s3 + $0x28] sm:$0xff]
  %v1289 = vld [vmem:[%s3 + $0x30] sm:$0xff]
  %v1290 = vld [vmem:[%s3 + $0x38] sm:$0xff]
  %v1291 = vld [vmem:[%s3 + $0x40] sm:$0xff]
  %v1292 = vld [vmem:[%s3 + $0x48] sm:$0xff]
  %v1293 = vld [vmem:[%s3 + $0x50] sm:$0xff]
  %v1294 = vld [vmem:[%s3 + $0x58] sm:$0xff]
  %v1295 = vld [vmem:[%s3 + $0x60] sm:$0xff]
  %v1296 = vld [vmem:[%s3 + $0x68] sm:$0xff]
  %v1297 = vld [vmem:[%s3 + $0x70] sm:$0xff]
  %v1298 = vld [vmem:[%s3 + $0x78] sm:$0xff]
  %v1299 = vld [vmem:[%s3 + $0x80] sm:$0xff]
  %v1300 = vld [vmem:[%s3 + $0x88] sm:$0xff]
  %v1301 = vld [vmem:[%s3 + $0x90] sm:$0xff]
  %v1302 = vld [vmem:[%s3 + $0x98] sm:$0xff]
  %v1303 = vld [vmem:[%s3 + $0xa0] sm:$0xff]
  %v1304 = vld [vmem:[%s3 + $0xa8] sm:$0xff]
  %v1305 = vld [vmem:[%s3 + $0xb0] sm:$0xff]
  %v1306 = vld [vmem:[%s3 + $0xb8] sm:$0xff]
  %v1307 = vld [vmem:[%s3 + $0xc0] sm:$0xff]
  %v1308 = vld [vmem:[%s3 + $0xc8] sm:$0xff]
  %v1309 = vld [vmem:[%s3 + $0xd0] sm:$0xff]
  %v1310 = vld [vmem:[%s3 + $0xd8] sm:$0xff]
  %v1311 = vld [vmem:[%s3 + $0xe0] sm:$0xff]
  %v1312 = vld [vmem:[%s3 + $0xe8] sm:$0xff]
  %v1313 = vld [vmem:[%s3 + $0xf0] sm:$0xff]
  %v1314 = vld [vmem:[%s3 + $0xf8] sm:$0xff]
  %v1315 = vld [vmem:[%s3 + $0x100] sm:$0xff]
  %v1316 = vld [vmem:[%s3 + $0x108] sm:$0xff]
  %v1317 = vld [vmem:[%s3 + $0x110] sm:$0xff]
  %v1318 = vld [vmem:[%s3 + $0x118] sm:$0xff]
  %v1319 = vld [vmem:[%s3 + $0x120] sm:$0xff]
  %v1320 = vld [vmem:[%s3 + $0x128] sm:$0xff]
  %v1321 = vld [vmem:[%s3 + $0x130] sm:$0xff]
  %v1322 = vld [vmem:[%s3 + $0x138] sm:$0xff]
  %v1323 = vld [vmem:[%s3 + $0x140] sm:$0xff]
  %v1324 = vld [vmem:[%s3 + $0x148] sm:$0xff]
  %v1325 = vld [vmem:[%s3 + $0x150] sm:$0xff]
  %v1326 = vld [vmem:[%s3 + $0x158] sm:$0xff]
  %v1327 = vld [vmem:[%s3 + $0x160] sm:$0xff]
  %v1328 = vld [vmem:[%s3 + $0x168] sm:$0xff]
  %v1329 = vld [vmem:[%s3 + $0x170] sm:$0xff]
  %v1330 = vld [vmem:[%s3 + $0x178] sm:$0xff]
  %v1331 = vld [vmem:[%s3 + $0x180] sm:$0xff]
  %v1332 = vld [vmem:[%s3 + $0x188] sm:$0xff]
  %v1333 = vld [vmem:[%s3 + $0x190] sm:$0xff]
  %v1334 = vld [vmem:[%s3 + $0x198] sm:$0xff]
  %v1335 = vld [vmem:[%s3 + $0x1a0] sm:$0xff]
  %v1336 = vld [vmem:[%s3 + $0x1a8] sm:$0xff]
  %v1337 = vld [vmem:[%s3 + $0x1b0] sm:$0xff]
  %v1338 = vld [vmem:[%s3 + $0x1b8] sm:$0xff]
  %v1339 = vld [vmem:[%s3 + $0x1c0] sm:$0xff]
  %v1340 = vld [vmem:[%s3 + $0x1c8] sm:$0xff]
  %v1341 = vld [vmem:[%s3 + $0x1d0] sm:$0xff]
  %v1342 = vld [vmem:[%s3 + $0x1d8] sm:$0xff]
  %v1343 = vld [vmem:[%s3 + $0x1e0] sm:$0xff]
  %v1344 = vld [vmem:[%s3 + $0x1e8] sm:$0xff]
  %v1345 = vld [vmem:[%s3 + $0x1f0] sm:$0xff]
  %v1346 = vld [vmem:[%s3 + $0x1f8] sm:$0xff]
  %v1347 = vld [vmem:[%s3 + $0x200] sm:$0xff]
  %v1348 = vld [vmem:[%s3 + $0x208] sm:$0xff]
  %v1349 = vld [vmem:[%s3 + $0x210] sm:$0xff]
  %v1350 = vld [vmem:[%s3 + $0x218] sm:$0xff]
  %v1351 = vld [vmem:[%s3 + $0x220] sm:$0xff]
  %v1352 = vld [vmem:[%s3 + $0x228] sm:$0xff]
  %v1353 = vld [vmem:[%s3 + $0x230] sm:$0xff]
  %v1354 = vld [vmem:[%s3 + $0x238] sm:$0xff]
  %v1355 = vld [vmem:[%s3 + $0x240] sm:$0xff]
  %v1356 = vld [vmem:[%s3 + $0x248] sm:$0xff]
  %v1357 = vld [vmem:[%s3 + $0x250] sm:$0xff]
  %v1358 = vld [vmem:[%s3 + $0x258] sm:$0xff]
  %v1359 = vld [vmem:[%s3 + $0x260] sm:$0xff]
  %v1360 = vld [vmem:[%s3 + $0x268] sm:$0xff]
  %v1361 = vld [vmem:[%s3 + $0x270] sm:$0xff]
  %v1362 = vld [vmem:[%s3 + $0x278] sm:$0xff]
  %v1363 = vld [vmem:[%s3 + $0x280] sm:$0xff]
  %v1364 = vld [vmem:[%s3 + $0x288] sm:$0xff]
  %v1365 = vld [vmem:[%s3 + $0x290] sm:$0xff]
  %v1366 = vld [vmem:[%s3 + $0x298] sm:$0xff]
  %v1367 = vld [vmem:[%s3 + $0x2a0] sm:$0xff]
  %v1368 = vld [vmem:[%s3 + $0x2a8] sm:$0xff]
  %v1369 = vld [vmem:[%s3 + $0x2b0] sm:$0xff]
  %v1370 = vld [vmem:[%s3 + $0x2b8] sm:$0xff]
  %v1371 = vld [vmem:[%s3 + $0x2c0] sm:$0xff]
  %v1372 = vld [vmem:[%s3 + $0x2c8] sm:$0xff]
  %v1373 = vld [vmem:[%s3 + $0x2d0] sm:$0xff]
  %v1374 = vld [vmem:[%s3 + $0x2d8] sm:$0xff]
  %v1375 = vld [vmem:[%s3 + $0x2e0] sm:$0xff]
  %v1376 = vld [vmem:[%s3 + $0x2e8] sm:$0xff]
  %v1377 = vld [vmem:[%s3 + $0x2f0] sm:$0xff]
  %v1378 = vld [vmem:[%s3 + $0x2f8] sm:$0xff]
  %v1379 = vld [vmem:[%s3 + $0x300] sm:$0xff]
  %v1380 = vld [vmem:[%s3 + $0x308] sm:$0xff]
  %v1381 = vld [vmem:[%s3 + $0x310] sm:$0xff]
  %v1382 = vld [vmem:[%s3 + $0x318] sm:$0xff]
  %v1383 = vld [vmem:[%s3 + $0x320] sm:$0xff]
  %v1384 = vld [vmem:[%s3 + $0x328] sm:$0xff]
  %v1385 = vld [vmem:[%s3 + $0x330] sm:$0xff]
  %v1386 = vld [vmem:[%s3 + $0x338] sm:$0xff]
  %v1387 = vld [vmem:[%s3 + $0x340] sm:$0xff]
  %v1388 = vld [vmem:[%s3 + $0x348] sm:$0xff]
  %v1389 = vld [vmem:[%s3 + $0x350] sm:$0xff]
  %v1390 = vld [vmem:[%s3 + $0x358] sm:$0xff]
  %v1391 = vld [vmem:[%s3 + $0x360] sm:$0xff]
  %v1392 = vld [vmem:[%s3 + $0x368] sm:$0xff]
  %v1393 = vld [vmem:[%s3 + $0x370] sm:$0xff]
  %v1394 = vld [vmem:[%s3 + $0x378] sm:$0xff]
  %v1395 = vld [vmem:[%s3 + $0x380] sm:$0xff]
  %v1396 = vld [vmem:[%s3 + $0x388] sm:$0xff]
  %v1397 = vld [vmem:[%s3 + $0x390] sm:$0xff]
  %v1398 = vld [vmem:[%s3 + $0x398] sm:$0xff]
  %v1399 = vld [vmem:[%s3 + $0x3a0] sm:$0xff]
  %v1400 = vld [vmem:[%s3 + $0x3a8] sm:$0xff]
  %v1401 = vld [vmem:[%s3 + $0x3b0] sm:$0xff]
  %v1402 = vld [vmem:[%s3 + $0x3b8] sm:$0xff]
  %v1403 = vld [vmem:[%s3 + $0x3c0] sm:$0xff]
  %v1404 = vld [vmem:[%s3 + $0x3c8] sm:$0xff]
  %v1405 = vld [vmem:[%s3 + $0x3d0] sm:$0xff]
  %v1406 = vld [vmem:[%s3 + $0x3d8] sm:$0xff]
  %v1407 = vld [vmem:[%s3 + $0x3e0] sm:$0xff]
  %v1408 = vld [vmem:[%s3 + $0x3e8] sm:$0xff]
  %v1409 = vld [vmem:[%s3 + $0x3f0] sm:$0xff]
  %v1410 = vld [vmem:[%s3 + $0x3f8] sm:$0xff]
  %v1411 = vld [vmem:[%s4] sm:$0xf]
  %v1413 = vperm.slane %v1411, 0
  %v1414 = vperm.slane %v1411, 1
  %v1415 = vperm.slane %v1411, 2
  %v1416 = vperm.slane %v1411, 3
  %v1549 = vunpack.c.l.b16 %v1283
  %v1550 = vunpack.c.h.b16 %v1283
  %v1551 = vunpack.c.l.b16 %v1284
  %v1552 = vunpack.c.h.b16 %v1284
  %v1553 = vunpack.c.l.b16 %v1285
  %v1554 = vunpack.c.h.b16 %v1285
  %v1555 = vunpack.c.l.b16 %v1286
  %v1556 = vunpack.c.h.b16 %v1286
  %v1557 = vunpack.c.l.b16 %v1287
  %v1558 = vunpack.c.h.b16 %v1287
  %v1559 = vunpack.c.l.b16 %v1288
  %v1560 = vunpack.c.h.b16 %v1288
  %v1561 = vunpack.c.l.b16 %v1289
  %v1562 = vunpack.c.h.b16 %v1289
  %v1563 = vunpack.c.l.b16 %v1290
  %v1564 = vunpack.c.h.b16 %v1290
  %v1565 = vunpack.c.l.b16 %v1291
  %v1566 = vunpack.c.h.b16 %v1291
  %v1567 = vunpack.c.l.b16 %v1292
  %v1568 = vunpack.c.h.b16 %v1292
  %v1569 = vunpack.c.l.b16 %v1293
  %v1570 = vunpack.c.h.b16 %v1293
  %v1571 = vunpack.c.l.b16 %v1294
  %v1572 = vunpack.c.h.b16 %v1294
  %v1573 = vunpack.c.l.b16 %v1295
  %v1574 = vunpack.c.h.b16 %v1295
  %v1575 = vunpack.c.l.b16 %v1296
  %v1576 = vunpack.c.h.b16 %v1296
  %v1577 = vunpack.c.l.b16 %v1297
  %v1578 = vunpack.c.h.b16 %v1297
  %v1579 = vunpack.c.l.b16 %v1298
  %v1580 = vunpack.c.h.b16 %v1298
  %v1581 = vunpack.c.l.b16 %v1299
  %v1582 = vunpack.c.h.b16 %v1299
  %v1583 = vunpack.c.l.b16 %v1300
  %v1584 = vunpack.c.h.b16 %v1300
  %v1585 = vunpack.c.l.b16 %v1301
  %v1586 = vunpack.c.h.b16 %v1301
  %v1587 = vunpack.c.l.b16 %v1302
  %v1588 = vunpack.c.h.b16 %v1302
  %v1589 = vunpack.c.l.b16 %v1303
  %v1590 = vunpack.c.h.b16 %v1303
  %v1591 = vunpack.c.l.b16 %v1304
  %v1592 = vunpack.c.h.b16 %v1304
  %v1593 = vunpack.c.l.b16 %v1305
  %v1594 = vunpack.c.h.b16 %v1305
  %v1595 = vunpack.c.l.b16 %v1306
  %v1596 = vunpack.c.h.b16 %v1306
  %v1597 = vunpack.c.l.b16 %v1307
  %v1598 = vunpack.c.h.b16 %v1307
  %v1599 = vunpack.c.l.b16 %v1308
  %v1600 = vunpack.c.h.b16 %v1308
  %v1601 = vunpack.c.l.b16 %v1309
  %v1602 = vunpack.c.h.b16 %v1309
  %v1603 = vunpack.c.l.b16 %v1310
  %v1604 = vunpack.c.h.b16 %v1310
  %v1605 = vunpack.c.l.b16 %v1311
  %v1606 = vunpack.c.h.b16 %v1311
  %v1607 = vunpack.c.l.b16 %v1312
  %v1608 = vunpack.c.h.b16 %v1312
  %v1609 = vunpack.c.l.b16 %v1313
  %v1610 = vunpack.c.h.b16 %v1313
  %v1611 = vunpack.c.l.b16 %v1314
  %v1612 = vunpack.c.h.b16 %v1314
  %v1613 = vunpack.c.l.b16 %v1315
  %v1614 = vunpack.c.h.b16 %v1315
  %v1615 = vunpack.c.l.b16 %v1316
  %v1616 = vunpack.c.h.b16 %v1316
  %v1617 = vunpack.c.l.b16 %v1317
  %v1618 = vunpack.c.h.b16 %v1317
  %v1619 = vunpack.c.l.b16 %v1318
  %v1620 = vunpack.c.h.b16 %v1318
  %v1621 = vunpack.c.l.b16 %v1319
  %v1622 = vunpack.c.h.b16 %v1319
  %v1623 = vunpack.c.l.b16 %v1320
  %v1624 = vunpack.c.h.b16 %v1320
  %v1625 = vunpack.c.l.b16 %v1321
  %v1626 = vunpack.c.h.b16 %v1321
  %v1627 = vunpack.c.l.b16 %v1322
  %v1628 = vunpack.c.h.b16 %v1322
  %v1629 = vunpack.c.l.b16 %v1323
  %v1630 = vunpack.c.h.b16 %v1323
  %v1631 = vunpack.c.l.b16 %v1324
  %v1632 = vunpack.c.h.b16 %v1324
  %v1633 = vunpack.c.l.b16 %v1325
  %v1634 = vunpack.c.h.b16 %v1325
  %v1635 = vunpack.c.l.b16 %v1326
  %v1636 = vunpack.c.h.b16 %v1326
  %v1637 = vunpack.c.l.b16 %v1327
  %v1638 = vunpack.c.h.b16 %v1327
  %v1639 = vunpack.c.l.b16 %v1328
  %v1640 = vunpack.c.h.b16 %v1328
  %v1641 = vunpack.c.l.b16 %v1329
  %v1642 = vunpack.c.h.b16 %v1329
  %v1643 = vunpack.c.l.b16 %v1330
  %v1644 = vunpack.c.h.b16 %v1330
  %v1645 = vunpack.c.l.b16 %v1331
  %v1646 = vunpack.c.h.b16 %v1331
  %v1647 = vunpack.c.l.b16 %v1332
  %v1648 = vunpack.c.h.b16 %v1332
  %v1649 = vunpack.c.l.b16 %v1333
  %v1650 = vunpack.c.h.b16 %v1333
  %v1651 = vunpack.c.l.b16 %v1334
  %v1652 = vunpack.c.h.b16 %v1334
  %v1653 = vunpack.c.l.b16 %v1335
  %v1654 = vunpack.c.h.b16 %v1335
  %v1655 = vunpack.c.l.b16 %v1336
  %v1656 = vunpack.c.h.b16 %v1336
  %v1657 = vunpack.c.l.b16 %v1337
  %v1658 = vunpack.c.h.b16 %v1337
  %v1659 = vunpack.c.l.b16 %v1338
  %v1660 = vunpack.c.h.b16 %v1338
  %v1661 = vunpack.c.l.b16 %v1339
  %v1662 = vunpack.c.h.b16 %v1339
  %v1663 = vunpack.c.l.b16 %v1340
  %v1664 = vunpack.c.h.b16 %v1340
  %v1665 = vunpack.c.l.b16 %v1341
  %v1666 = vunpack.c.h.b16 %v1341
  %v1667 = vunpack.c.l.b16 %v1342
  %v1668 = vunpack.c.h.b16 %v1342
  %v1669 = vunpack.c.l.b16 %v1343
  %v1670 = vunpack.c.h.b16 %v1343
  %v1671 = vunpack.c.l.b16 %v1344
  %v1672 = vunpack.c.h.b16 %v1344
  %v1673 = vunpack.c.l.b16 %v1345
  %v1674 = vunpack.c.h.b16 %v1345
  %v1675 = vunpack.c.l.b16 %v1346
  %v1676 = vunpack.c.h.b16 %v1346
  %v1677 = vunpack.c.l.b16 %v1347
  %v1678 = vunpack.c.h.b16 %v1347
  %v1679 = vunpack.c.l.b16 %v1348
  %v1680 = vunpack.c.h.b16 %v1348
  %v1681 = vunpack.c.l.b16 %v1349
  %v1682 = vunpack.c.h.b16 %v1349
  %v1683 = vunpack.c.l.b16 %v1350
  %v1684 = vunpack.c.h.b16 %v1350
  %v1685 = vunpack.c.l.b16 %v1351
  %v1686 = vunpack.c.h.b16 %v1351
  %v1687 = vunpack.c.l.b16 %v1352
  %v1688 = vunpack.c.h.b16 %v1352
  %v1689 = vunpack.c.l.b16 %v1353
  %v1690 = vunpack.c.h.b16 %v1353
  %v1691 = vunpack.c.l.b16 %v1354
  %v1692 = vunpack.c.h.b16 %v1354
  %v1693 = vunpack.c.l.b16 %v1355
  %v1694 = vunpack.c.h.b16 %v1355
  %v1695 = vunpack.c.l.b16 %v1356
  %v1696 = vunpack.c.h.b16 %v1356
  %v1697 = vunpack.c.l.b16 %v1357
  %v1698 = vunpack.c.h.b16 %v1357
  %v1699 = vunpack.c.l.b16 %v1358
  %v1700 = vunpack.c.h.b16 %v1358
  %v1701 = vunpack.c.l.b16 %v1359
  %v1702 = vunpack.c.h.b16 %v1359
  %v1703 = vunpack.c.l.b16 %v1360
  %v1704 = vunpack.c.h.b16 %v1360
  %v1705 = vunpack.c.l.b16 %v1361
  %v1706 = vunpack.c.h.b16 %v1361
  %v1707 = vunpack.c.l.b16 %v1362
  %v1708 = vunpack.c.h.b16 %v1362
  %v1709 = vunpack.c.l.b16 %v1363
  %v1710 = vunpack.c.h.b16 %v1363
  %v1711 = vunpack.c.l.b16 %v1364
  %v1712 = vunpack.c.h.b16 %v1364
  %v1713 = vunpack.c.l.b16 %v1365
  %v1714 = vunpack.c.h.b16 %v1365
  %v1715 = vunpack.c.l.b16 %v1366
  %v1716 = vunpack.c.h.b16 %v1366
  %v1717 = vunpack.c.l.b16 %v1367
  %v1718 = vunpack.c.h.b16 %v1367
  %v1719 = vunpack.c.l.b16 %v1368
  %v1720 = vunpack.c.h.b16 %v1368
  %v1721 = vunpack.c.l.b16 %v1369
  %v1722 = vunpack.c.h.b16 %v1369
  %v1723 = vunpack.c.l.b16 %v1370
  %v1724 = vunpack.c.h.b16 %v1370
  %v1725 = vunpack.c.l.b16 %v1371
  %v1726 = vunpack.c.h.b16 %v1371
  %v1727 = vunpack.c.l.b16 %v1372
  %v1728 = vunpack.c.h.b16 %v1372
  %v1729 = vunpack.c.l.b16 %v1373
  %v1730 = vunpack.c.h.b16 %v1373
  %v1731 = vunpack.c.l.b16 %v1374
  %v1732 = vunpack.c.h.b16 %v1374
  %v1733 = vunpack.c.l.b16 %v1375
  %v1734 = vunpack.c.h.b16 %v1375
  %v1735 = vunpack.c.l.b16 %v1376
  %v1736 = vunpack.c.h.b16 %v1376
  %v1737 = vunpack.c.l.b16 %v1377
  %v1738 = vunpack.c.h.b16 %v1377
  %v1739 = vunpack.c.l.b16 %v1378
  %v1740 = vunpack.c.h.b16 %v1378
  %v1741 = vunpack.c.l.b16 %v1379
  %v1742 = vunpack.c.h.b16 %v1379
  %v1743 = vunpack.c.l.b16 %v1380
  %v1744 = vunpack.c.h.b16 %v1380
  %v1745 = vunpack.c.l.b16 %v1381
  %v1746 = vunpack.c.h.b16 %v1381
  %v1747 = vunpack.c.l.b16 %v1382
  %v1748 = vunpack.c.h.b16 %v1382
  %v1749 = vunpack.c.l.b16 %v1383
  %v1750 = vunpack.c.h.b16 %v1383
  %v1751 = vunpack.c.l.b16 %v1384
  %v1752 = vunpack.c.h.b16 %v1384
  %v1753 = vunpack.c.l.b16 %v1385
  %v1754 = vunpack.c.h.b16 %v1385
  %v1755 = vunpack.c.l.b16 %v1386
  %v1756 = vunpack.c.h.b16 %v1386
  %v1757 = vunpack.c.l.b16 %v1387
  %v1758 = vunpack.c.h.b16 %v1387
  %v1759 = vunpack.c.l.b16 %v1388
  %v1760 = vunpack.c.h.b16 %v1388
  %v1761 = vunpack.c.l.b16 %v1389
  %v1762 = vunpack.c.h.b16 %v1389
  %v1763 = vunpack.c.l.b16 %v1390
  %v1764 = vunpack.c.h.b16 %v1390
  %v1765 = vunpack.c.l.b16 %v1391
  %v1766 = vunpack.c.h.b16 %v1391
  %v1767 = vunpack.c.l.b16 %v1392
  %v1768 = vunpack.c.h.b16 %v1392
  %v1769 = vunpack.c.l.b16 %v1393
  %v1770 = vunpack.c.h.b16 %v1393
  %v1771 = vunpack.c.l.b16 %v1394
  %v1772 = vunpack.c.h.b16 %v1394
  %v1773 = vunpack.c.l.b16 %v1395
  %v1774 = vunpack.c.h.b16 %v1395
  %v1775 = vunpack.c.l.b16 %v1396
  %v1776 = vunpack.c.h.b16 %v1396
  %v1777 = vunpack.c.l.b16 %v1397
  %v1778 = vunpack.c.h.b16 %v1397
  %v1779 = vunpack.c.l.b16 %v1398
  %v1780 = vunpack.c.h.b16 %v1398
  %v1781 = vunpack.c.l.b16 %v1399
  %v1782 = vunpack.c.h.b16 %v1399
  %v1783 = vunpack.c.l.b16 %v1400
  %v1784 = vunpack.c.h.b16 %v1400
  %v1785 = vunpack.c.l.b16 %v1401
  %v1786 = vunpack.c.h.b16 %v1401
  %v1787 = vunpack.c.l.b16 %v1402
  %v1788 = vunpack.c.h.b16 %v1402
  %v1789 = vunpack.c.l.b16 %v1403
  %v1790 = vunpack.c.h.b16 %v1403
  %v1791 = vunpack.c.l.b16 %v1404
  %v1792 = vunpack.c.h.b16 %v1404
  %v1793 = vunpack.c.l.b16 %v1405
  %v1794 = vunpack.c.h.b16 %v1405
  %v1795 = vunpack.c.l.b16 %v1406
  %v1796 = vunpack.c.h.b16 %v1406
  %v1797 = vunpack.c.l.b16 %v1407
  %v1798 = vunpack.c.h.b16 %v1407
  %v1799 = vunpack.c.l.b16 %v1408
  %v1800 = vunpack.c.h.b16 %v1408
  %v1801 = vunpack.c.l.b16 %v1409
  %v1802 = vunpack.c.h.b16 %v1409
  %v1803 = vunpack.c.l.b16 %v1410
  %v1804 = vunpack.c.h.b16 %v1410
  %v1805 = vpack.c.b16 %v1553, %v1549
  %v1806 = vpack.c.b16 %v1554, %v1550
  %v1807 = vpack.c.b16 %v1555, %v1551
  %v1808 = vpack.c.b16 %v1556, %v1552
  %v1809 = vpack.c.b16 %v1561, %v1557
  %v1810 = vpack.c.b16 %v1562, %v1558
  %v1811 = vpack.c.b16 %v1563, %v1559
  %v1812 = vpack.c.b16 %v1564, %v1560
  %v1813 = vpack.c.b16 %v1569, %v1565
  %v1814 = vpack.c.b16 %v1570, %v1566
  %v1815 = vpack.c.b16 %v1571, %v1567
  %v1816 = vpack.c.b16 %v1572, %v1568
  %v1817 = vpack.c.b16 %v1577, %v1573
  %v1818 = vpack.c.b16 %v1578, %v1574
  %v1819 = vpack.c.b16 %v1579, %v1575
  %v1820 = vpack.c.b16 %v1580, %v1576
  %v1821 = vpack.c.b16 %v1585, %v1581
  %v1822 = vpack.c.b16 %v1586, %v1582
  %v1823 = vpack.c.b16 %v1587, %v1583
  %v1824 = vpack.c.b16 %v1588, %v1584
  %v1825 = vpack.c.b16 %v1593, %v1589
  %v1826 = vpack.c.b16 %v1594, %v1590
  %v1827 = vpack.c.b16 %v1595, %v1591
  %v1828 = vpack.c.b16 %v1596, %v1592
  %v1829 = vpack.c.b16 %v1601, %v1597
  %v1830 = vpack.c.b16 %v1602, %v1598
  %v1831 = vpack.c.b16 %v1603, %v1599
  %v1832 = vpack.c.b16 %v1604, %v1600
  %v1833 = vpack.c.b16 %v1609, %v1605
  %v1834 = vpack.c.b16 %v1610, %v1606
  %v1835 = vpack.c.b16 %v1611, %v1607
  %v1836 = vpack.c.b16 %v1612, %v1608
  %v1837 = vpack.c.b16 %v1617, %v1613
  %v1838 = vpack.c.b16 %v1618, %v1614
  %v1839 = vpack.c.b16 %v1619, %v1615
  %v1840 = vpack.c.b16 %v1620, %v1616
  %v1841 = vpack.c.b16 %v1625, %v1621
  %v1842 = vpack.c.b16 %v1626, %v1622
  %v1843 = vpack.c.b16 %v1627, %v1623
  %v1844 = vpack.c.b16 %v1628, %v1624
  %v1845 = vpack.c.b16 %v1633, %v1629
  %v1846 = vpack.c.b16 %v1634, %v1630
  %v1847 = vpack.c.b16 %v1635, %v1631
  %v1848 = vpack.c.b16 %v1636, %v1632
  %v1849 = vpack.c.b16 %v1641, %v1637
  %v1850 = vpack.c.b16 %v1642, %v1638
  %v1851 = vpack.c.b16 %v1643, %v1639
  %v1852 = vpack.c.b16 %v1644, %v1640
  %v1853 = vpack.c.b16 %v1649, %v1645
  %v1854 = vpack.c.b16 %v1650, %v1646
  %v1855 = vpack.c.b16 %v1651, %v1647
  %v1856 = vpack.c.b16 %v1652, %v1648
  %v1857 = vpack.c.b16 %v1657, %v1653
  %v1858 = vpack.c.b16 %v1658, %v1654
  %v1859 = vpack.c.b16 %v1659, %v1655
  %v1860 = vpack.c.b16 %v1660, %v1656
  %v1861 = vpack.c.b16 %v1665, %v1661
  %v1862 = vpack.c.b16 %v1666, %v1662
  %v1863 = vpack.c.b16 %v1667, %v1663
  %v1864 = vpack.c.b16 %v1668, %v1664
  %v1865 = vpack.c.b16 %v1673, %v1669
  %v1866 = vpack.c.b16 %v1674, %v1670
  %v1867 = vpack.c.b16 %v1675, %v1671
  %v1868 = vpack.c.b16 %v1676, %v1672
  %v1869 = vpack.c.b16 %v1681, %v1677
  %v1870 = vpack.c.b16 %v1682, %v1678
  %v1871 = vpack.c.b16 %v1683, %v1679
  %v1872 = vpack.c.b16 %v1684, %v1680
  %v1873 = vpack.c.b16 %v1689, %v1685
  %v1874 = vpack.c.b16 %v1690, %v1686
  %v1875 = vpack.c.b16 %v1691, %v1687
  %v1876 = vpack.c.b16 %v1692, %v1688
  %v1877 = vpack.c.b16 %v1697, %v1693
  %v1878 = vpack.c.b16 %v1698, %v1694
  %v1879 = vpack.c.b16 %v1699, %v1695
  %v1880 = vpack.c.b16 %v1700, %v1696
  %v1881 = vpack.c.b16 %v1705, %v1701
  %v1882 = vpack.c.b16 %v1706, %v1702
  %v1883 = vpack.c.b16 %v1707, %v1703
  %v1884 = vpack.c.b16 %v1708, %v1704
  %v1885 = vpack.c.b16 %v1713, %v1709
  %v1886 = vpack.c.b16 %v1714, %v1710
  %v1887 = vpack.c.b16 %v1715, %v1711
  %v1888 = vpack.c.b16 %v1716, %v1712
  %v1889 = vpack.c.b16 %v1721, %v1717
  %v1890 = vpack.c.b16 %v1722, %v1718
  %v1891 = vpack.c.b16 %v1723, %v1719
  %v1892 = vpack.c.b16 %v1724, %v1720
  %v1893 = vpack.c.b16 %v1729, %v1725
  %v1894 = vpack.c.b16 %v1730, %v1726
  %v1895 = vpack.c.b16 %v1731, %v1727
  %v1896 = vpack.c.b16 %v1732, %v1728
  %v1897 = vpack.c.b16 %v1737, %v1733
  %v1898 = vpack.c.b16 %v1738, %v1734
  %v1899 = vpack.c.b16 %v1739, %v1735
  %v1900 = vpack.c.b16 %v1740, %v1736
  %v1901 = vpack.c.b16 %v1745, %v1741
  %v1902 = vpack.c.b16 %v1746, %v1742
  %v1903 = vpack.c.b16 %v1747, %v1743
  %v1904 = vpack.c.b16 %v1748, %v1744
  %v1905 = vpack.c.b16 %v1753, %v1749
  %v1906 = vpack.c.b16 %v1754, %v1750
  %v1907 = vpack.c.b16 %v1755, %v1751
  %v1908 = vpack.c.b16 %v1756, %v1752
  %v1909 = vpack.c.b16 %v1761, %v1757
  %v1910 = vpack.c.b16 %v1762, %v1758
  %v1911 = vpack.c.b16 %v1763, %v1759
  %v1912 = vpack.c.b16 %v1764, %v1760
  %v1913 = vpack.c.b16 %v1769, %v1765
  %v1914 = vpack.c.b16 %v1770, %v1766
  %v1915 = vpack.c.b16 %v1771, %v1767
  %v1916 = vpack.c.b16 %v1772, %v1768
  %v1917 = vpack.c.b16 %v1777, %v1773
  %v1918 = vpack.c.b16 %v1778, %v1774
  %v1919 = vpack.c.b16 %v1779, %v1775
  %v1920 = vpack.c.b16 %v1780, %v1776
  %v1921 = vpack.c.b16 %v1785, %v1781
  %v1922 = vpack.c.b16 %v1786, %v1782
  %v1923 = vpack.c.b16 %v1787, %v1783
  %v1924 = vpack.c.b16 %v1788, %v1784
  %v1925 = vpack.c.b16 %v1793, %v1789
  %v1926 = vpack.c.b16 %v1794, %v1790
  %v1927 = vpack.c.b16 %v1795, %v1791
  %v1928 = vpack.c.b16 %v1796, %v1792
  %v1929 = vpack.c.b16 %v1801, %v1797
  %v1930 = vpack.c.b16 %v1802, %v1798
  %v1931 = vpack.c.b16 %v1803, %v1799
  %v1932 = vpack.c.b16 %v1804, %v1800
  %2061 = vmatpush.bf16.msra.mxu0 %v1833
  %2062 = vmatpush.bf16.msra.mxu0 %v1829
  %2063 = vmatpush.bf16.msra.mxu0 %v1825
  %2064 = vmatpush.bf16.msra.mxu0 %v1821
  %2065 = vmatpush.bf16.msra.mxu0 %v1817
  %2066 = vmatpush.bf16.msra.mxu0 %v1813
  %2067 = vmatpush.bf16.msra.mxu0 %v1809
  %2068 = vmatpush.bf16.msra.mxu0 %v1805
  %2069 = vmatmul.bf16.gmra.mxu0 %v1279
  %v2070 = vpop.f32.mrf.mxu0
  %v2071 = vadd.f32 %v1413, %v2070
  %v2072 = vpop.f32.mrf.mxu0
  %2073 = vdwg.mxu0
  %2074 = vmatpush.bf16.msra.mxu0 %v1865
  %2075 = vmatpush.bf16.msra.mxu0 %v1861
  %2076 = vmatpush.bf16.msra.mxu0 %v1857
  %2077 = vmatpush.bf16.msra.mxu0 %v1853
  %2078 = vmatpush.bf16.msra.mxu0 %v1849
  %2079 = vmatpush.bf16.msra.mxu0 %v1845
  %2080 = vmatpush.bf16.msra.mxu0 %v1841
  %2081 = vmatpush.bf16.msra.mxu0 %v1837
  %2082 = vmatmul.bf16.gmra.mxu0 %v1280
  %v2083 = vpop.f32.mrf.mxu0
  %v2084 = vadd.f32 %v2071, %v2083
  %v2085 = vpop.f32.mrf.mxu0
  %2086 = vdwg.mxu0
  %2087 = vmatpush.bf16.msra.mxu0 %v1897
  %2088 = vmatpush.bf16.msra.mxu0 %v1893
  %2089 = vmatpush.bf16.msra.mxu0 %v1889
  %2090 = vmatpush.bf16.msra.mxu0 %v1885
  %2091 = vmatpush.bf16.msra.mxu0 %v1881
  %2092 = vmatpush.bf16.msra.mxu0 %v1877
  %2093 = vmatpush.bf16.msra.mxu0 %v1873
  %2094 = vmatpush.bf16.msra.mxu0 %v1869
  %2095 = vmatmul.bf16.gmra.mxu0 %v1281
  %v2096 = vpop.f32.mrf.mxu0
  %v2097 = vadd.f32 %v2084, %v2096
  %v2098 = vpop.f32.mrf.mxu0
  %2099 = vdwg.mxu0
  %2100 = vmatpush.bf16.msra.mxu0 %v1929
  %2101 = vmatpush.bf16.msra.mxu0 %v1925
  %2102 = vmatpush.bf16.msra.mxu0 %v1921
  %2103 = vmatpush.bf16.msra.mxu0 %v1917
  %2104 = vmatpush.bf16.msra.mxu0 %v1913
  %2105 = vmatpush.bf16.msra.mxu0 %v1909
  %2106 = vmatpush.bf16.msra.mxu0 %v1905
  %2107 = vmatpush.bf16.msra.mxu0 %v1901
  %2108 = vmatmul.bf16.gmra.mxu0 %v1282
  %v2109 = vpop.f32.mrf.mxu0
  %v2110 = vadd.f32 %v2097, %v2109
  %v2111 = vpop.f32.mrf.mxu0
  %2112 = vdwg.mxu0
  %2113 = vmatpush.bf16.msra.mxu0 %v1834
  %2114 = vmatpush.bf16.msra.mxu0 %v1830
  %2115 = vmatpush.bf16.msra.mxu0 %v1826
  %2116 = vmatpush.bf16.msra.mxu0 %v1822
  %2117 = vmatpush.bf16.msra.mxu0 %v1818
  %2118 = vmatpush.bf16.msra.mxu0 %v1814
  %2119 = vmatpush.bf16.msra.mxu0 %v1810
  %2120 = vmatpush.bf16.msra.mxu0 %v1806
  %2121 = vmatmul.bf16.gmra.mxu0 %v1279
  %v2122 = vpop.f32.mrf.mxu0
  %v2123 = vadd.f32 %v1414, %v2122
  %v2124 = vpop.f32.mrf.mxu0
  %2125 = vdwg.mxu0
  %2126 = vmatpush.bf16.msra.mxu0 %v1866
  %2127 = vmatpush.bf16.msra.mxu0 %v1862
  %2128 = vmatpush.bf16.msra.mxu0 %v1858
  %2129 = vmatpush.bf16.msra.mxu0 %v1854
  %2130 = vmatpush.bf16.msra.mxu0 %v1850
  %2131 = vmatpush.bf16.msra.mxu0 %v1846
  %2132 = vmatpush.bf16.msra.mxu0 %v1842
  %2133 = vmatpush.bf16.msra.mxu0 %v1838
  %2134 = vmatmul.bf16.gmra.mxu0 %v1280
  %v2135 = vpop.f32.mrf.mxu0
  %v2136 = vadd.f32 %v2123, %v2135
  %v2137 = vpop.f32.mrf.mxu0
  %2138 = vdwg.mxu0
  %2139 = vmatpush.bf16.msra.mxu0 %v1898
  %2140 = vmatpush.bf16.msra.mxu0 %v1894
  %2141 = vmatpush.bf16.msra.mxu0 %v1890
  %2142 = vmatpush.bf16.msra.mxu0 %v1886
  %2143 = vmatpush.bf16.msra.mxu0 %v1882
  %2144 = vmatpush.bf16.msra.mxu0 %v1878
  %2145 = vmatpush.bf16.msra.mxu0 %v1874
  %2146 = vmatpush.bf16.msra.mxu0 %v1870
  %2147 = vmatmul.bf16.gmra.mxu0 %v1281
  %v2148 = vpop.f32.mrf.mxu0
  %v2149 = vadd.f32 %v2136, %v2148
  %v2150 = vpop.f32.mrf.mxu0
  %2151 = vdwg.mxu0
  %2152 = vmatpush.bf16.msra.mxu0 %v1930
  %2153 = vmatpush.bf16.msra.mxu0 %v1926
  %2154 = vmatpush.bf16.msra.mxu0 %v1922
  %2155 = vmatpush.bf16.msra.mxu0 %v1918
  %2156 = vmatpush.bf16.msra.mxu0 %v1914
  %2157 = vmatpush.bf16.msra.mxu0 %v1910
  %2158 = vmatpush.bf16.msra.mxu0 %v1906
  %2159 = vmatpush.bf16.msra.mxu0 %v1902
  %2160 = vmatmul.bf16.gmra.mxu0 %v1282
  %v2161 = vpop.f32.mrf.mxu0
  %v2162 = vadd.f32 %v2149, %v2161
  %v2163 = vpop.f32.mrf.mxu0
  %2164 = vdwg.mxu0
  %2165 = vmatpush.bf16.msra.mxu0 %v1835
  %2166 = vmatpush.bf16.msra.mxu0 %v1831
  %2167 = vmatpush.bf16.msra.mxu0 %v1827
  %2168 = vmatpush.bf16.msra.mxu0 %v1823
  %2169 = vmatpush.bf16.msra.mxu0 %v1819
  %2170 = vmatpush.bf16.msra.mxu0 %v1815
  %2171 = vmatpush.bf16.msra.mxu0 %v1811
  %2172 = vmatpush.bf16.msra.mxu0 %v1807
  %2173 = vmatmul.bf16.gmra.mxu0 %v1279
  %v2174 = vpop.f32.mrf.mxu0
  %v2175 = vadd.f32 %v1415, %v2174
  %v2176 = vpop.f32.mrf.mxu0
  %2177 = vdwg.mxu0
  %2178 = vmatpush.bf16.msra.mxu0 %v1867
  %2179 = vmatpush.bf16.msra.mxu0 %v1863
  %2180 = vmatpush.bf16.msra.mxu0 %v1859
  %2181 = vmatpush.bf16.msra.mxu0 %v1855
  %2182 = vmatpush.bf16.msra.mxu0 %v1851
  %2183 = vmatpush.bf16.msra.mxu0 %v1847
  %2184 = vmatpush.bf16.msra.mxu0 %v1843
  %2185 = vmatpush.bf16.msra.mxu0 %v1839
  %2186 = vmatmul.bf16.gmra.mxu0 %v1280
  %v2187 = vpop.f32.mrf.mxu0
  %v2188 = vadd.f32 %v2175, %v2187
  %v2189 = vpop.f32.mrf.mxu0
  %2190 = vdwg.mxu0
  %2191 = vmatpush.bf16.msra.mxu0 %v1899
  %2192 = vmatpush.bf16.msra.mxu0 %v1895
  %2193 = vmatpush.bf16.msra.mxu0 %v1891
  %2194 = vmatpush.bf16.msra.mxu0 %v1887
  %2195 = vmatpush.bf16.msra.mxu0 %v1883
  %2196 = vmatpush.bf16.msra.mxu0 %v1879
  %2197 = vmatpush.bf16.msra.mxu0 %v1875
  %2198 = vmatpush.bf16.msra.mxu0 %v1871
  %2199 = vmatmul.bf16.gmra.mxu0 %v1281
  %v2200 = vpop.f32.mrf.mxu0
  %v2201 = vadd.f32 %v2188, %v2200
  %v2202 = vpop.f32.mrf.mxu0
  %2203 = vdwg.mxu0
  %2204 = vmatpush.bf16.msra.mxu0 %v1931
  %2205 = vmatpush.bf16.msra.mxu0 %v1927
  %2206 = vmatpush.bf16.msra.mxu0 %v1923
  %2207 = vmatpush.bf16.msra.mxu0 %v1919
  %2208 = vmatpush.bf16.msra.mxu0 %v1915
  %2209 = vmatpush.bf16.msra.mxu0 %v1911
  %2210 = vmatpush.bf16.msra.mxu0 %v1907
  %2211 = vmatpush.bf16.msra.mxu0 %v1903
  %2212 = vmatmul.bf16.gmra.mxu0 %v1282
  %v2213 = vpop.f32.mrf.mxu0
  %v2214 = vadd.f32 %v2201, %v2213
  %v2215 = vpop.f32.mrf.mxu0
  %2216 = vdwg.mxu0
  %2217 = vmatpush.bf16.msra.mxu0 %v1836
  %2218 = vmatpush.bf16.msra.mxu0 %v1832
  %2219 = vmatpush.bf16.msra.mxu0 %v1828
  %2220 = vmatpush.bf16.msra.mxu0 %v1824
  %2221 = vmatpush.bf16.msra.mxu0 %v1820
  %2222 = vmatpush.bf16.msra.mxu0 %v1816
  %2223 = vmatpush.bf16.msra.mxu0 %v1812
  %2224 = vmatpush.bf16.msra.mxu0 %v1808
  %2225 = vmatmul.bf16.gmra.mxu0 %v1279
  %v2226 = vpop.f32.mrf.mxu0
  %v2227 = vadd.f32 %v1416, %v2226
  %v2228 = vpop.f32.mrf.mxu0
  %2229 = vdwg.mxu0
  %2230 = vmatpush.bf16.msra.mxu0 %v1868
  %2231 = vmatpush.bf16.msra.mxu0 %v1864
  %2232 = vmatpush.bf16.msra.mxu0 %v1860
  %2233 = vmatpush.bf16.msra.mxu0 %v1856
  %2234 = vmatpush.bf16.msra.mxu0 %v1852
  %2235 = vmatpush.bf16.msra.mxu0 %v1848
  %2236 = vmatpush.bf16.msra.mxu0 %v1844
  %2237 = vmatpush.bf16.msra.mxu0 %v1840
  %2238 = vmatmul.bf16.gmra.mxu0 %v1280
  %v2239 = vpop.f32.mrf.mxu0
  %v2240 = vadd.f32 %v2227, %v2239
  %v2241 = vpop.f32.mrf.mxu0
  %2242 = vdwg.mxu0
  %2243 = vmatpush.bf16.msra.mxu0 %v1900
  %2244 = vmatpush.bf16.msra.mxu0 %v1896
  %2245 = vmatpush.bf16.msra.mxu0 %v1892
  %2246 = vmatpush.bf16.msra.mxu0 %v1888
  %2247 = vmatpush.bf16.msra.mxu0 %v1884
  %2248 = vmatpush.bf16.msra.mxu0 %v1880
  %2249 = vmatpush.bf16.msra.mxu0 %v1876
  %2250 = vmatpush.bf16.msra.mxu0 %v1872
  %2251 = vmatmul.bf16.gmra.mxu0 %v1281
  %v2252 = vpop.f32.mrf.mxu0
  %v2253 = vadd.f32 %v2240, %v2252
  %v2254 = vpop.f32.mrf.mxu0
  %2255 = vdwg.mxu0
  %2256 = vmatpush.bf16.msra.mxu0 %v1932
  %2257 = vmatpush.bf16.msra.mxu0 %v1928
  %2258 = vmatpush.bf16.msra.mxu0 %v1924
  %2259 = vmatpush.bf16.msra.mxu0 %v1920
  %2260 = vmatpush.bf16.msra.mxu0 %v1916
  %2261 = vmatpush.bf16.msra.mxu0 %v1912
  %2262 = vmatpush.bf16.msra.mxu0 %v1908
  %2263 = vmatpush.bf16.msra.mxu0 %v1904
  %2264 = vmatmul.bf16.gmra.mxu0 %v1282
  %v2265 = vpop.f32.mrf.mxu0
  %v2266 = vadd.f32 %v2253, %v2265
  %v2267 = vpop.f32.mrf.mxu0
  %2268 = vdwg.mxu0
  %v2269 = vmax.f32 %v2110, 0.0
  %v2270 = vmax.f32 %v2162, 0.0
  %v2271 = vmax.f32 %v2214, 0.0
  %v2272 = vmax.f32 %v2266, 0.0
  %v2273 = vpack.c.bf16 %v2269, %v2269
  %v2274 = vpack.c.bf16 %v2270, %v2270
  %v2275 = vpack.c.bf16 %v2271, %v2271
  %v2276 = vpack.c.bf16 %v2272, %v2272
  %v2277 = vld [vmem:[%s5] sm:$0xff]
  %v2278 = vld [vmem:[%s5 + $0x8] sm:$0xff]
  %v2279 = vld [vmem:[%s5 + $0x10] sm:$0xff]
  %v2280 = vld [vmem:[%s5 + $0x18] sm:$0xff]
  %v2281 = vld [vmem:[%s5 + $0x20] sm:$0xff]
  %v2282 = vld [vmem:[%s5 + $0x28] sm:$0xff]
  %v2283 = vld [vmem:[%s5 + $0x30] sm:$0xff]
  %v2284 = vld [vmem:[%s5 + $0x38] sm:$0xff]
  %v2285 = vld [vmem:[%s5 + $0x40] sm:$0xff]
  %v2286 = vld [vmem:[%s5 + $0x48] sm:$0xff]
  %v2287 = vld [vmem:[%s5 + $0x50] sm:$0xff]
  %v2288 = vld [vmem:[%s5 + $0x58] sm:$0xff]
  %v2289 = vld [vmem:[%s5 + $0x60] sm:$0xff]
  %v2290 = vld [vmem:[%s5 + $0x68] sm:$0xff]
  %v2291 = vld [vmem:[%s5 + $0x70] sm:$0xff]
  %v2292 = vld [vmem:[%s5 + $0x78] sm:$0xff]
  %v2293 = vld [vmem:[%s5 + $0x80] sm:$0xff]
  %v2294 = vld [vmem:[%s5 + $0x88] sm:$0xff]
  %v2295 = vld [vmem:[%s5 + $0x90] sm:$0xff]
  %v2296 = vld [vmem:[%s5 + $0x98] sm:$0xff]
  %v2297 = vld [vmem:[%s5 + $0xa0] sm:$0xff]
  %v2298 = vld [vmem:[%s5 + $0xa8] sm:$0xff]
  %v2299 = vld [vmem:[%s5 + $0xb0] sm:$0xff]
  %v2300 = vld [vmem:[%s5 + $0xb8] sm:$0xff]
  %v2301 = vld [vmem:[%s5 + $0xc0] sm:$0xff]
  %v2302 = vld [vmem:[%s5 + $0xc8] sm:$0xff]
  %v2303 = vld [vmem:[%s5 + $0xd0] sm:$0xff]
  %v2304 = vld [vmem:[%s5 + $0xd8] sm:$0xff]
  %v2305 = vld [vmem:[%s5 + $0xe0] sm:$0xff]
  %v2306 = vld [vmem:[%s5 + $0xe8] sm:$0xff]
  %v2307 = vld [vmem:[%s5 + $0xf0] sm:$0xff]
  %v2308 = vld [vmem:[%s5 + $0xf8] sm:$0xff]
  %v2309 = vld [vmem:[%s5 + $0x100] sm:$0xff]
  %v2310 = vld [vmem:[%s5 + $0x108] sm:$0xff]
  %v2311 = vld [vmem:[%s5 + $0x110] sm:$0xff]
  %v2312 = vld [vmem:[%s5 + $0x118] sm:$0xff]
  %v2313 = vld [vmem:[%s5 + $0x120] sm:$0xff]
  %v2314 = vld [vmem:[%s5 + $0x128] sm:$0xff]
  %v2315 = vld [vmem:[%s5 + $0x130] sm:$0xff]
  %v2316 = vld [vmem:[%s5 + $0x138] sm:$0xff]
  %v2317 = vld [vmem:[%s5 + $0x140] sm:$0xff]
  %v2318 = vld [vmem:[%s5 + $0x148] sm:$0xff]
  %v2319 = vld [vmem:[%s5 + $0x150] sm:$0xff]
  %v2320 = vld [vmem:[%s5 + $0x158] sm:$0xff]
  %v2321 = vld [vmem:[%s5 + $0x160] sm:$0xff]
  %v2322 = vld [vmem:[%s5 + $0x168] sm:$0xff]
  %v2323 = vld [vmem:[%s5 + $0x170] sm:$0xff]
  %v2324 = vld [vmem:[%s5 + $0x178] sm:$0xff]
  %v2325 = vld [vmem:[%s5 + $0x180] sm:$0xff]
  %v2326 = vld [vmem:[%s5 + $0x188] sm:$0xff]
  %v2327 = vld [vmem:[%s5 + $0x190] sm:$0xff]
  %v2328 = vld [vmem:[%s5 + $0x198] sm:$0xff]
  %v2329 = vld [vmem:[%s5 + $0x1a0] sm:$0xff]
  %v2330 = vld [vmem:[%s5 + $0x1a8] sm:$0xff]
  %v2331 = vld [vmem:[%s5 + $0x1b0] sm:$0xff]
  %v2332 = vld [vmem:[%s5 + $0x1b8] sm:$0xff]
  %v2333 = vld [vmem:[%s5 + $0x1c0] sm:$0xff]
  %v2334 = vld [vmem:[%s5 + $0x1c8] sm:$0xff]
  %v2335 = vld [vmem:[%s5 + $0x1d0] sm:$0xff]
  %v2336 = vld [vmem:[%s5 + $0x1d8] sm:$0xff]
  %v2337 = vld [vmem:[%s5 + $0x1e0] sm:$0xff]
  %v2338 = vld [vmem:[%s5 + $0x1e8] sm:$0xff]
  %v2339 = vld [vmem:[%s5 + $0x1f0] sm:$0xff]
  %v2340 = vld [vmem:[%s5 + $0x1f8] sm:$0xff]
  %v2341 = vld [vmem:[%s5 + $0x200] sm:$0xff]
  %v2342 = vld [vmem:[%s5 + $0x208] sm:$0xff]
  %v2343 = vld [vmem:[%s5 + $0x210] sm:$0xff]
  %v2344 = vld [vmem:[%s5 + $0x218] sm:$0xff]
  %v2345 = vld [vmem:[%s5 + $0x220] sm:$0xff]
  %v2346 = vld [vmem:[%s5 + $0x228] sm:$0xff]
  %v2347 = vld [vmem:[%s5 + $0x230] sm:$0xff]
  %v2348 = vld [vmem:[%s5 + $0x238] sm:$0xff]
  %v2349 = vld [vmem:[%s5 + $0x240] sm:$0xff]
  %v2350 = vld [vmem:[%s5 + $0x248] sm:$0xff]
  %v2351 = vld [vmem:[%s5 + $0x250] sm:$0xff]
  %v2352 = vld [vmem:[%s5 + $0x258] sm:$0xff]
  %v2353 = vld [vmem:[%s5 + $0x260] sm:$0xff]
  %v2354 = vld [vmem:[%s5 + $0x268] sm:$0xff]
  %v2355 = vld [vmem:[%s5 + $0x270] sm:$0xff]
  %v2356 = vld [vmem:[%s5 + $0x278] sm:$0xff]
  %v2357 = vld [vmem:[%s5 + $0x280] sm:$0xff]
  %v2358 = vld [vmem:[%s5 + $0x288] sm:$0xff]
  %v2359 = vld [vmem:[%s5 + $0x290] sm:$0xff]
  %v2360 = vld [vmem:[%s5 + $0x298] sm:$0xff]
  %v2361 = vld [vmem:[%s5 + $0x2a0] sm:$0xff]
  %v2362 = vld [vmem:[%s5 + $0x2a8] sm:$0xff]
  %v2363 = vld [vmem:[%s5 + $0x2b0] sm:$0xff]
  %v2364 = vld [vmem:[%s5 + $0x2b8] sm:$0xff]
  %v2365 = vld [vmem:[%s5 + $0x2c0] sm:$0xff]
  %v2366 = vld [vmem:[%s5 + $0x2c8] sm:$0xff]
  %v2367 = vld [vmem:[%s5 + $0x2d0] sm:$0xff]
  %v2368 = vld [vmem:[%s5 + $0x2d8] sm:$0xff]
  %v2369 = vld [vmem:[%s5 + $0x2e0] sm:$0xff]
  %v2370 = vld [vmem:[%s5 + $0x2e8] sm:$0xff]
  %v2371 = vld [vmem:[%s5 + $0x2f0] sm:$0xff]
  %v2372 = vld [vmem:[%s5 + $0x2f8] sm:$0xff]
  %v2373 = vld [vmem:[%s5 + $0x300] sm:$0xff]
  %v2374 = vld [vmem:[%s5 + $0x308] sm:$0xff]
  %v2375 = vld [vmem:[%s5 + $0x310] sm:$0xff]
  %v2376 = vld [vmem:[%s5 + $0x318] sm:$0xff]
  %v2377 = vld [vmem:[%s5 + $0x320] sm:$0xff]
  %v2378 = vld [vmem:[%s5 + $0x328] sm:$0xff]
  %v2379 = vld [vmem:[%s5 + $0x330] sm:$0xff]
  %v2380 = vld [vmem:[%s5 + $0x338] sm:$0xff]
  %v2381 = vld [vmem:[%s5 + $0x340] sm:$0xff]
  %v2382 = vld [vmem:[%s5 + $0x348] sm:$0xff]
  %v2383 = vld [vmem:[%s5 + $0x350] sm:$0xff]
  %v2384 = vld [vmem:[%s5 + $0x358] sm:$0xff]
  %v2385 = vld [vmem:[%s5 + $0x360] sm:$0xff]
  %v2386 = vld [vmem:[%s5 + $0x368] sm:$0xff]
  %v2387 = vld [vmem:[%s5 + $0x370] sm:$0xff]
  %v2388 = vld [vmem:[%s5 + $0x378] sm:$0xff]
  %v2389 = vld [vmem:[%s5 + $0x380] sm:$0xff]
  %v2390 = vld [vmem:[%s5 + $0x388] sm:$0xff]
  %v2391 = vld [vmem:[%s5 + $0x390] sm:$0xff]
  %v2392 = vld [vmem:[%s5 + $0x398] sm:$0xff]
  %v2393 = vld [vmem:[%s5 + $0x3a0] sm:$0xff]
  %v2394 = vld [vmem:[%s5 + $0x3a8] sm:$0xff]
  %v2395 = vld [vmem:[%s5 + $0x3b0] sm:$0xff]
  %v2396 = vld [vmem:[%s5 + $0x3b8] sm:$0xff]
  %v2397 = vld [vmem:[%s5 + $0x3c0] sm:$0xff]
  %v2398 = vld [vmem:[%s5 + $0x3c8] sm:$0xff]
  %v2399 = vld [vmem:[%s5 + $0x3d0] sm:$0xff]
  %v2400 = vld [vmem:[%s5 + $0x3d8] sm:$0xff]
  %v2401 = vld [vmem:[%s5 + $0x3e0] sm:$0xff]
  %v2402 = vld [vmem:[%s5 + $0x3e8] sm:$0xff]
  %v2403 = vld [vmem:[%s5 + $0x3f0] sm:$0xff]
  %v2404 = vld [vmem:[%s5 + $0x3f8] sm:$0xff]
  %v2405 = vld [vmem:[%s6] sm:$0xf]
  %v2407 = vperm.slane %v2405, 0
  %v2408 = vperm.slane %v2405, 1
  %v2409 = vperm.slane %v2405, 2
  %v2410 = vperm.slane %v2405, 3
  %v2543 = vunpack.c.l.b16 %v2277
  %v2544 = vunpack.c.h.b16 %v2277
  %v2545 = vunpack.c.l.b16 %v2278
  %v2546 = vunpack.c.h.b16 %v2278
  %v2547 = vunpack.c.l.b16 %v2279
  %v2548 = vunpack.c.h.b16 %v2279
  %v2549 = vunpack.c.l.b16 %v2280
  %v2550 = vunpack.c.h.b16 %v2280
  %v2551 = vunpack.c.l.b16 %v2281
  %v2552 = vunpack.c.h.b16 %v2281
  %v2553 = vunpack.c.l.b16 %v2282
  %v2554 = vunpack.c.h.b16 %v2282
  %v2555 = vunpack.c.l.b16 %v2283
  %v2556 = vunpack.c.h.b16 %v2283
  %v2557 = vunpack.c.l.b16 %v2284
  %v2558 = vunpack.c.h.b16 %v2284
  %v2559 = vunpack.c.l.b16 %v2285
  %v2560 = vunpack.c.h.b16 %v2285
  %v2561 = vunpack.c.l.b16 %v2286
  %v2562 = vunpack.c.h.b16 %v2286
  %v2563 = vunpack.c.l.b16 %v2287
  %v2564 = vunpack.c.h.b16 %v2287
  %v2565 = vunpack.c.l.b16 %v2288
  %v2566 = vunpack.c.h.b16 %v2288
  %v2567 = vunpack.c.l.b16 %v2289
  %v2568 = vunpack.c.h.b16 %v2289
  %v2569 = vunpack.c.l.b16 %v2290
  %v2570 = vunpack.c.h.b16 %v2290
  %v2571 = vunpack.c.l.b16 %v2291
  %v2572 = vunpack.c.h.b16 %v2291
  %v2573 = vunpack.c.l.b16 %v2292
  %v2574 = vunpack.c.h.b16 %v2292
  %v2575 = vunpack.c.l.b16 %v2293
  %v2576 = vunpack.c.h.b16 %v2293
  %v2577 = vunpack.c.l.b16 %v2294
  %v2578 = vunpack.c.h.b16 %v2294
  %v2579 = vunpack.c.l.b16 %v2295
  %v2580 = vunpack.c.h.b16 %v2295
  %v2581 = vunpack.c.l.b16 %v2296
  %v2582 = vunpack.c.h.b16 %v2296
  %v2583 = vunpack.c.l.b16 %v2297
  %v2584 = vunpack.c.h.b16 %v2297
  %v2585 = vunpack.c.l.b16 %v2298
  %v2586 = vunpack.c.h.b16 %v2298
  %v2587 = vunpack.c.l.b16 %v2299
  %v2588 = vunpack.c.h.b16 %v2299
  %v2589 = vunpack.c.l.b16 %v2300
  %v2590 = vunpack.c.h.b16 %v2300
  %v2591 = vunpack.c.l.b16 %v2301
  %v2592 = vunpack.c.h.b16 %v2301
  %v2593 = vunpack.c.l.b16 %v2302
  %v2594 = vunpack.c.h.b16 %v2302
  %v2595 = vunpack.c.l.b16 %v2303
  %v2596 = vunpack.c.h.b16 %v2303
  %v2597 = vunpack.c.l.b16 %v2304
  %v2598 = vunpack.c.h.b16 %v2304
  %v2599 = vunpack.c.l.b16 %v2305
  %v2600 = vunpack.c.h.b16 %v2305
  %v2601 = vunpack.c.l.b16 %v2306
  %v2602 = vunpack.c.h.b16 %v2306
  %v2603 = vunpack.c.l.b16 %v2307
  %v2604 = vunpack.c.h.b16 %v2307
  %v2605 = vunpack.c.l.b16 %v2308
  %v2606 = vunpack.c.h.b16 %v2308
  %v2607 = vunpack.c.l.b16 %v2309
  %v2608 = vunpack.c.h.b16 %v2309
  %v2609 = vunpack.c.l.b16 %v2310
  %v2610 = vunpack.c.h.b16 %v2310
  %v2611 = vunpack.c.l.b16 %v2311
  %v2612 = vunpack.c.h.b16 %v2311
  %v2613 = vunpack.c.l.b16 %v2312
  %v2614 = vunpack.c.h.b16 %v2312
  %v2615 = vunpack.c.l.b16 %v2313
  %v2616 = vunpack.c.h.b16 %v2313
  %v2617 = vunpack.c.l.b16 %v2314
  %v2618 = vunpack.c.h.b16 %v2314
  %v2619 = vunpack.c.l.b16 %v2315
  %v2620 = vunpack.c.h.b16 %v2315
  %v2621 = vunpack.c.l.b16 %v2316
  %v2622 = vunpack.c.h.b16 %v2316
  %v2623 = vunpack.c.l.b16 %v2317
  %v2624 = vunpack.c.h.b16 %v2317
  %v2625 = vunpack.c.l.b16 %v2318
  %v2626 = vunpack.c.h.b16 %v2318
  %v2627 = vunpack.c.l.b16 %v2319
  %v2628 = vunpack.c.h.b16 %v2319
  %v2629 = vunpack.c.l.b16 %v2320
  %v2630 = vunpack.c.h.b16 %v2320
  %v2631 = vunpack.c.l.b16 %v2321
  %v2632 = vunpack.c.h.b16 %v2321
  %v2633 = vunpack.c.l.b16 %v2322
  %v2634 = vunpack.c.h.b16 %v2322
  %v2635 = vunpack.c.l.b16 %v2323
  %v2636 = vunpack.c.h.b16 %v2323
  %v2637 = vunpack.c.l.b16 %v2324
  %v2638 = vunpack.c.h.b16 %v2324
  %v2639 = vunpack.c.l.b16 %v2325
  %v2640 = vunpack.c.h.b16 %v2325
  %v2641 = vunpack.c.l.b16 %v2326
  %v2642 = vunpack.c.h.b16 %v2326
  %v2643 = vunpack.c.l.b16 %v2327
  %v2644 = vunpack.c.h.b16 %v2327
  %v2645 = vunpack.c.l.b16 %v2328
  %v2646 = vunpack.c.h.b16 %v2328
  %v2647 = vunpack.c.l.b16 %v2329
  %v2648 = vunpack.c.h.b16 %v2329
  %v2649 = vunpack.c.l.b16 %v2330
  %v2650 = vunpack.c.h.b16 %v2330
  %v2651 = vunpack.c.l.b16 %v2331
  %v2652 = vunpack.c.h.b16 %v2331
  %v2653 = vunpack.c.l.b16 %v2332
  %v2654 = vunpack.c.h.b16 %v2332
  %v2655 = vunpack.c.l.b16 %v2333
  %v2656 = vunpack.c.h.b16 %v2333
  %v2657 = vunpack.c.l.b16 %v2334
  %v2658 = vunpack.c.h.b16 %v2334
  %v2659 = vunpack.c.l.b16 %v2335
  %v2660 = vunpack.c.h.b16 %v2335
  %v2661 = vunpack.c.l.b16 %v2336
  %v2662 = vunpack.c.h.b16 %v2336
  %v2663 = vunpack.c.l.b16 %v2337
  %v2664 = vunpack.c.h.b16 %v2337
  %v2665 = vunpack.c.l.b16 %v2338
  %v2666 = vunpack.c.h.b16 %v2338
  %v2667 = vunpack.c.l.b16 %v2339
  %v2668 = vunpack.c.h.b16 %v2339
  %v2669 = vunpack.c.l.b16 %v2340
  %v2670 = vunpack.c.h.b16 %v2340
  %v2671 = vunpack.c.l.b16 %v2341
  %v2672 = vunpack.c.h.b16 %v2341
  %v2673 = vunpack.c.l.b16 %v2342
  %v2674 = vunpack.c.h.b16 %v2342
  %v2675 = vunpack.c.l.b16 %v2343
  %v2676 = vunpack.c.h.b16 %v2343
  %v2677 = vunpack.c.l.b16 %v2344
  %v2678 = vunpack.c.h.b16 %v2344
  %v2679 = vunpack.c.l.b16 %v2345
  %v2680 = vunpack.c.h.b16 %v2345
  %v2681 = vunpack.c.l.b16 %v2346
  %v2682 = vunpack.c.h.b16 %v2346
  %v2683 = vunpack.c.l.b16 %v2347
  %v2684 = vunpack.c.h.b16 %v2347
  %v2685 = vunpack.c.l.b16 %v2348
  %v2686 = vunpack.c.h.b16 %v2348
  %v2687 = vunpack.c.l.b16 %v2349
  %v2688 = vunpack.c.h.b16 %v2349
  %v2689 = vunpack.c.l.b16 %v2350
  %v2690 = vunpack.c.h.b16 %v2350
  %v2691 = vunpack.c.l.b16 %v2351
  %v2692 = vunpack.c.h.b16 %v2351
  %v2693 = vunpack.c.l.b16 %v2352
  %v2694 = vunpack.c.h.b16 %v2352
  %v2695 = vunpack.c.l.b16 %v2353
  %v2696 = vunpack.c.h.b16 %v2353
  %v2697 = vunpack.c.l.b16 %v2354
  %v2698 = vunpack.c.h.b16 %v2354
  %v2699 = vunpack.c.l.b16 %v2355
  %v2700 = vunpack.c.h.b16 %v2355
  %v2701 = vunpack.c.l.b16 %v2356
  %v2702 = vunpack.c.h.b16 %v2356
  %v2703 = vunpack.c.l.b16 %v2357
  %v2704 = vunpack.c.h.b16 %v2357
  %v2705 = vunpack.c.l.b16 %v2358
  %v2706 = vunpack.c.h.b16 %v2358
  %v2707 = vunpack.c.l.b16 %v2359
  %v2708 = vunpack.c.h.b16 %v2359
  %v2709 = vunpack.c.l.b16 %v2360
  %v2710 = vunpack.c.h.b16 %v2360
  %v2711 = vunpack.c.l.b16 %v2361
  %v2712 = vunpack.c.h.b16 %v2361
  %v2713 = vunpack.c.l.b16 %v2362
  %v2714 = vunpack.c.h.b16 %v2362
  %v2715 = vunpack.c.l.b16 %v2363
  %v2716 = vunpack.c.h.b16 %v2363
  %v2717 = vunpack.c.l.b16 %v2364
  %v2718 = vunpack.c.h.b16 %v2364
  %v2719 = vunpack.c.l.b16 %v2365
  %v2720 = vunpack.c.h.b16 %v2365
  %v2721 = vunpack.c.l.b16 %v2366
  %v2722 = vunpack.c.h.b16 %v2366
  %v2723 = vunpack.c.l.b16 %v2367
  %v2724 = vunpack.c.h.b16 %v2367
  %v2725 = vunpack.c.l.b16 %v2368
  %v2726 = vunpack.c.h.b16 %v2368
  %v2727 = vunpack.c.l.b16 %v2369
  %v2728 = vunpack.c.h.b16 %v2369
  %v2729 = vunpack.c.l.b16 %v2370
  %v2730 = vunpack.c.h.b16 %v2370
  %v2731 = vunpack.c.l.b16 %v2371
  %v2732 = vunpack.c.h.b16 %v2371
  %v2733 = vunpack.c.l.b16 %v2372
  %v2734 = vunpack.c.h.b16 %v2372
  %v2735 = vunpack.c.l.b16 %v2373
  %v2736 = vunpack.c.h.b16 %v2373
  %v2737 = vunpack.c.l.b16 %v2374
  %v2738 = vunpack.c.h.b16 %v2374
  %v2739 = vunpack.c.l.b16 %v2375
  %v2740 = vunpack.c.h.b16 %v2375
  %v2741 = vunpack.c.l.b16 %v2376
  %v2742 = vunpack.c.h.b16 %v2376
  %v2743 = vunpack.c.l.b16 %v2377
  %v2744 = vunpack.c.h.b16 %v2377
  %v2745 = vunpack.c.l.b16 %v2378
  %v2746 = vunpack.c.h.b16 %v2378
  %v2747 = vunpack.c.l.b16 %v2379
  %v2748 = vunpack.c.h.b16 %v2379
  %v2749 = vunpack.c.l.b16 %v2380
  %v2750 = vunpack.c.h.b16 %v2380
  %v2751 = vunpack.c.l.b16 %v2381
  %v2752 = vunpack.c.h.b16 %v2381
  %v2753 = vunpack.c.l.b16 %v2382
  %v2754 = vunpack.c.h.b16 %v2382
  %v2755 = vunpack.c.l.b16 %v2383
  %v2756 = vunpack.c.h.b16 %v2383
  %v2757 = vunpack.c.l.b16 %v2384
  %v2758 = vunpack.c.h.b16 %v2384
  %v2759 = vunpack.c.l.b16 %v2385
  %v2760 = vunpack.c.h.b16 %v2385
  %v2761 = vunpack.c.l.b16 %v2386
  %v2762 = vunpack.c.h.b16 %v2386
  %v2763 = vunpack.c.l.b16 %v2387
  %v2764 = vunpack.c.h.b16 %v2387
  %v2765 = vunpack.c.l.b16 %v2388
  %v2766 = vunpack.c.h.b16 %v2388
  %v2767 = vunpack.c.l.b16 %v2389
  %v2768 = vunpack.c.h.b16 %v2389
  %v2769 = vunpack.c.l.b16 %v2390
  %v2770 = vunpack.c.h.b16 %v2390
  %v2771 = vunpack.c.l.b16 %v2391
  %v2772 = vunpack.c.h.b16 %v2391
  %v2773 = vunpack.c.l.b16 %v2392
  %v2774 = vunpack.c.h.b16 %v2392
  %v2775 = vunpack.c.l.b16 %v2393
  %v2776 = vunpack.c.h.b16 %v2393
  %v2777 = vunpack.c.l.b16 %v2394
  %v2778 = vunpack.c.h.b16 %v2394
  %v2779 = vunpack.c.l.b16 %v2395
  %v2780 = vunpack.c.h.b16 %v2395
  %v2781 = vunpack.c.l.b16 %v2396
  %v2782 = vunpack.c.h.b16 %v2396
  %v2783 = vunpack.c.l.b16 %v2397
  %v2784 = vunpack.c.h.b16 %v2397
  %v2785 = vunpack.c.l.b16 %v2398
  %v2786 = vunpack.c.h.b16 %v2398
  %v2787 = vunpack.c.l.b16 %v2399
  %v2788 = vunpack.c.h.b16 %v2399
  %v2789 = vunpack.c.l.b16 %v2400
  %v2790 = vunpack.c.h.b16 %v2400
  %v2791 = vunpack.c.l.b16 %v2401
  %v2792 = vunpack.c.h.b16 %v2401
  %v2793 = vunpack.c.l.b16 %v2402
  %v2794 = vunpack.c.h.b16 %v2402
  %v2795 = vunpack.c.l.b16 %v2403
  %v2796 = vunpack.c.h.b16 %v2403
  %v2797 = vunpack.c.l.b16 %v2404
  %v2798 = vunpack.c.h.b16 %v2404
  %v2799 = vpack.c.b16 %v2547, %v2543
  %v2800 = vpack.c.b16 %v2548, %v2544
  %v2801 = vpack.c.b16 %v2549, %v2545
  %v2802 = vpack.c.b16 %v2550, %v2546
  %v2803 = vpack.c.b16 %v2555, %v2551
  %v2804 = vpack.c.b16 %v2556, %v2552
  %v2805 = vpack.c.b16 %v2557, %v2553
  %v2806 = vpack.c.b16 %v2558, %v2554
  %v2807 = vpack.c.b16 %v2563, %v2559
  %v2808 = vpack.c.b16 %v2564, %v2560
  %v2809 = vpack.c.b16 %v2565, %v2561
  %v2810 = vpack.c.b16 %v2566, %v2562
  %v2811 = vpack.c.b16 %v2571, %v2567
  %v2812 = vpack.c.b16 %v2572, %v2568
  %v2813 = vpack.c.b16 %v2573, %v2569
  %v2814 = vpack.c.b16 %v2574, %v2570
  %v2815 = vpack.c.b16 %v2579, %v2575
  %v2816 = vpack.c.b16 %v2580, %v2576
  %v2817 = vpack.c.b16 %v2581, %v2577
  %v2818 = vpack.c.b16 %v2582, %v2578
  %v2819 = vpack.c.b16 %v2587, %v2583
  %v2820 = vpack.c.b16 %v2588, %v2584
  %v2821 = vpack.c.b16 %v2589, %v2585
  %v2822 = vpack.c.b16 %v2590, %v2586
  %v2823 = vpack.c.b16 %v2595, %v2591
  %v2824 = vpack.c.b16 %v2596, %v2592
  %v2825 = vpack.c.b16 %v2597, %v2593
  %v2826 = vpack.c.b16 %v2598, %v2594
  %v2827 = vpack.c.b16 %v2603, %v2599
  %v2828 = vpack.c.b16 %v2604, %v2600
  %v2829 = vpack.c.b16 %v2605, %v2601
  %v2830 = vpack.c.b16 %v2606, %v2602
  %v2831 = vpack.c.b16 %v2611, %v2607
  %v2832 = vpack.c.b16 %v2612, %v2608
  %v2833 = vpack.c.b16 %v2613, %v2609
  %v2834 = vpack.c.b16 %v2614, %v2610
  %v2835 = vpack.c.b16 %v2619, %v2615
  %v2836 = vpack.c.b16 %v2620, %v2616
  %v2837 = vpack.c.b16 %v2621, %v2617
  %v2838 = vpack.c.b16 %v2622, %v2618
  %v2839 = vpack.c.b16 %v2627, %v2623
  %v2840 = vpack.c.b16 %v2628, %v2624
  %v2841 = vpack.c.b16 %v2629, %v2625
  %v2842 = vpack.c.b16 %v2630, %v2626
  %v2843 = vpack.c.b16 %v2635, %v2631
  %v2844 = vpack.c.b16 %v2636, %v2632
  %v2845 = vpack.c.b16 %v2637, %v2633
  %v2846 = vpack.c.b16 %v2638, %v2634
  %v2847 = vpack.c.b16 %v2643, %v2639
  %v2848 = vpack.c.b16 %v2644, %v2640
  %v2849 = vpack.c.b16 %v2645, %v2641
  %v2850 = vpack.c.b16 %v2646, %v2642
  %v2851 = vpack.c.b16 %v2651, %v2647
  %v2852 = vpack.c.b16 %v2652, %v2648
  %v2853 = vpack.c.b16 %v2653, %v2649
  %v2854 = vpack.c.b16 %v2654, %v2650
  %v2855 = vpack.c.b16 %v2659, %v2655
  %v2856 = vpack.c.b16 %v2660, %v2656
  %v2857 = vpack.c.b16 %v2661, %v2657
  %v2858 = vpack.c.b16 %v2662, %v2658
  %v2859 = vpack.c.b16 %v2667, %v2663
  %v2860 = vpack.c.b16 %v2668, %v2664
  %v2861 = vpack.c.b16 %v2669, %v2665
  %v2862 = vpack.c.b16 %v2670, %v2666
  %v2863 = vpack.c.b16 %v2675, %v2671
  %v2864 = vpack.c.b16 %v2676, %v2672
  %v2865 = vpack.c.b16 %v2677, %v2673
  %v2866 = vpack.c.b16 %v2678, %v2674
  %v2867 = vpack.c.b16 %v2683, %v2679
  %v2868 = vpack.c.b16 %v2684, %v2680
  %v2869 = vpack.c.b16 %v2685, %v2681
  %v2870 = vpack.c.b16 %v2686, %v2682
  %v2871 = vpack.c.b16 %v2691, %v2687
  %v2872 = vpack.c.b16 %v2692, %v2688
  %v2873 = vpack.c.b16 %v2693, %v2689
  %v2874 = vpack.c.b16 %v2694, %v2690
  %v2875 = vpack.c.b16 %v2699, %v2695
  %v2876 = vpack.c.b16 %v2700, %v2696
  %v2877 = vpack.c.b16 %v2701, %v2697
  %v2878 = vpack.c.b16 %v2702, %v2698
  %v2879 = vpack.c.b16 %v2707, %v2703
  %v2880 = vpack.c.b16 %v2708, %v2704
  %v2881 = vpack.c.b16 %v2709, %v2705
  %v2882 = vpack.c.b16 %v2710, %v2706
  %v2883 = vpack.c.b16 %v2715, %v2711
  %v2884 = vpack.c.b16 %v2716, %v2712
  %v2885 = vpack.c.b16 %v2717, %v2713
  %v2886 = vpack.c.b16 %v2718, %v2714
  %v2887 = vpack.c.b16 %v2723, %v2719
  %v2888 = vpack.c.b16 %v2724, %v2720
  %v2889 = vpack.c.b16 %v2725, %v2721
  %v2890 = vpack.c.b16 %v2726, %v2722
  %v2891 = vpack.c.b16 %v2731, %v2727
  %v2892 = vpack.c.b16 %v2732, %v2728
  %v2893 = vpack.c.b16 %v2733, %v2729
  %v2894 = vpack.c.b16 %v2734, %v2730
  %v2895 = vpack.c.b16 %v2739, %v2735
  %v2896 = vpack.c.b16 %v2740, %v2736
  %v2897 = vpack.c.b16 %v2741, %v2737
  %v2898 = vpack.c.b16 %v2742, %v2738
  %v2899 = vpack.c.b16 %v2747, %v2743
  %v2900 = vpack.c.b16 %v2748, %v2744
  %v2901 = vpack.c.b16 %v2749, %v2745
  %v2902 = vpack.c.b16 %v2750, %v2746
  %v2903 = vpack.c.b16 %v2755, %v2751
  %v2904 = vpack.c.b16 %v2756, %v2752
  %v2905 = vpack.c.b16 %v2757, %v2753
  %v2906 = vpack.c.b16 %v2758, %v2754
  %v2907 = vpack.c.b16 %v2763, %v2759
  %v2908 = vpack.c.b16 %v2764, %v2760
  %v2909 = vpack.c.b16 %v2765, %v2761
  %v2910 = vpack.c.b16 %v2766, %v2762
  %v2911 = vpack.c.b16 %v2771, %v2767
  %v2912 = vpack.c.b16 %v2772, %v2768
  %v2913 = vpack.c.b16 %v2773, %v2769
  %v2914 = vpack.c.b16 %v2774, %v2770
  %v2915 = vpack.c.b16 %v2779, %v2775
  %v2916 = vpack.c.b16 %v2780, %v2776
  %v2917 = vpack.c.b16 %v2781, %v2777
  %v2918 = vpack.c.b16 %v2782, %v2778
  %v2919 = vpack.c.b16 %v2787, %v2783
  %v2920 = vpack.c.b16 %v2788, %v2784
  %v2921 = vpack.c.b16 %v2789, %v2785
  %v2922 = vpack.c.b16 %v2790, %v2786
  %v2923 = vpack.c.b16 %v2795, %v2791
  %v2924 = vpack.c.b16 %v2796, %v2792
  %v2925 = vpack.c.b16 %v2797, %v2793
  %v2926 = vpack.c.b16 %v2798, %v2794
  %3055 = vmatpush.bf16.msra.mxu0 %v2827
  %3056 = vmatpush.bf16.msra.mxu0 %v2823
  %3057 = vmatpush.bf16.msra.mxu0 %v2819
  %3058 = vmatpush.bf16.msra.mxu0 %v2815
  %3059 = vmatpush.bf16.msra.mxu0 %v2811
  %3060 = vmatpush.bf16.msra.mxu0 %v2807
  %3061 = vmatpush.bf16.msra.mxu0 %v2803
  %3062 = vmatpush.bf16.msra.mxu0 %v2799
  %3063 = vmatmul.bf16.gmra.mxu0 %v2273
  %v3064 = vpop.f32.mrf.mxu0
  %v3065 = vadd.f32 %v2407, %v3064
  %v3066 = vpop.f32.mrf.mxu0
  %3067 = vdwg.mxu0
  %3068 = vmatpush.bf16.msra.mxu0 %v2859
  %3069 = vmatpush.bf16.msra.mxu0 %v2855
  %3070 = vmatpush.bf16.msra.mxu0 %v2851
  %3071 = vmatpush.bf16.msra.mxu0 %v2847
  %3072 = vmatpush.bf16.msra.mxu0 %v2843
  %3073 = vmatpush.bf16.msra.mxu0 %v2839
  %3074 = vmatpush.bf16.msra.mxu0 %v2835
  %3075 = vmatpush.bf16.msra.mxu0 %v2831
  %3076 = vmatmul.bf16.gmra.mxu0 %v2274
  %v3077 = vpop.f32.mrf.mxu0
  %v3078 = vadd.f32 %v3065, %v3077
  %v3079 = vpop.f32.mrf.mxu0
  %3080 = vdwg.mxu0
  %3081 = vmatpush.bf16.msra.mxu0 %v2891
  %3082 = vmatpush.bf16.msra.mxu0 %v2887
  %3083 = vmatpush.bf16.msra.mxu0 %v2883
  %3084 = vmatpush.bf16.msra.mxu0 %v2879
  %3085 = vmatpush.bf16.msra.mxu0 %v2875
  %3086 = vmatpush.bf16.msra.mxu0 %v2871
  %3087 = vmatpush.bf16.msra.mxu0 %v2867
  %3088 = vmatpush.bf16.msra.mxu0 %v2863
  %3089 = vmatmul.bf16.gmra.mxu0 %v2275
  %v3090 = vpop.f32.mrf.mxu0
  %v3091 = vadd.f32 %v3078, %v3090
  %v3092 = vpop.f32.mrf.mxu0
  %3093 = vdwg.mxu0
  %3094 = vmatpush.bf16.msra.mxu0 %v2923
  %3095 = vmatpush.bf16.msra.mxu0 %v2919
  %3096 = vmatpush.bf16.msra.mxu0 %v2915
  %3097 = vmatpush.bf16.msra.mxu0 %v2911
  %3098 = vmatpush.bf16.msra.mxu0 %v2907
  %3099 = vmatpush.bf16.msra.mxu0 %v2903
  %3100 = vmatpush.bf16.msra.mxu0 %v2899
  %3101 = vmatpush.bf16.msra.mxu0 %v2895
  %3102 = vmatmul.bf16.gmra.mxu0 %v2276
  %v3103 = vpop.f32.mrf.mxu0
  %v3104 = vadd.f32 %v3091, %v3103
  %v3105 = vpop.f32.mrf.mxu0
  %3106 = vdwg.mxu0
  %3107 = vmatpush.bf16.msra.mxu0 %v2828
  %3108 = vmatpush.bf16.msra.mxu0 %v2824
  %3109 = vmatpush.bf16.msra.mxu0 %v2820
  %3110 = vmatpush.bf16.msra.mxu0 %v2816
  %3111 = vmatpush.bf16.msra.mxu0 %v2812
  %3112 = vmatpush.bf16.msra.mxu0 %v2808
  %3113 = vmatpush.bf16.msra.mxu0 %v2804
  %3114 = vmatpush.bf16.msra.mxu0 %v2800
  %3115 = vmatmul.bf16.gmra.mxu0 %v2273
  %v3116 = vpop.f32.mrf.mxu0
  %v3117 = vadd.f32 %v2408, %v3116
  %v3118 = vpop.f32.mrf.mxu0
  %3119 = vdwg.mxu0
  %3120 = vmatpush.bf16.msra.mxu0 %v2860
  %3121 = vmatpush.bf16.msra.mxu0 %v2856
  %3122 = vmatpush.bf16.msra.mxu0 %v2852
  %3123 = vmatpush.bf16.msra.mxu0 %v2848
  %3124 = vmatpush.bf16.msra.mxu0 %v2844
  %3125 = vmatpush.bf16.msra.mxu0 %v2840
  %3126 = vmatpush.bf16.msra.mxu0 %v2836
  %3127 = vmatpush.bf16.msra.mxu0 %v2832
  %3128 = vmatmul.bf16.gmra.mxu0 %v2274
  %v3129 = vpop.f32.mrf.mxu0
  %v3130 = vadd.f32 %v3117, %v3129
  %v3131 = vpop.f32.mrf.mxu0
  %3132 = vdwg.mxu0
  %3133 = vmatpush.bf16.msra.mxu0 %v2892
  %3134 = vmatpush.bf16.msra.mxu0 %v2888
  %3135 = vmatpush.bf16.msra.mxu0 %v2884
  %3136 = vmatpush.bf16.msra.mxu0 %v2880
  %3137 = vmatpush.bf16.msra.mxu0 %v2876
  %3138 = vmatpush.bf16.msra.mxu0 %v2872
  %3139 = vmatpush.bf16.msra.mxu0 %v2868
  %3140 = vmatpush.bf16.msra.mxu0 %v2864
  %3141 = vmatmul.bf16.gmra.mxu0 %v2275
  %v3142 = vpop.f32.mrf.mxu0
  %v3143 = vadd.f32 %v3130, %v3142
  %v3144 = vpop.f32.mrf.mxu0
  %3145 = vdwg.mxu0
  %3146 = vmatpush.bf16.msra.mxu0 %v2924
  %3147 = vmatpush.bf16.msra.mxu0 %v2920
  %3148 = vmatpush.bf16.msra.mxu0 %v2916
  %3149 = vmatpush.bf16.msra.mxu0 %v2912
  %3150 = vmatpush.bf16.msra.mxu0 %v2908
  %3151 = vmatpush.bf16.msra.mxu0 %v2904
  %3152 = vmatpush.bf16.msra.mxu0 %v2900
  %3153 = vmatpush.bf16.msra.mxu0 %v2896
  %3154 = vmatmul.bf16.gmra.mxu0 %v2276
  %v3155 = vpop.f32.mrf.mxu0
  %v3156 = vadd.f32 %v3143, %v3155
  %v3157 = vpop.f32.mrf.mxu0
  %3158 = vdwg.mxu0
  %3159 = vmatpush.bf16.msra.mxu0 %v2829
  %3160 = vmatpush.bf16.msra.mxu0 %v2825
  %3161 = vmatpush.bf16.msra.mxu0 %v2821
  %3162 = vmatpush.bf16.msra.mxu0 %v2817
  %3163 = vmatpush.bf16.msra.mxu0 %v2813
  %3164 = vmatpush.bf16.msra.mxu0 %v2809
  %3165 = vmatpush.bf16.msra.mxu0 %v2805
  %3166 = vmatpush.bf16.msra.mxu0 %v2801
  %3167 = vmatmul.bf16.gmra.mxu0 %v2273
  %v3168 = vpop.f32.mrf.mxu0
  %v3169 = vadd.f32 %v2409, %v3168
  %v3170 = vpop.f32.mrf.mxu0
  %3171 = vdwg.mxu0
  %3172 = vmatpush.bf16.msra.mxu0 %v2861
  %3173 = vmatpush.bf16.msra.mxu0 %v2857
  %3174 = vmatpush.bf16.msra.mxu0 %v2853
  %3175 = vmatpush.bf16.msra.mxu0 %v2849
  %3176 = vmatpush.bf16.msra.mxu0 %v2845
  %3177 = vmatpush.bf16.msra.mxu0 %v2841
  %3178 = vmatpush.bf16.msra.mxu0 %v2837
  %3179 = vmatpush.bf16.msra.mxu0 %v2833
  %3180 = vmatmul.bf16.gmra.mxu0 %v2274
  %v3181 = vpop.f32.mrf.mxu0
  %v3182 = vadd.f32 %v3169, %v3181
  %v3183 = vpop.f32.mrf.mxu0
  %3184 = vdwg.mxu0
  %3185 = vmatpush.bf16.msra.mxu0 %v2893
  %3186 = vmatpush.bf16.msra.mxu0 %v2889
  %3187 = vmatpush.bf16.msra.mxu0 %v2885
  %3188 = vmatpush.bf16.msra.mxu0 %v2881
  %3189 = vmatpush.bf16.msra.mxu0 %v2877
  %3190 = vmatpush.bf16.msra.mxu0 %v2873
  %3191 = vmatpush.bf16.msra.mxu0 %v2869
  %3192 = vmatpush.bf16.msra.mxu0 %v2865
  %3193 = vmatmul.bf16.gmra.mxu0 %v2275
  %v3194 = vpop.f32.mrf.mxu0
  %v3195 = vadd.f32 %v3182, %v3194
  %v3196 = vpop.f32.mrf.mxu0
  %3197 = vdwg.mxu0
  %3198 = vmatpush.bf16.msra.mxu0 %v2925
  %3199 = vmatpush.bf16.msra.mxu0 %v2921
  %3200 = vmatpush.bf16.msra.mxu0 %v2917
  %3201 = vmatpush.bf16.msra.mxu0 %v2913
  %3202 = vmatpush.bf16.msra.mxu0 %v2909
  %3203 = vmatpush.bf16.msra.mxu0 %v2905
  %3204 = vmatpush.bf16.msra.mxu0 %v2901
  %3205 = vmatpush.bf16.msra.mxu0 %v2897
  %3206 = vmatmul.bf16.gmra.mxu0 %v2276
  %v3207 = vpop.f32.mrf.mxu0
  %v3208 = vadd.f32 %v3195, %v3207
  %v3209 = vpop.f32.mrf.mxu0
  %3210 = vdwg.mxu0
  %3211 = vmatpush.bf16.msra.mxu0 %v2830
  %3212 = vmatpush.bf16.msra.mxu0 %v2826
  %3213 = vmatpush.bf16.msra.mxu0 %v2822
  %3214 = vmatpush.bf16.msra.mxu0 %v2818
  %3215 = vmatpush.bf16.msra.mxu0 %v2814
  %3216 = vmatpush.bf16.msra.mxu0 %v2810
  %3217 = vmatpush.bf16.msra.mxu0 %v2806
  %3218 = vmatpush.bf16.msra.mxu0 %v2802
  %3219 = vmatmul.bf16.gmra.mxu0 %v2273
  %v3220 = vpop.f32.mrf.mxu0
  %v3221 = vadd.f32 %v2410, %v3220
  %v3222 = vpop.f32.mrf.mxu0
  %3223 = vdwg.mxu0
  %3224 = vmatpush.bf16.msra.mxu0 %v2862
  %3225 = vmatpush.bf16.msra.mxu0 %v2858
  %3226 = vmatpush.bf16.msra.mxu0 %v2854
  %3227 = vmatpush.bf16.msra.mxu0 %v2850
  %3228 = vmatpush.bf16.msra.mxu0 %v2846
  %3229 = vmatpush.bf16.msra.mxu0 %v2842
  %3230 = vmatpush.bf16.msra.mxu0 %v2838
  %3231 = vmatpush.bf16.msra.mxu0 %v2834
  %3232 = vmatmul.bf16.gmra.mxu0 %v2274
  %v3233 = vpop.f32.mrf.mxu0
  %v3234 = vadd.f32 %v3221, %v3233
  %v3235 = vpop.f32.mrf.mxu0
  %3236 = vdwg.mxu0
  %3237 = vmatpush.bf16.msra.mxu0 %v2894
  %3238 = vmatpush.bf16.msra.mxu0 %v2890
  %3239 = vmatpush.bf16.msra.mxu0 %v2886
  %3240 = vmatpush.bf16.msra.mxu0 %v2882
  %3241 = vmatpush.bf16.msra.mxu0 %v2878
  %3242 = vmatpush.bf16.msra.mxu0 %v2874
  %3243 = vmatpush.bf16.msra.mxu0 %v2870
  %3244 = vmatpush.bf16.msra.mxu0 %v2866
  %3245 = vmatmul.bf16.gmra.mxu0 %v2275
  %v3246 = vpop.f32.mrf.mxu0
  %v3247 = vadd.f32 %v3234, %v3246
  %v3248 = vpop.f32.mrf.mxu0
  %3249 = vdwg.mxu0
  %3250 = vmatpush.bf16.msra.mxu0 %v2926
  %3251 = vmatpush.bf16.msra.mxu0 %v2922
  %3252 = vmatpush.bf16.msra.mxu0 %v2918
  %3253 = vmatpush.bf16.msra.mxu0 %v2914
  %3254 = vmatpush.bf16.msra.mxu0 %v2910
  %3255 = vmatpush.bf16.msra.mxu0 %v2906
  %3256 = vmatpush.bf16.msra.mxu0 %v2902
  %3257 = vmatpush.bf16.msra.mxu0 %v2898
  %3258 = vmatmul.bf16.gmra.mxu0 %v2276
  %v3259 = vpop.f32.mrf.mxu0
  %v3260 = vadd.f32 %v3247, %v3259
  %v3261 = vpop.f32.mrf.mxu0
  %3262 = vdwg.mxu0
  %v3263 = vmax.f32 %v3104, 0.0
  %v3264 = vmax.f32 %v3156, 0.0
  %v3265 = vmax.f32 %v3208, 0.0
  %v3266 = vmax.f32 %v3260, 0.0
  %v3267 = vpack.c.bf16 %v3263, %v3263
  %v3268 = vpack.c.bf16 %v3264, %v3264
  %v3269 = vpack.c.bf16 %v3265, %v3265
  %v3270 = vpack.c.bf16 %v3266, %v3266
  %v3271 = vld [vmem:[%s7] sm:$0xff]
  %v3272 = vld [vmem:[%s7 + $0x8] sm:$0xf]
  %v3273 = vld [vmem:[%s7 + $0xc] sm:$0xff]
  %v3274 = vld [vmem:[%s7 + $0x14] sm:$0xf]
  %v3275 = vld [vmem:[%s7 + $0x18] sm:$0xff]
  %v3276 = vld [vmem:[%s7 + $0x20] sm:$0xf]
  %v3277 = vld [vmem:[%s7 + $0x24] sm:$0xff]
  %v3278 = vld [vmem:[%s7 + $0x2c] sm:$0xf]
  %v3279 = vld [vmem:[%s7 + $0x30] sm:$0xff]
  %v3280 = vld [vmem:[%s7 + $0x38] sm:$0xf]
  %v3281 = vld [vmem:[%s7 + $0x3c] sm:$0xff]
  %v3282 = vld [vmem:[%s7 + $0x44] sm:$0xf]
  %v3283 = vld [vmem:[%s7 + $0x48] sm:$0xff]
  %v3284 = vld [vmem:[%s7 + $0x50] sm:$0xf]
  %v3285 = vld [vmem:[%s7 + $0x54] sm:$0xff]
  %v3286 = vld [vmem:[%s7 + $0x5c] sm:$0xf]
  %v3287 = vld [vmem:[%s7 + $0x60] sm:$0xff]
  %v3288 = vld [vmem:[%s7 + $0x68] sm:$0xf]
  %v3289 = vld [vmem:[%s7 + $0x6c] sm:$0xff]
  %v3290 = vld [vmem:[%s7 + $0x74] sm:$0xf]
  %v3291 = vld [vmem:[%s7 + $0x78] sm:$0xff]
  %v3292 = vld [vmem:[%s7 + $0x80] sm:$0xf]
  %v3293 = vld [vmem:[%s7 + $0x84] sm:$0xff]
  %v3294 = vld [vmem:[%s7 + $0x8c] sm:$0xf]
  %v3295 = vld [vmem:[%s7 + $0x90] sm:$0xff]
  %v3296 = vld [vmem:[%s7 + $0x98] sm:$0xf]
  %v3297 = vld [vmem:[%s7 + $0x9c] sm:$0xff]
  %v3298 = vld [vmem:[%s7 + $0xa4] sm:$0xf]
  %v3299 = vld [vmem:[%s7 + $0xa8] sm:$0xff]
  %v3300 = vld [vmem:[%s7 + $0xb0] sm:$0xf]
  %v3301 = vld [vmem:[%s7 + $0xb4] sm:$0xff]
  %v3302 = vld [vmem:[%s7 + $0xbc] sm:$0xf]
  %v3303 = vld [vmem:[%s7 + $0xc0] sm:$0xff]
  %v3304 = vld [vmem:[%s7 + $0xc8] sm:$0xf]
  %v3305 = vld [vmem:[%s7 + $0xcc] sm:$0xff]
  %v3306 = vld [vmem:[%s7 + $0xd4] sm:$0xf]
  %v3307 = vld [vmem:[%s7 + $0xd8] sm:$0xff]
  %v3308 = vld [vmem:[%s7 + $0xe0] sm:$0xf]
  %v3309 = vld [vmem:[%s7 + $0xe4] sm:$0xff]
  %v3310 = vld [vmem:[%s7 + $0xec] sm:$0xf]
  %v3311 = vld [vmem:[%s7 + $0xf0] sm:$0xff]
  %v3312 = vld [vmem:[%s7 + $0xf8] sm:$0xf]
  %v3313 = vld [vmem:[%s7 + $0xfc] sm:$0xff]
  %v3314 = vld [vmem:[%s7 + $0x104] sm:$0xf]
  %v3315 = vld [vmem:[%s7 + $0x108] sm:$0xff]
  %v3316 = vld [vmem:[%s7 + $0x110] sm:$0xf]
  %v3317 = vld [vmem:[%s7 + $0x114] sm:$0xff]
  %v3318 = vld [vmem:[%s7 + $0x11c] sm:$0xf]
  %v3319 = vld [vmem:[%s7 + $0x120] sm:$0xff]
  %v3320 = vld [vmem:[%s7 + $0x128] sm:$0xf]
  %v3321 = vld [vmem:[%s7 + $0x12c] sm:$0xff]
  %v3322 = vld [vmem:[%s7 + $0x134] sm:$0xf]
  %v3323 = vld [vmem:[%s7 + $0x138] sm:$0xff]
  %v3324 = vld [vmem:[%s7 + $0x140] sm:$0xf]
  %v3325 = vld [vmem:[%s7 + $0x144] sm:$0xff]
  %v3326 = vld [vmem:[%s7 + $0x14c] sm:$0xf]
  %v3327 = vld [vmem:[%s7 + $0x150] sm:$0xff]
  %v3328 = vld [vmem:[%s7 + $0x158] sm:$0xf]
  %v3329 = vld [vmem:[%s7 + $0x15c] sm:$0xff]
  %v3330 = vld [vmem:[%s7 + $0x164] sm:$0xf]
  %v3331 = vld [vmem:[%s7 + $0x168] sm:$0xff]
  %v3332 = vld [vmem:[%s7 + $0x170] sm:$0xf]
  %v3333 = vld [vmem:[%s7 + $0x174] sm:$0xff]
  %v3334 = vld [vmem:[%s7 + $0x17c] sm:$0xf]
  %v3335 = vld [vmem:[%s7 + $0x180] sm:$0xff]
  %v3336 = vld [vmem:[%s7 + $0x188] sm:$0xf]
  %v3337 = vld [vmem:[%s7 + $0x18c] sm:$0xff]
  %v3338 = vld [vmem:[%s7 + $0x194] sm:$0xf]
  %v3339 = vld [vmem:[%s7 + $0x198] sm:$0xff]
  %v3340 = vld [vmem:[%s7 + $0x1a0] sm:$0xf]
  %v3341 = vld [vmem:[%s7 + $0x1a4] sm:$0xff]
  %v3342 = vld [vmem:[%s7 + $0x1ac] sm:$0xf]
  %v3343 = vld [vmem:[%s7 + $0x1b0] sm:$0xff]
  %v3344 = vld [vmem:[%s7 + $0x1b8] sm:$0xf]
  %v3345 = vld [vmem:[%s7 + $0x1bc] sm:$0xff]
  %v3346 = vld [vmem:[%s7 + $0x1c4] sm:$0xf]
  %v3347 = vld [vmem:[%s7 + $0x1c8] sm:$0xff]
  %v3348 = vld [vmem:[%s7 + $0x1d0] sm:$0xf]
  %v3349 = vld [vmem:[%s7 + $0x1d4] sm:$0xff]
  %v3350 = vld [vmem:[%s7 + $0x1dc] sm:$0xf]
  %v3351 = vld [vmem:[%s7 + $0x1e0] sm:$0xff]
  %v3352 = vld [vmem:[%s7 + $0x1e8] sm:$0xf]
  %v3353 = vld [vmem:[%s7 + $0x1ec] sm:$0xff]
  %v3354 = vld [vmem:[%s7 + $0x1f4] sm:$0xf]
  %v3355 = vld [vmem:[%s7 + $0x1f8] sm:$0xff]
  %v3356 = vld [vmem:[%s7 + $0x200] sm:$0xf]
  %v3357 = vld [vmem:[%s7 + $0x204] sm:$0xff]
  %v3358 = vld [vmem:[%s7 + $0x20c] sm:$0xf]
  %v3359 = vld [vmem:[%s7 + $0x210] sm:$0xff]
  %v3360 = vld [vmem:[%s7 + $0x218] sm:$0xf]
  %v3361 = vld [vmem:[%s7 + $0x21c] sm:$0xff]
  %v3362 = vld [vmem:[%s7 + $0x224] sm:$0xf]
  %v3363 = vld [vmem:[%s7 + $0x228] sm:$0xff]
  %v3364 = vld [vmem:[%s7 + $0x230] sm:$0xf]
  %v3365 = vld [vmem:[%s7 + $0x234] sm:$0xff]
  %v3366 = vld [vmem:[%s7 + $0x23c] sm:$0xf]
  %v3367 = vld [vmem:[%s7 + $0x240] sm:$0xff]
  %v3368 = vld [vmem:[%s7 + $0x248] sm:$0xf]
  %v3369 = vld [vmem:[%s7 + $0x24c] sm:$0xff]
  %v3370 = vld [vmem:[%s7 + $0x254] sm:$0xf]
  %v3371 = vld [vmem:[%s7 + $0x258] sm:$0xff]
  %v3372 = vld [vmem:[%s7 + $0x260] sm:$0xf]
  %v3373 = vld [vmem:[%s7 + $0x264] sm:$0xff]
  %v3374 = vld [vmem:[%s7 + $0x26c] sm:$0xf]
  %v3375 = vld [vmem:[%s7 + $0x270] sm:$0xff]
  %v3376 = vld [vmem:[%s7 + $0x278] sm:$0xf]
  %v3377 = vld [vmem:[%s7 + $0x27c] sm:$0xff]
  %v3378 = vld [vmem:[%s7 + $0x284] sm:$0xf]
  %v3379 = vld [vmem:[%s7 + $0x288] sm:$0xff]
  %v3380 = vld [vmem:[%s7 + $0x290] sm:$0xf]
  %v3381 = vld [vmem:[%s7 + $0x294] sm:$0xff]
  %v3382 = vld [vmem:[%s7 + $0x29c] sm:$0xf]
  %v3383 = vld [vmem:[%s7 + $0x2a0] sm:$0xff]
  %v3384 = vld [vmem:[%s7 + $0x2a8] sm:$0xf]
  %v3385 = vld [vmem:[%s7 + $0x2ac] sm:$0xff]
  %v3386 = vld [vmem:[%s7 + $0x2b4] sm:$0xf]
  %v3387 = vld [vmem:[%s7 + $0x2b8] sm:$0xff]
  %v3388 = vld [vmem:[%s7 + $0x2c0] sm:$0xf]
  %v3389 = vld [vmem:[%s7 + $0x2c4] sm:$0xff]
  %v3390 = vld [vmem:[%s7 + $0x2cc] sm:$0xf]
  %v3391 = vld [vmem:[%s7 + $0x2d0] sm:$0xff]
  %v3392 = vld [vmem:[%s7 + $0x2d8] sm:$0xf]
  %v3393 = vld [vmem:[%s7 + $0x2dc] sm:$0xff]
  %v3394 = vld [vmem:[%s7 + $0x2e4] sm:$0xf]
  %v3395 = vld [vmem:[%s7 + $0x2e8] sm:$0xff]
  %v3396 = vld [vmem:[%s7 + $0x2f0] sm:$0xf]
  %v3397 = vld [vmem:[%s7 + $0x2f4] sm:$0xff]
  %v3398 = vld [vmem:[%s7 + $0x2fc] sm:$0xf]
  %v3399 = vld [vmem:[%s8] sm:$0x7]
  %v3401 = vperm.slane %v3399, 0
  %v3402 = vperm.slane %v3399, 1
  %v3403 = vperm.slane %v3399, 2
  %v3535 = vunpack.c.l.b16 %v3271
  %v3536 = vunpack.c.h.b16 %v3271
  %v3537 = vunpack.c.l.b16 %v3272
  %v3538 = vunpack.c.l.b16 %v3273
  %v3539 = vunpack.c.h.b16 %v3273
  %v3540 = vunpack.c.l.b16 %v3274
  %v3541 = vunpack.c.l.b16 %v3275
  %v3542 = vunpack.c.h.b16 %v3275
  %v3543 = vunpack.c.l.b16 %v3276
  %v3544 = vunpack.c.l.b16 %v3277
  %v3545 = vunpack.c.h.b16 %v3277
  %v3546 = vunpack.c.l.b16 %v3278
  %v3547 = vunpack.c.l.b16 %v3279
  %v3548 = vunpack.c.h.b16 %v3279
  %v3549 = vunpack.c.l.b16 %v3280
  %v3550 = vunpack.c.l.b16 %v3281
  %v3551 = vunpack.c.h.b16 %v3281
  %v3552 = vunpack.c.l.b16 %v3282
  %v3553 = vunpack.c.l.b16 %v3283
  %v3554 = vunpack.c.h.b16 %v3283
  %v3555 = vunpack.c.l.b16 %v3284
  %v3556 = vunpack.c.l.b16 %v3285
  %v3557 = vunpack.c.h.b16 %v3285
  %v3558 = vunpack.c.l.b16 %v3286
  %v3559 = vunpack.c.l.b16 %v3287
  %v3560 = vunpack.c.h.b16 %v3287
  %v3561 = vunpack.c.l.b16 %v3288
  %v3562 = vunpack.c.l.b16 %v3289
  %v3563 = vunpack.c.h.b16 %v3289
  %v3564 = vunpack.c.l.b16 %v3290
  %v3565 = vunpack.c.l.b16 %v3291
  %v3566 = vunpack.c.h.b16 %v3291
  %v3567 = vunpack.c.l.b16 %v3292
  %v3568 = vunpack.c.l.b16 %v3293
  %v3569 = vunpack.c.h.b16 %v3293
  %v3570 = vunpack.c.l.b16 %v3294
  %v3571 = vunpack.c.l.b16 %v3295
  %v3572 = vunpack.c.h.b16 %v3295
  %v3573 = vunpack.c.l.b16 %v3296
  %v3574 = vunpack.c.l.b16 %v3297
  %v3575 = vunpack.c.h.b16 %v3297
  %v3576 = vunpack.c.l.b16 %v3298
  %v3577 = vunpack.c.l.b16 %v3299
  %v3578 = vunpack.c.h.b16 %v3299
  %v3579 = vunpack.c.l.b16 %v3300
  %v3580 = vunpack.c.l.b16 %v3301
  %v3581 = vunpack.c.h.b16 %v3301
  %v3582 = vunpack.c.l.b16 %v3302
  %v3583 = vunpack.c.l.b16 %v3303
  %v3584 = vunpack.c.h.b16 %v3303
  %v3585 = vunpack.c.l.b16 %v3304
  %v3586 = vunpack.c.l.b16 %v3305
  %v3587 = vunpack.c.h.b16 %v3305
  %v3588 = vunpack.c.l.b16 %v3306
  %v3589 = vunpack.c.l.b16 %v3307
  %v3590 = vunpack.c.h.b16 %v3307
  %v3591 = vunpack.c.l.b16 %v3308
  %v3592 = vunpack.c.l.b16 %v3309
  %v3593 = vunpack.c.h.b16 %v3309
  %v3594 = vunpack.c.l.b16 %v3310
  %v3595 = vunpack.c.l.b16 %v3311
  %v3596 = vunpack.c.h.b16 %v3311
  %v3597 = vunpack.c.l.b16 %v3312
  %v3598 = vunpack.c.l.b16 %v3313
  %v3599 = vunpack.c.h.b16 %v3313
  %v3600 = vunpack.c.l.b16 %v3314
  %v3601 = vunpack.c.l.b16 %v3315
  %v3602 = vunpack.c.h.b16 %v3315
  %v3603 = vunpack.c.l.b16 %v3316
  %v3604 = vunpack.c.l.b16 %v3317
  %v3605 = vunpack.c.h.b16 %v3317
  %v3606 = vunpack.c.l.b16 %v3318
  %v3607 = vunpack.c.l.b16 %v3319
  %v3608 = vunpack.c.h.b16 %v3319
  %v3609 = vunpack.c.l.b16 %v3320
  %v3610 = vunpack.c.l.b16 %v3321
  %v3611 = vunpack.c.h.b16 %v3321
  %v3612 = vunpack.c.l.b16 %v3322
  %v3613 = vunpack.c.l.b16 %v3323
  %v3614 = vunpack.c.h.b16 %v3323
  %v3615 = vunpack.c.l.b16 %v3324
  %v3616 = vunpack.c.l.b16 %v3325
  %v3617 = vunpack.c.h.b16 %v3325
  %v3618 = vunpack.c.l.b16 %v3326
  %v3619 = vunpack.c.l.b16 %v3327
  %v3620 = vunpack.c.h.b16 %v3327
  %v3621 = vunpack.c.l.b16 %v3328
  %v3622 = vunpack.c.l.b16 %v3329
  %v3623 = vunpack.c.h.b16 %v3329
  %v3624 = vunpack.c.l.b16 %v3330
  %v3625 = vunpack.c.l.b16 %v3331
  %v3626 = vunpack.c.h.b16 %v3331
  %v3627 = vunpack.c.l.b16 %v3332
  %v3628 = vunpack.c.l.b16 %v3333
  %v3629 = vunpack.c.h.b16 %v3333
  %v3630 = vunpack.c.l.b16 %v3334
  %v3631 = vunpack.c.l.b16 %v3335
  %v3632 = vunpack.c.h.b16 %v3335
  %v3633 = vunpack.c.l.b16 %v3336
  %v3634 = vunpack.c.l.b16 %v3337
  %v3635 = vunpack.c.h.b16 %v3337
  %v3636 = vunpack.c.l.b16 %v3338
  %v3637 = vunpack.c.l.b16 %v3339
  %v3638 = vunpack.c.h.b16 %v3339
  %v3639 = vunpack.c.l.b16 %v3340
  %v3640 = vunpack.c.l.b16 %v3341
  %v3641 = vunpack.c.h.b16 %v3341
  %v3642 = vunpack.c.l.b16 %v3342
  %v3643 = vunpack.c.l.b16 %v3343
  %v3644 = vunpack.c.h.b16 %v3343
  %v3645 = vunpack.c.l.b16 %v3344
  %v3646 = vunpack.c.l.b16 %v3345
  %v3647 = vunpack.c.h.b16 %v3345
  %v3648 = vunpack.c.l.b16 %v3346
  %v3649 = vunpack.c.l.b16 %v3347
  %v3650 = vunpack.c.h.b16 %v3347
  %v3651 = vunpack.c.l.b16 %v3348
  %v3652 = vunpack.c.l.b16 %v3349
  %v3653 = vunpack.c.h.b16 %v3349
  %v3654 = vunpack.c.l.b16 %v3350
  %v3655 = vunpack.c.l.b16 %v3351
  %v3656 = vunpack.c.h.b16 %v3351
  %v3657 = vunpack.c.l.b16 %v3352
  %v3658 = vunpack.c.l.b16 %v3353
  %v3659 = vunpack.c.h.b16 %v3353
  %v3660 = vunpack.c.l.b16 %v3354
  %v3661 = vunpack.c.l.b16 %v3355
  %v3662 = vunpack.c.h.b16 %v3355
  %v3663 = vunpack.c.l.b16 %v3356
  %v3664 = vunpack.c.l.b16 %v3357
  %v3665 = vunpack.c.h.b16 %v3357
  %v3666 = vunpack.c.l.b16 %v3358
  %v3667 = vunpack.c.l.b16 %v3359
  %v3668 = vunpack.c.h.b16 %v3359
  %v3669 = vunpack.c.l.b16 %v3360
  %v3670 = vunpack.c.l.b16 %v3361
  %v3671 = vunpack.c.h.b16 %v3361
  %v3672 = vunpack.c.l.b16 %v3362
  %v3673 = vunpack.c.l.b16 %v3363
  %v3674 = vunpack.c.h.b16 %v3363
  %v3675 = vunpack.c.l.b16 %v3364
  %v3676 = vunpack.c.l.b16 %v3365
  %v3677 = vunpack.c.h.b16 %v3365
  %v3678 = vunpack.c.l.b16 %v3366
  %v3679 = vunpack.c.l.b16 %v3367
  %v3680 = vunpack.c.h.b16 %v3367
  %v3681 = vunpack.c.l.b16 %v3368
  %v3682 = vunpack.c.l.b16 %v3369
  %v3683 = vunpack.c.h.b16 %v3369
  %v3684 = vunpack.c.l.b16 %v3370
  %v3685 = vunpack.c.l.b16 %v3371
  %v3686 = vunpack.c.h.b16 %v3371
  %v3687 = vunpack.c.l.b16 %v3372
  %v3688 = vunpack.c.l.b16 %v3373
  %v3689 = vunpack.c.h.b16 %v3373
  %v3690 = vunpack.c.l.b16 %v3374
  %v3691 = vunpack.c.l.b16 %v3375
  %v3692 = vunpack.c.h.b16 %v3375
  %v3693 = vunpack.c.l.b16 %v3376
  %v3694 = vunpack.c.l.b16 %v3377
  %v3695 = vunpack.c.h.b16 %v3377
  %v3696 = vunpack.c.l.b16 %v3378
  %v3697 = vunpack.c.l.b16 %v3379
  %v3698 = vunpack.c.h.b16 %v3379
  %v3699 = vunpack.c.l.b16 %v3380
  %v3700 = vunpack.c.l.b16 %v3381
  %v3701 = vunpack.c.h.b16 %v3381
  %v3702 = vunpack.c.l.b16 %v3382
  %v3703 = vunpack.c.l.b16 %v3383
  %v3704 = vunpack.c.h.b16 %v3383
  %v3705 = vunpack.c.l.b16 %v3384
  %v3706 = vunpack.c.l.b16 %v3385
  %v3707 = vunpack.c.h.b16 %v3385
  %v3708 = vunpack.c.l.b16 %v3386
  %v3709 = vunpack.c.l.b16 %v3387
  %v3710 = vunpack.c.h.b16 %v3387
  %v3711 = vunpack.c.l.b16 %v3388
  %v3712 = vunpack.c.l.b16 %v3389
  %v3713 = vunpack.c.h.b16 %v3389
  %v3714 = vunpack.c.l.b16 %v3390
  %v3715 = vunpack.c.l.b16 %v3391
  %v3716 = vunpack.c.h.b16 %v3391
  %v3717 = vunpack.c.l.b16 %v3392
  %v3718 = vunpack.c.l.b16 %v3393
  %v3719 = vunpack.c.h.b16 %v3393
  %v3720 = vunpack.c.l.b16 %v3394
  %v3721 = vunpack.c.l.b16 %v3395
  %v3722 = vunpack.c.h.b16 %v3395
  %v3723 = vunpack.c.l.b16 %v3396
  %v3724 = vunpack.c.l.b16 %v3397
  %v3725 = vunpack.c.h.b16 %v3397
  %v3726 = vunpack.c.l.b16 %v3398
  %v3727 = vpack.c.b16 %v3538, %v3535
  %v3728 = vpack.c.b16 %v3539, %v3536
  %v3729 = vpack.c.b16 %v3540, %v3537
  %v3730 = vpack.c.b16 %v3544, %v3541
  %v3731 = vpack.c.b16 %v3545, %v3542
  %v3732 = vpack.c.b16 %v3546, %v3543
  %v3733 = vpack.c.b16 %v3550, %v3547
  %v3734 = vpack.c.b16 %v3551, %v3548
  %v3735 = vpack.c.b16 %v3552, %v3549
  %v3736 = vpack.c.b16 %v3556, %v3553
  %v3737 = vpack.c.b16 %v3557, %v3554
  %v3738 = vpack.c.b16 %v3558, %v3555
  %v3739 = vpack.c.b16 %v3562, %v3559
  %v3740 = vpack.c.b16 %v3563, %v3560
  %v3741 = vpack.c.b16 %v3564, %v3561
  %v3742 = vpack.c.b16 %v3568, %v3565
  %v3743 = vpack.c.b16 %v3569, %v3566
  %v3744 = vpack.c.b16 %v3570, %v3567
  %v3745 = vpack.c.b16 %v3574, %v3571
  %v3746 = vpack.c.b16 %v3575, %v3572
  %v3747 = vpack.c.b16 %v3576, %v3573
  %v3748 = vpack.c.b16 %v3580, %v3577
  %v3749 = vpack.c.b16 %v3581, %v3578
  %v3750 = vpack.c.b16 %v3582, %v3579
  %v3751 = vpack.c.b16 %v3586, %v3583
  %v3752 = vpack.c.b16 %v3587, %v3584
  %v3753 = vpack.c.b16 %v3588, %v3585
  %v3754 = vpack.c.b16 %v3592, %v3589
  %v3755 = vpack.c.b16 %v3593, %v3590
  %v3756 = vpack.c.b16 %v3594, %v3591
  %v3757 = vpack.c.b16 %v3598, %v3595
  %v3758 = vpack.c.b16 %v3599, %v3596
  %v3759 = vpack.c.b16 %v3600, %v3597
  %v3760 = vpack.c.b16 %v3604, %v3601
  %v3761 = vpack.c.b16 %v3605, %v3602
  %v3762 = vpack.c.b16 %v3606, %v3603
  %v3763 = vpack.c.b16 %v3610, %v3607
  %v3764 = vpack.c.b16 %v3611, %v3608
  %v3765 = vpack.c.b16 %v3612, %v3609
  %v3766 = vpack.c.b16 %v3616, %v3613
  %v3767 = vpack.c.b16 %v3617, %v3614
  %v3768 = vpack.c.b16 %v3618, %v3615
  %v3769 = vpack.c.b16 %v3622, %v3619
  %v3770 = vpack.c.b16 %v3623, %v3620
  %v3771 = vpack.c.b16 %v3624, %v3621
  %v3772 = vpack.c.b16 %v3628, %v3625
  %v3773 = vpack.c.b16 %v3629, %v3626
  %v3774 = vpack.c.b16 %v3630, %v3627
  %v3775 = vpack.c.b16 %v3634, %v3631
  %v3776 = vpack.c.b16 %v3635, %v3632
  %v3777 = vpack.c.b16 %v3636, %v3633
  %v3778 = vpack.c.b16 %v3640, %v3637
  %v3779 = vpack.c.b16 %v3641, %v3638
  %v3780 = vpack.c.b16 %v3642, %v3639
  %v3781 = vpack.c.b16 %v3646, %v3643
  %v3782 = vpack.c.b16 %v3647, %v3644
  %v3783 = vpack.c.b16 %v3648, %v3645
  %v3784 = vpack.c.b16 %v3652, %v3649
  %v3785 = vpack.c.b16 %v3653, %v3650
  %v3786 = vpack.c.b16 %v3654, %v3651
  %v3787 = vpack.c.b16 %v3658, %v3655
  %v3788 = vpack.c.b16 %v3659, %v3656
  %v3789 = vpack.c.b16 %v3660, %v3657
  %v3790 = vpack.c.b16 %v3664, %v3661
  %v3791 = vpack.c.b16 %v3665, %v3662
  %v3792 = vpack.c.b16 %v3666, %v3663
  %v3793 = vpack.c.b16 %v3670, %v3667
  %v3794 = vpack.c.b16 %v3671, %v3668
  %v3795 = vpack.c.b16 %v3672, %v3669
  %v3796 = vpack.c.b16 %v3676, %v3673
  %v3797 = vpack.c.b16 %v3677, %v3674
  %v3798 = vpack.c.b16 %v3678, %v3675
  %v3799 = vpack.c.b16 %v3682, %v3679
  %v3800 = vpack.c.b16 %v3683, %v3680
  %v3801 = vpack.c.b16 %v3684, %v3681
  %v3802 = vpack.c.b16 %v3688, %v3685
  %v3803 = vpack.c.b16 %v3689, %v3686
  %v3804 = vpack.c.b16 %v3690, %v3687
  %v3805 = vpack.c.b16 %v3694, %v3691
  %v3806 = vpack.c.b16 %v3695, %v3692
  %v3807 = vpack.c.b16 %v3696, %v3693
  %v3808 = vpack.c.b16 %v3700, %v3697
  %v3809 = vpack.c.b16 %v3701, %v3698
  %v3810 = vpack.c.b16 %v3702, %v3699
  %v3811 = vpack.c.b16 %v3706, %v3703
  %v3812 = vpack.c.b16 %v3707, %v3704
  %v3813 = vpack.c.b16 %v3708, %v3705
  %v3814 = vpack.c.b16 %v3712, %v3709
  %v3815 = vpack.c.b16 %v3713, %v3710
  %v3816 = vpack.c.b16 %v3714, %v3711
  %v3817 = vpack.c.b16 %v3718, %v3715
  %v3818 = vpack.c.b16 %v3719, %v3716
  %v3819 = vpack.c.b16 %v3720, %v3717
  %v3820 = vpack.c.b16 %v3724, %v3721
  %v3821 = vpack.c.b16 %v3725, %v3722
  %v3822 = vpack.c.b16 %v3726, %v3723
  %3919 = vmatpush.bf16.msra.mxu0 %v3748
  %3920 = vmatpush.bf16.msra.mxu0 %v3745
  %3921 = vmatpush.bf16.msra.mxu0 %v3742
  %3922 = vmatpush.bf16.msra.mxu0 %v3739
  %3923 = vmatpush.bf16.msra.mxu0 %v3736
  %3924 = vmatpush.bf16.msra.mxu0 %v3733
  %3925 = vmatpush.bf16.msra.mxu0 %v3730
  %3926 = vmatpush.bf16.msra.mxu0 %v3727
  %3927 = vmatmul.bf16.gmra.mxu0 %v3267
  %v3928 = vpop.f32.mrf.mxu0
  %v3929 = vadd.f32 %v3401, %v3928
  %v3930 = vpop.f32.mrf.mxu0
  %3931 = vdwg.mxu0
  %3932 = vmatpush.bf16.msra.mxu0 %v3772
  %3933 = vmatpush.bf16.msra.mxu0 %v3769
  %3934 = vmatpush.bf16.msra.mxu0 %v3766
  %3935 = vmatpush.bf16.msra.mxu0 %v3763
  %3936 = vmatpush.bf16.msra.mxu0 %v3760
  %3937 = vmatpush.bf16.msra.mxu0 %v3757
  %3938 = vmatpush.bf16.msra.mxu0 %v3754
  %3939 = vmatpush.bf16.msra.mxu0 %v3751
  %3940 = vmatmul.bf16.gmra.mxu0 %v3268
  %v3941 = vpop.f32.mrf.mxu0
  %v3942 = vadd.f32 %v3929, %v3941
  %v3943 = vpop.f32.mrf.mxu0
  %3944 = vdwg.mxu0
  %3945 = vmatpush.bf16.msra.mxu0 %v3796
  %3946 = vmatpush.bf16.msra.mxu0 %v3793
  %3947 = vmatpush.bf16.msra.mxu0 %v3790
  %3948 = vmatpush.bf16.msra.mxu0 %v3787
  %3949 = vmatpush.bf16.msra.mxu0 %v3784
  %3950 = vmatpush.bf16.msra.mxu0 %v3781
  %3951 = vmatpush.bf16.msra.mxu0 %v3778
  %3952 = vmatpush.bf16.msra.mxu0 %v3775
  %3953 = vmatmul.bf16.gmra.mxu0 %v3269
  %v3954 = vpop.f32.mrf.mxu0
  %v3955 = vadd.f32 %v3942, %v3954
  %v3956 = vpop.f32.mrf.mxu0
  %3957 = vdwg.mxu0
  %3958 = vmatpush.bf16.msra.mxu0 %v3820
  %3959 = vmatpush.bf16.msra.mxu0 %v3817
  %3960 = vmatpush.bf16.msra.mxu0 %v3814
  %3961 = vmatpush.bf16.msra.mxu0 %v3811
  %3962 = vmatpush.bf16.msra.mxu0 %v3808
  %3963 = vmatpush.bf16.msra.mxu0 %v3805
  %3964 = vmatpush.bf16.msra.mxu0 %v3802
  %3965 = vmatpush.bf16.msra.mxu0 %v3799
  %3966 = vmatmul.bf16.gmra.mxu0 %v3270
  %v3967 = vpop.f32.mrf.mxu0
  %v3968 = vadd.f32 %v3955, %v3967
  %v3969 = vpop.f32.mrf.mxu0
  %3970 = vdwg.mxu0
  %3971 = vmatpush.bf16.msra.mxu0 %v3749
  %3972 = vmatpush.bf16.msra.mxu0 %v3746
  %3973 = vmatpush.bf16.msra.mxu0 %v3743
  %3974 = vmatpush.bf16.msra.mxu0 %v3740
  %3975 = vmatpush.bf16.msra.mxu0 %v3737
  %3976 = vmatpush.bf16.msra.mxu0 %v3734
  %3977 = vmatpush.bf16.msra.mxu0 %v3731
  %3978 = vmatpush.bf16.msra.mxu0 %v3728
  %3979 = vmatmul.bf16.gmra.mxu0 %v3267
  %v3980 = vpop.f32.mrf.mxu0
  %v3981 = vadd.f32 %v3402, %v3980
  %v3982 = vpop.f32.mrf.mxu0
  %3983 = vdwg.mxu0
  %3984 = vmatpush.bf16.msra.mxu0 %v3773
  %3985 = vmatpush.bf16.msra.mxu0 %v3770
  %3986 = vmatpush.bf16.msra.mxu0 %v3767
  %3987 = vmatpush.bf16.msra.mxu0 %v3764
  %3988 = vmatpush.bf16.msra.mxu0 %v3761
  %3989 = vmatpush.bf16.msra.mxu0 %v3758
  %3990 = vmatpush.bf16.msra.mxu0 %v3755
  %3991 = vmatpush.bf16.msra.mxu0 %v3752
  %3992 = vmatmul.bf16.gmra.mxu0 %v3268
  %v3993 = vpop.f32.mrf.mxu0
  %v3994 = vadd.f32 %v3981, %v3993
  %v3995 = vpop.f32.mrf.mxu0
  %3996 = vdwg.mxu0
  %3997 = vmatpush.bf16.msra.mxu0 %v3797
  %3998 = vmatpush.bf16.msra.mxu0 %v3794
  %3999 = vmatpush.bf16.msra.mxu0 %v3791
  %4000 = vmatpush.bf16.msra.mxu0 %v3788
  %4001 = vmatpush.bf16.msra.mxu0 %v3785
  %4002 = vmatpush.bf16.msra.mxu0 %v3782
  %4003 = vmatpush.bf16.msra.mxu0 %v3779
  %4004 = vmatpush.bf16.msra.mxu0 %v3776
  %4005 = vmatmul.bf16.gmra.mxu0 %v3269
  %v4006 = vpop.f32.mrf.mxu0
  %v4007 = vadd.f32 %v3994, %v4006
  %v4008 = vpop.f32.mrf.mxu0
  %4009 = vdwg.mxu0
  %4010 = vmatpush.bf16.msra.mxu0 %v3821
  %4011 = vmatpush.bf16.msra.mxu0 %v3818
  %4012 = vmatpush.bf16.msra.mxu0 %v3815
  %4013 = vmatpush.bf16.msra.mxu0 %v3812
  %4014 = vmatpush.bf16.msra.mxu0 %v3809
  %4015 = vmatpush.bf16.msra.mxu0 %v3806
  %4016 = vmatpush.bf16.msra.mxu0 %v3803
  %4017 = vmatpush.bf16.msra.mxu0 %v3800
  %4018 = vmatmul.bf16.gmra.mxu0 %v3270
  %v4019 = vpop.f32.mrf.mxu0
  %v4020 = vadd.f32 %v4007, %v4019
  %v4021 = vpop.f32.mrf.mxu0
  %4022 = vdwg.mxu0
  %4023 = vmatpush.bf16.msra.mxu0 %v3750
  %4024 = vmatpush.bf16.msra.mxu0 %v3747
  %4025 = vmatpush.bf16.msra.mxu0 %v3744
  %4026 = vmatpush.bf16.msra.mxu0 %v3741
  %4027 = vmatpush.bf16.msra.mxu0 %v3738
  %4028 = vmatpush.bf16.msra.mxu0 %v3735
  %4029 = vmatpush.bf16.msra.mxu0 %v3732
  %4030 = vmatpush.bf16.msra.mxu0 %v3729
  %4031 = vmatmul.bf16.gmra.mxu0 %v3267
  %v4032 = vpop.f32.mrf.mxu0
  %v4033 = vadd.f32 %v3403, %v4032
  %v4034 = vpop.f32.mrf.mxu0
  %4035 = vdwg.mxu0
  %4036 = vmatpush.bf16.msra.mxu0 %v3774
  %4037 = vmatpush.bf16.msra.mxu0 %v3771
  %4038 = vmatpush.bf16.msra.mxu0 %v3768
  %4039 = vmatpush.bf16.msra.mxu0 %v3765
  %4040 = vmatpush.bf16.msra.mxu0 %v3762
  %4041 = vmatpush.bf16.msra.mxu0 %v3759
  %4042 = vmatpush.bf16.msra.mxu0 %v3756
  %4043 = vmatpush.bf16.msra.mxu0 %v3753
  %4044 = vmatmul.bf16.gmra.mxu0 %v3268
  %v4045 = vpop.f32.mrf.mxu0
  %v4046 = vadd.f32 %v4033, %v4045
  %v4047 = vpop.f32.mrf.mxu0
  %4048 = vdwg.mxu0
  %4049 = vmatpush.bf16.msra.mxu0 %v3798
  %4050 = vmatpush.bf16.msra.mxu0 %v3795
  %4051 = vmatpush.bf16.msra.mxu0 %v3792
  %4052 = vmatpush.bf16.msra.mxu0 %v3789
  %4053 = vmatpush.bf16.msra.mxu0 %v3786
  %4054 = vmatpush.bf16.msra.mxu0 %v3783
  %4055 = vmatpush.bf16.msra.mxu0 %v3780
  %4056 = vmatpush.bf16.msra.mxu0 %v3777
  %4057 = vmatmul.bf16.gmra.mxu0 %v3269
  %v4058 = vpop.f32.mrf.mxu0
  %v4059 = vadd.f32 %v4046, %v4058
  %v4060 = vpop.f32.mrf.mxu0
  %4061 = vdwg.mxu0
  %4062 = vmatpush.bf16.msra.mxu0 %v3822
  %4063 = vmatpush.bf16.msra.mxu0 %v3819
  %4064 = vmatpush.bf16.msra.mxu0 %v3816
  %4065 = vmatpush.bf16.msra.mxu0 %v3813
  %4066 = vmatpush.bf16.msra.mxu0 %v3810
  %4067 = vmatpush.bf16.msra.mxu0 %v3807
  %4068 = vmatpush.bf16.msra.mxu0 %v3804
  %4069 = vmatpush.bf16.msra.mxu0 %v3801
  %4070 = vmatmul.bf16.gmra.mxu0 %v3270
  %v4071 = vpop.f32.mrf.mxu0
  %v4072 = vadd.f32 %v4059, %v4071
  %v4073 = vpop.f32.mrf.mxu0
  %4074 = vdwg.mxu0
  %v4078 = vrot.slane %v4020, 6
  %v4079 = vrot.slane %v4072, 4
  %vm4080 = vcmask 1041408
  %v4081 = vsel %vm4080, %v3968, %v4078
  %vm4082 = vcmask 1043456
  %v4083 = vsel %vm4082, %v4081, %v4079
  %4085 = vst [vmem:[%s9] sm:$0x3f] %v4083
  // Predicated region
  $region38: #{decoder_forward.1} parent=0 // pred_check
    _
  $region39: #{decoder_forward.1} parent=0 // pred_check_branch
    %4087 = sbr.rel (0) target = $region41
  $region40: #{decoder_forward.1} parent=0 // pred_region
    _
  $region41: #{decoder_forward.1} parent=0 // pred_fallthru
    _
  // Predicated region
  $region42: #{decoder_forward.1} parent=0 // pred_check
    _
  $region43: #{decoder_forward.1} parent=0 // pred_check_branch
    %4089 = sbr.rel (0) target = $region45
  $region44: #{decoder_forward.1} parent=0 // pred_region
    _
  $region45: #{decoder_forward.1} parent=0 // pred_fallthru
    _

</llo_original>
